<compile_context>
chip_gen: v6e
topology: v6e:2x2x1
jax: 0.10.0
libtpu: 0.0.40
codegen_flags: <defaults>
</compile_context>

<pallas_src>
import functools

import jax
import jax.numpy as jnp
from jax.experimental import pallas as pl
from jax.experimental.pallas import tpu as pltpu  # noqa: F401  (TPU backend)

# --- model hyper-parameters (small, consistent with the module) -------------
VOCAB = 50          # src_vocab_size
EMBED = 32          # embed_size
HEADS = 4
HEAD_DIM = EMBED // HEADS
FWD_EXP = 4         # forward_expansion
HIDDEN = FWD_EXP * EMBED
NUM_LAYERS = 2
MAX_LEN = 16        # max_length
BATCH = 2
SEQ = 8
EPS = 1e-5          # nn.LayerNorm default eps


def _layernorm(x, gamma, beta):
    # PyTorch LayerNorm: biased variance over last dim.
    mean = jnp.mean(x, axis=-1, keepdims=True)
    var = jnp.mean((x - mean) ** 2, axis=-1, keepdims=True)
    return (x - mean) * jax.lax.rsqrt(var + EPS) * gamma + beta


def encoder_kernel(x_ref, mask_ref,
                   wq_ref, wk_ref, wv_ref, wo_ref, bo_ref,
                   g1_ref, be1_ref,
                   wf1_ref, bf1_ref, wf2_ref, bf2_ref,
                   g2_ref, be2_ref,
                   out_ref):
    """Entire encoder stack in a single invocation (no grid).

    x_ref:    (N*S, E) activations after embedding.
    mask_ref: (N, 1, S) float, 1.0 = keep / 0.0 = masked (key positions).
    All weight refs are stacked along a leading layer axis of size NUM_LAYERS.
    Dropout layers are treated as identity (eval mode).
    """
    n, _, s = mask_ref.shape
    ns, e = x_ref.shape

    x = x_ref[...]                                              # (NS, E)

    # Hoisted once, shared by all layers/heads.
    neg_mask = jnp.broadcast_to(mask_ref[...] == 0.0, (n, s, s))
    scale = 1.0 / jnp.sqrt(jnp.float32(EMBED))

    for l in range(NUM_LAYERS):                                  # static unroll
        # --- self attention --------------------------------------------------
        # Block-diagonal (E, E) weights => one full-width matmul per projection.
        # The 1/sqrt(embed_size) scale is folded into Q (masked entries stay at
        # -1e20 which underflows to exactly 0 after softmax either way).
        q = jnp.dot(x, wq_ref[l], preferred_element_type=jnp.float32) * scale
        k = jnp.dot(x, wk_ref[l], preferred_element_type=jnp.float32)
        v = jnp.dot(x, wv_ref[l], preferred_element_type=jnp.float32)
        q3 = q.reshape(n, s, e)
        k3 = k.reshape(n, s, e)
        v3 = v.reshape(n, s, e)

        head_outs = []
        for h in range(HEADS):                                   # static unroll
            lo = h * HEAD_DIM
            hi = lo + HEAD_DIM
            en = jnp.einsum('nqd,nkd->nqk', q3[:, :, lo:hi], k3[:, :, lo:hi],
                            preferred_element_type=jnp.float32)   # (N, S, S)
            en = jnp.where(neg_mask, jnp.float32(-1e20), en)
            en = en - jnp.max(en, axis=-1, keepdims=True)
            p = jnp.exp(en)
            p = p * pl.reciprocal(jnp.sum(p, axis=-1, keepdims=True),
                                  approx=True)
            head_outs.append(
                jnp.einsum('nqk,nkd->nqd', p, v3[:, :, lo:hi],
                           preferred_element_type=jnp.float32))    # (N, S, D)

        attn = jnp.concatenate(head_outs, axis=-1).reshape(ns, e)  # (NS, E)
        attn = jnp.dot(attn, wo_ref[l],
                       preferred_element_type=jnp.float32) + bo_ref[l]  # fc_out

        # --- residual + norm1 (dropout = identity) ---------------------------
        # TODO(synk): nn.Dropout is treated as identity (eval mode).
        x1 = _layernorm(attn + x, g1_ref[l], be1_ref[l])

        # --- feed forward -----------------------------------------------------
        h1 = jnp.dot(x1, wf1_ref[l],
                     preferred_element_type=jnp.float32) + bf1_ref[l]
        h1 = jnp.maximum(h1, 0.0)
        ff = jnp.dot(h1, wf2_ref[l],
                     preferred_element_type=jnp.float32) + bf2_ref[l]

        # --- residual + norm2 -------------------------------------------------
        x = _layernorm(ff + x1, g2_ref[l], be2_ref[l])

    out_ref[...] = x


def encoder_pallas(x_flat, mask3, weights):
    """x_flat: (N*S, E) f32; mask3: (N, 1, S) f32; weights: tuple of stacked params."""
    ns, e = x_flat.shape

    flops = NUM_LAYERS * (
        2 * ns * e * e * 4                                  # Q, K, V, fc_out
        + 2 * (BATCH * HEADS) * SEQ * SEQ * HEAD_DIM * 2    # scores + PV
        + 2 * ns * e * HIDDEN * 2)                          # FFN
    transcendentals = NUM_LAYERS * (BATCH * HEADS * SEQ * SEQ + 4 * ns)
    bytes_accessed = 4 * (2 * x_flat.size + mask3.size
                          + sum(int(w.size) for w in weights))

    return pl.pallas_call(
        encoder_kernel,
        out_shape=jax.ShapeDtypeStruct((ns, e), jnp.float32),
        cost_estimate=pl.CostEstimate(flops=flops,
                                      transcendentals=transcendentals,
                                      bytes_accessed=bytes_accessed),
    )(x_flat, mask3, *weights)


def init_params(key):
    """Deterministic synthetic weights (shapes match the PyTorch module)."""
    kw, kp, kl = jax.random.split(key, 3)
    params = {
        "word_embedding": 0.02 * jax.random.normal(kw, (VOCAB, EMBED), jnp.float32),
        "position_embedding": 0.02 * jax.random.normal(kp, (MAX_LEN, EMBED), jnp.float32),
        "layers": [],
    }
    layer_keys = jax.random.split(kl, NUM_LAYERS)
    D, E, Hf = HEAD_DIM, EMBED, HIDDEN
    for lk in layer_keys:
        ks = jax.random.split(lk, 6)
        layer = {
            "wq": 0.1 * jax.random.normal(ks[0], (D, D), jnp.float32),
            "wk": 0.1 * jax.random.normal(ks[1], (D, D), jnp.float32),
            "wv": 0.1 * jax.random.normal(ks[2], (D, D), jnp.float32),
            "wo": 0.1 * jax.random.normal(ks[3], (E, E), jnp.float32),
            "bo": jnp.zeros((1, E), jnp.float32),
            "g1": jnp.ones((1, E), jnp.float32),
            "be1": jnp.zeros((1, E), jnp.float32),
            "wf1": 0.1 * jax.random.normal(ks[4], (E, Hf), jnp.float32),
            "bf1": jnp.zeros((1, Hf), jnp.float32),
            "wf2": 0.1 * jax.random.normal(ks[5], (Hf, E), jnp.float32),
            "bf2": jnp.zeros((1, E), jnp.float32),
            "g2": jnp.ones((1, E), jnp.float32),
            "be2": jnp.zeros((1, E), jnp.float32),
        }
        params["layers"].append(layer)
    return params


@jax.jit
def encoder_forward(tokens, mask, params):
    """tokens: (N, S) int32; mask: (N, S) {0,1}."""
    N, S = tokens.shape
    positions = jnp.arange(S, dtype=jnp.int32)
    out = (params["word_embedding"][tokens]
           + params["position_embedding"][positions][None])
    # TODO(synk): encoder-level nn.Dropout treated as identity (eval mode).
    mask3 = mask.astype(jnp.float32).reshape(N, 1, S)

    # Stack per-layer params; expand the shared per-head (D, D) Q/K/V weights
    # to block-diagonal (E, E) so each projection is one full-width matmul.
    eye_h = jnp.eye(HEADS, dtype=jnp.float32)
    layers = params["layers"]

    def stack(name, block_diag=False):
        ws = [p[name] for p in layers]
        if block_diag:
            ws = [jnp.kron(eye_h, w) for w in ws]
        return jnp.stack(ws)

    weights = (stack("wq", True), stack("wk", True), stack("wv", True),
               stack("wo"), stack("bo"),
               stack("g1"), stack("be1"),
               stack("wf1"), stack("bf1"), stack("wf2"), stack("bf2"),
               stack("g2"), stack("be2"))

    out_flat = encoder_pallas(out.reshape(N * S, EMBED), mask3, weights)
    return out_flat.reshape(N, S, EMBED)


if __name__ == "__main__":
    key = jax.random.PRNGKey(0)
    kparam, ktok = jax.random.split(key)
    params = init_params(kparam)

    tokens = jax.random.randint(ktok, (BATCH, SEQ), 0, VOCAB, dtype=jnp.int32)
    # valid everywhere except last two positions of the second sequence
    mask = jnp.ones((BATCH, SEQ), jnp.int32).at[1, SEQ - 2:].set(0)

    out = encoder_forward(tokens, mask, params)
    out = jax.block_until_ready(out)
    assert out.shape == (BATCH, SEQ, EMBED), out.shape
    assert jnp.all(jnp.isfinite(out))
    print("KERNEL_OK")
</pallas_src>

<mosaic_0001>
module attributes {stable_mosaic.version = 11 : i64} {
  func.func @encoder_kernel(%arg0: memref<16x32xf32, #tpu.memory_space<vmem>>, %arg1: memref<2x1x8xf32, #tpu.memory_space<vmem>>, %arg2: memref<2x32x32xf32, #tpu.memory_space<vmem>>, %arg3: memref<2x32x32xf32, #tpu.memory_space<vmem>>, %arg4: memref<2x32x32xf32, #tpu.memory_space<vmem>>, %arg5: memref<2x32x32xf32, #tpu.memory_space<vmem>>, %arg6: memref<2x1x32xf32, #tpu.memory_space<vmem>>, %arg7: memref<2x1x32xf32, #tpu.memory_space<vmem>>, %arg8: memref<2x1x32xf32, #tpu.memory_space<vmem>>, %arg9: memref<2x32x128xf32, #tpu.memory_space<vmem>>, %arg10: memref<2x1x128xf32, #tpu.memory_space<vmem>>, %arg11: memref<2x128x32xf32, #tpu.memory_space<vmem>>, %arg12: memref<2x1x32xf32, #tpu.memory_space<vmem>>, %arg13: memref<2x1x32xf32, #tpu.memory_space<vmem>>, %arg14: memref<2x1x32xf32, #tpu.memory_space<vmem>>, %arg15: memref<16x32xf32, #tpu.memory_space<vmem>>) attributes {dimension_semantics = [], scalar_prefetch = 0 : i64, scratch_operands = 0 : i64, tpu.core_type = #tpu.core_type<tc>} {
    %c0 = arith.constant 0 : index
    %c0_0 = arith.constant 0 : index
    %0 = vector.load %arg0[%c0, %c0_0] : memref<16x32xf32, #tpu.memory_space<vmem>>, vector<16x32xf32>
    %c0_1 = arith.constant 0 : index
    %c0_2 = arith.constant 0 : index
    %c0_3 = arith.constant 0 : index
    %1 = vector.load %arg1[%c0_1, %c0_2, %c0_3] : memref<2x1x8xf32, #tpu.memory_space<vmem>>, vector<2x1x8xf32>
    %cst = arith.constant 0.000000e+00 : f32
    %2 = vector.broadcast %cst : f32 to vector<2x1x8xf32>
    %3 = arith.cmpf oeq, %1, %2 : vector<2x1x8xf32>
    %4 = vector.shape_cast %3 : vector<2x1x8xi1> to vector<2x1x8xi1>
    %5 = vector.broadcast %4 : vector<2x1x8xi1> to vector<2x8x8xi1>
    %cst_4 = arith.constant 3.200000e+01 : f32
    %6 = math.sqrt %cst_4 : f32
    %cst_5 = arith.constant 1.000000e+00 : f32
    %7 = arith.divf %cst_5, %6 : f32
    %c0_6 = arith.constant 0 : index
    %c0_7 = arith.constant 0 : index
    %c0_8 = arith.constant 0 : index
    %8 = vector.load %arg2[%c0_6, %c0_7, %c0_8] : memref<2x32x32xf32, #tpu.memory_space<vmem>>, vector<1x32x32xf32>
    %9 = vector.shape_cast %8 : vector<1x32x32xf32> to vector<32x32xf32>
    %cst_9 = arith.constant dense<0.000000e+00> : vector<16x32xf32>
    %10 = tpu.matmul %0, %9, %cst_9 {dimension_numbers = #tpu.dot_dimension_numbers<[1], [0], [0], [1], [0, 0, 1, 1], [], []>} : vector<16x32xf32>, vector<32x32xf32>, vector<16x32xf32> -> vector<16x32xf32>
    %11 = vector.broadcast %7 : f32 to vector<16x32xf32>
    %12 = arith.mulf %10, %11 : vector<16x32xf32>
    %c0_10 = arith.constant 0 : index
    %c0_11 = arith.constant 0 : index
    %c0_12 = arith.constant 0 : index
    %13 = vector.load %arg3[%c0_10, %c0_11, %c0_12] : memref<2x32x32xf32, #tpu.memory_space<vmem>>, vector<1x32x32xf32>
    %14 = vector.shape_cast %13 : vector<1x32x32xf32> to vector<32x32xf32>
    %cst_13 = arith.constant dense<0.000000e+00> : vector<16x32xf32>
    %15 = tpu.matmul %0, %14, %cst_13 {dimension_numbers = #tpu.dot_dimension_numbers<[1], [0], [0], [1], [0, 0, 1, 1], [], []>} : vector<16x32xf32>, vector<32x32xf32>, vector<16x32xf32> -> vector<16x32xf32>
    %c0_14 = arith.constant 0 : index
    %c0_15 = arith.constant 0 : index
    %c0_16 = arith.constant 0 : index
    %16 = vector.load %arg4[%c0_14, %c0_15, %c0_16] : memref<2x32x32xf32, #tpu.memory_space<vmem>>, vector<1x32x32xf32>
    %17 = vector.shape_cast %16 : vector<1x32x32xf32> to vector<32x32xf32>
    %cst_17 = arith.constant dense<0.000000e+00> : vector<16x32xf32>
    %18 = tpu.matmul %0, %17, %cst_17 {dimension_numbers = #tpu.dot_dimension_numbers<[1], [0], [0], [1], [0, 0, 1, 1], [], []>} : vector<16x32xf32>, vector<32x32xf32>, vector<16x32xf32> -> vector<16x32xf32>
    %19 = vector.shape_cast %12 : vector<16x32xf32> to vector<2x8x32xf32>
    %20 = vector.shape_cast %15 : vector<16x32xf32> to vector<2x8x32xf32>
    %21 = vector.shape_cast %18 : vector<16x32xf32> to vector<2x8x32xf32>
    %22 = vector.extract_strided_slice %19 {offsets = [0, 0, 0], sizes = [2, 8, 8], strides = [1, 1, 1]} : vector<2x8x32xf32> to vector<2x8x8xf32>
    %23 = vector.extract_strided_slice %20 {offsets = [0, 0, 0], sizes = [2, 8, 8], strides = [1, 1, 1]} : vector<2x8x32xf32> to vector<2x8x8xf32>
    "tpu.trace_start"() <{level = 10 : i32, message = "nqd,nkd->nqk"}> : () -> ()
    %cst_18 = arith.constant dense<0.000000e+00> : vector<2x8x8xf32>
    %24 = tpu.matmul %22, %23, %cst_18 {dimension_numbers = #tpu.dot_dimension_numbers<[2], [2], [1], [1], [0, 0, 0, 1, 1, 1], [0], [0]>} : vector<2x8x8xf32>, vector<2x8x8xf32>, vector<2x8x8xf32> -> vector<2x8x8xf32>
    %cst_19 = arith.constant -1.000000e+20 : f32
    "tpu.trace_stop"() : () -> ()
    %25 = vector.broadcast %cst_19 : f32 to vector<2x8x8xf32>
    %26 = arith.select %5, %25, %24 : vector<2x8x8xi1>, vector<2x8x8xf32>
    %cst_20 = arith.constant dense<0xFF800000> : vector<2x8xf32>
    %27 = vector.multi_reduction <maximumf>, %26, %cst_20 [2] : vector<2x8x8xf32> to vector<2x8xf32>
    %28 = vector.shape_cast %27 : vector<2x8xf32> to vector<2x8x1xf32>
    %29 = vector.broadcast %28 : vector<2x8x1xf32> to vector<2x8x8xf32>
    %30 = arith.subf %26, %29 : vector<2x8x8xf32>
    %31 = math.exp %30 : vector<2x8x8xf32>
    %cst_21 = arith.constant dense<0.000000e+00> : vector<2x8xf32>
    %32 = vector.multi_reduction <add>, %31, %cst_21 [2] : vector<2x8x8xf32> to vector<2x8xf32>
    %33 = vector.shape_cast %32 : vector<2x8xf32> to vector<2x8x1xf32>
    %34 = tpu.reciprocal %33 {approx = true} : vector<2x8x1xf32> -> vector<2x8x1xf32>
    %35 = vector.broadcast %34 : vector<2x8x1xf32> to vector<2x8x8xf32>
    %36 = arith.mulf %31, %35 : vector<2x8x8xf32>
    %37 = vector.extract_strided_slice %21 {offsets = [0, 0, 0], sizes = [2, 8, 8], strides = [1, 1, 1]} : vector<2x8x32xf32> to vector<2x8x8xf32>
    "tpu.trace_start"() <{level = 10 : i32, message = "nqk,nkd->nqd"}> : () -> ()
    %cst_22 = arith.constant dense<0.000000e+00> : vector<2x8x8xf32>
    %38 = tpu.matmul %36, %37, %cst_22 {dimension_numbers = #tpu.dot_dimension_numbers<[2], [1], [1], [2], [0, 0, 0, 1, 1, 2], [0], [0]>} : vector<2x8x8xf32>, vector<2x8x8xf32>, vector<2x8x8xf32> -> vector<2x8x8xf32>
    "tpu.trace_stop"() : () -> ()
    %39 = vector.extract_strided_slice %19 {offsets = [0, 0, 8], sizes = [2, 8, 8], strides = [1, 1, 1]} : vector<2x8x32xf32> to vector<2x8x8xf32>
    %40 = vector.extract_strided_slice %20 {offsets = [0, 0, 8], sizes = [2, 8, 8], strides = [1, 1, 1]} : vector<2x8x32xf32> to vector<2x8x8xf32>
    "tpu.trace_start"() <{level = 10 : i32, message = "nqd,nkd->nqk"}> : () -> ()
    %cst_23 = arith.constant dense<0.000000e+00> : vector<2x8x8xf32>
    %41 = tpu.matmul %39, %40, %cst_23 {dimension_numbers = #tpu.dot_dimension_numbers<[2], [2], [1], [1], [0, 0, 0, 1, 1, 1], [0], [0]>} : vector<2x8x8xf32>, vector<2x8x8xf32>, vector<2x8x8xf32> -> vector<2x8x8xf32>
    %cst_24 = arith.constant -1.000000e+20 : f32
    "tpu.trace_stop"() : () -> ()
    %42 = vector.broadcast %cst_24 : f32 to vector<2x8x8xf32>
    %43 = arith.select %5, %42, %41 : vector<2x8x8xi1>, vector<2x8x8xf32>
    %cst_25 = arith.constant dense<0xFF800000> : vector<2x8xf32>
    %44 = vector.multi_reduction <maximumf>, %43, %cst_25 [2] : vector<2x8x8xf32> to vector<2x8xf32>
    %45 = vector.shape_cast %44 : vector<2x8xf32> to vector<2x8x1xf32>
    %46 = vector.broadcast %45 : vector<2x8x1xf32> to vector<2x8x8xf32>
    %47 = arith.subf %43, %46 : vector<2x8x8xf32>
    %48 = math.exp %47 : vector<2x8x8xf32>
    %cst_26 = arith.constant dense<0.000000e+00> : vector<2x8xf32>
    %49 = vector.multi_reduction <add>, %48, %cst_26 [2] : vector<2x8x8xf32> to vector<2x8xf32>
    %50 = vector.shape_cast %49 : vector<2x8xf32> to vector<2x8x1xf32>
    %51 = tpu.reciprocal %50 {approx = true} : vector<2x8x1xf32> -> vector<2x8x1xf32>
    %52 = vector.broadcast %51 : vector<2x8x1xf32> to vector<2x8x8xf32>
    %53 = arith.mulf %48, %52 : vector<2x8x8xf32>
    %54 = vector.extract_strided_slice %21 {offsets = [0, 0, 8], sizes = [2, 8, 8], strides = [1, 1, 1]} : vector<2x8x32xf32> to vector<2x8x8xf32>
    "tpu.trace_start"() <{level = 10 : i32, message = "nqk,nkd->nqd"}> : () -> ()
    %cst_27 = arith.constant dense<0.000000e+00> : vector<2x8x8xf32>
    %55 = tpu.matmul %53, %54, %cst_27 {dimension_numbers = #tpu.dot_dimension_numbers<[2], [1], [1], [2], [0, 0, 0, 1, 1, 2], [0], [0]>} : vector<2x8x8xf32>, vector<2x8x8xf32>, vector<2x8x8xf32> -> vector<2x8x8xf32>
    "tpu.trace_stop"() : () -> ()
    %56 = vector.extract_strided_slice %19 {offsets = [0, 0, 16], sizes = [2, 8, 8], strides = [1, 1, 1]} : vector<2x8x32xf32> to vector<2x8x8xf32>
    %57 = vector.extract_strided_slice %20 {offsets = [0, 0, 16], sizes = [2, 8, 8], strides = [1, 1, 1]} : vector<2x8x32xf32> to vector<2x8x8xf32>
    "tpu.trace_start"() <{level = 10 : i32, message = "nqd,nkd->nqk"}> : () -> ()
    %cst_28 = arith.constant dense<0.000000e+00> : vector<2x8x8xf32>
    %58 = tpu.matmul %56, %57, %cst_28 {dimension_numbers = #tpu.dot_dimension_numbers<[2], [2], [1], [1], [0, 0, 0, 1, 1, 1], [0], [0]>} : vector<2x8x8xf32>, vector<2x8x8xf32>, vector<2x8x8xf32> -> vector<2x8x8xf32>
    %cst_29 = arith.constant -1.000000e+20 : f32
    "tpu.trace_stop"() : () -> ()
    %59 = vector.broadcast %cst_29 : f32 to vector<2x8x8xf32>
    %60 = arith.select %5, %59, %58 : vector<2x8x8xi1>, vector<2x8x8xf32>
    %cst_30 = arith.constant dense<0xFF800000> : vector<2x8xf32>
    %61 = vector.multi_reduction <maximumf>, %60, %cst_30 [2] : vector<2x8x8xf32> to vector<2x8xf32>
    %62 = vector.shape_cast %61 : vector<2x8xf32> to vector<2x8x1xf32>
    %63 = vector.broadcast %62 : vector<2x8x1xf32> to vector<2x8x8xf32>
    %64 = arith.subf %60, %63 : vector<2x8x8xf32>
    %65 = math.exp %64 : vector<2x8x8xf32>
    %cst_31 = arith.constant dense<0.000000e+00> : vector<2x8xf32>
    %66 = vector.multi_reduction <add>, %65, %cst_31 [2] : vector<2x8x8xf32> to vector<2x8xf32>
    %67 = vector.shape_cast %66 : vector<2x8xf32> to vector<2x8x1xf32>
    %68 = tpu.reciprocal %67 {approx = true} : vector<2x8x1xf32> -> vector<2x8x1xf32>
    %69 = vector.broadcast %68 : vector<2x8x1xf32> to vector<2x8x8xf32>
    %70 = arith.mulf %65, %69 : vector<2x8x8xf32>
    %71 = vector.extract_strided_slice %21 {offsets = [0, 0, 16], sizes = [2, 8, 8], strides = [1, 1, 1]} : vector<2x8x32xf32> to vector<2x8x8xf32>
    "tpu.trace_start"() <{level = 10 : i32, message = "nqk,nkd->nqd"}> : () -> ()
    %cst_32 = arith.constant dense<0.000000e+00> : vector<2x8x8xf32>
    %72 = tpu.matmul %70, %71, %cst_32 {dimension_numbers = #tpu.dot_dimension_numbers<[2], [1], [1], [2], [0, 0, 0, 1, 1, 2], [0], [0]>} : vector<2x8x8xf32>, vector<2x8x8xf32>, vector<2x8x8xf32> -> vector<2x8x8xf32>
    "tpu.trace_stop"() : () -> ()
    %73 = vector.extract_strided_slice %19 {offsets = [0, 0, 24], sizes = [2, 8, 8], strides = [1, 1, 1]} : vector<2x8x32xf32> to vector<2x8x8xf32>
    %74 = vector.extract_strided_slice %20 {offsets = [0, 0, 24], sizes = [2, 8, 8], strides = [1, 1, 1]} : vector<2x8x32xf32> to vector<2x8x8xf32>
    "tpu.trace_start"() <{level = 10 : i32, message = "nqd,nkd->nqk"}> : () -> ()
    %cst_33 = arith.constant dense<0.000000e+00> : vector<2x8x8xf32>
    %75 = tpu.matmul %73, %74, %cst_33 {dimension_numbers = #tpu.dot_dimension_numbers<[2], [2], [1], [1], [0, 0, 0, 1, 1, 1], [0], [0]>} : vector<2x8x8xf32>, vector<2x8x8xf32>, vector<2x8x8xf32> -> vector<2x8x8xf32>
    %cst_34 = arith.constant -1.000000e+20 : f32
    "tpu.trace_stop"() : () -> ()
    %76 = vector.broadcast %cst_34 : f32 to vector<2x8x8xf32>
    %77 = arith.select %5, %76, %75 : vector<2x8x8xi1>, vector<2x8x8xf32>
    %cst_35 = arith.constant dense<0xFF800000> : vector<2x8xf32>
    %78 = vector.multi_reduction <maximumf>, %77, %cst_35 [2] : vector<2x8x8xf32> to vector<2x8xf32>
    %79 = vector.shape_cast %78 : vector<2x8xf32> to vector<2x8x1xf32>
    %80 = vector.broadcast %79 : vector<2x8x1xf32> to vector<2x8x8xf32>
    %81 = arith.subf %77, %80 : vector<2x8x8xf32>
    %82 = math.exp %81 : vector<2x8x8xf32>
    %cst_36 = arith.constant dense<0.000000e+00> : vector<2x8xf32>
    %83 = vector.multi_reduction <add>, %82, %cst_36 [2] : vector<2x8x8xf32> to vector<2x8xf32>
    %84 = vector.shape_cast %83 : vector<2x8xf32> to vector<2x8x1xf32>
    %85 = tpu.reciprocal %84 {approx = true} : vector<2x8x1xf32> -> vector<2x8x1xf32>
    %86 = vector.broadcast %85 : vector<2x8x1xf32> to vector<2x8x8xf32>
    %87 = arith.mulf %82, %86 : vector<2x8x8xf32>
    %88 = vector.extract_strided_slice %21 {offsets = [0, 0, 24], sizes = [2, 8, 8], strides = [1, 1, 1]} : vector<2x8x32xf32> to vector<2x8x8xf32>
    "tpu.trace_start"() <{level = 10 : i32, message = "nqk,nkd->nqd"}> : () -> ()
    %cst_37 = arith.constant dense<0.000000e+00> : vector<2x8x8xf32>
    %89 = tpu.matmul %87, %88, %cst_37 {dimension_numbers = #tpu.dot_dimension_numbers<[2], [1], [1], [2], [0, 0, 0, 1, 1, 2], [0], [0]>} : vector<2x8x8xf32>, vector<2x8x8xf32>, vector<2x8x8xf32> -> vector<2x8x8xf32>
    "tpu.trace_stop"() : () -> ()
    %90 = tpu.concatenate %38, %55, %72, %89 in 2 : vector<2x8x8xf32>, vector<2x8x8xf32>, vector<2x8x8xf32>, vector<2x8x8xf32> -> vector<2x8x32xf32>
    %91 = vector.shape_cast %90 : vector<2x8x32xf32> to vector<16x32xf32>
    %c0_38 = arith.constant 0 : index
    %c0_39 = arith.constant 0 : index
    %c0_40 = arith.constant 0 : index
    %92 = vector.load %arg5[%c0_38, %c0_39, %c0_40] : memref<2x32x32xf32, #tpu.memory_space<vmem>>, vector<1x32x32xf32>
    %93 = vector.shape_cast %92 : vector<1x32x32xf32> to vector<32x32xf32>
    %cst_41 = arith.constant dense<0.000000e+00> : vector<16x32xf32>
    %94 = tpu.matmul %91, %93, %cst_41 {dimension_numbers = #tpu.dot_dimension_numbers<[1], [0], [0], [1], [0, 0, 1, 1], [], []>} : vector<16x32xf32>, vector<32x32xf32>, vector<16x32xf32> -> vector<16x32xf32>
    %c0_42 = arith.constant 0 : index
    %c0_43 = arith.constant 0 : index
    %c0_44 = arith.constant 0 : index
    %95 = vector.load %arg6[%c0_42, %c0_43, %c0_44] : memref<2x1x32xf32, #tpu.memory_space<vmem>>, vector<1x1x32xf32>
    %96 = vector.shape_cast %95 : vector<1x1x32xf32> to vector<1x32xf32>
    %97 = vector.broadcast %96 : vector<1x32xf32> to vector<16x32xf32>
    %98 = arith.addf %94, %97 : vector<16x32xf32>
    %99 = arith.addf %98, %0 : vector<16x32xf32>
    %c0_45 = arith.constant 0 : index
    %c0_46 = arith.constant 0 : index
    %c0_47 = arith.constant 0 : index
    %100 = vector.load %arg7[%c0_45, %c0_46, %c0_47] : memref<2x1x32xf32, #tpu.memory_space<vmem>>, vector<1x1x32xf32>
    %101 = vector.shape_cast %100 : vector<1x1x32xf32> to vector<1x32xf32>
    %c0_48 = arith.constant 0 : index
    %c0_49 = arith.constant 0 : index
    %c0_50 = arith.constant 0 : index
    %102 = vector.load %arg8[%c0_48, %c0_49, %c0_50] : memref<2x1x32xf32, #tpu.memory_space<vmem>>, vector<1x1x32xf32>
    %103 = vector.shape_cast %102 : vector<1x1x32xf32> to vector<1x32xf32>
    %cst_51 = arith.constant dense<0.000000e+00> : vector<16xf32>
    %104 = vector.multi_reduction <add>, %99, %cst_51 [1] : vector<16x32xf32> to vector<16xf32>
    %105 = vector.shape_cast %104 : vector<16xf32> to vector<16x1xf32>
    %cst_52 = arith.constant 3.200000e+01 : f32
    %106 = vector.broadcast %cst_52 : f32 to vector<16x1xf32>
    %107 = arith.divf %105, %106 : vector<16x1xf32>
    %108 = vector.broadcast %107 : vector<16x1xf32> to vector<16x32xf32>
    %109 = arith.subf %99, %108 : vector<16x32xf32>
    %110 = arith.mulf %109, %109 : vector<16x32xf32>
    %cst_53 = arith.constant dense<0.000000e+00> : vector<16xf32>
    %111 = vector.multi_reduction <add>, %110, %cst_53 [1] : vector<16x32xf32> to vector<16xf32>
    %112 = vector.shape_cast %111 : vector<16xf32> to vector<16x1xf32>
    %cst_54 = arith.constant 3.200000e+01 : f32
    %113 = vector.broadcast %cst_54 : f32 to vector<16x1xf32>
    %114 = arith.divf %112, %113 : vector<16x1xf32>
    %115 = vector.broadcast %107 : vector<16x1xf32> to vector<16x32xf32>
    %116 = arith.subf %99, %115 : vector<16x32xf32>
    %cst_55 = arith.constant 9.99999974E-6 : f32
    %117 = vector.broadcast %cst_55 : f32 to vector<16x1xf32>
    %118 = arith.addf %114, %117 : vector<16x1xf32>
    %119 = math.rsqrt %118 : vector<16x1xf32>
    %120 = vector.broadcast %119 : vector<16x1xf32> to vector<16x32xf32>
    %121 = arith.mulf %116, %120 : vector<16x32xf32>
    %122 = vector.broadcast %101 : vector<1x32xf32> to vector<16x32xf32>
    %123 = arith.mulf %121, %122 : vector<16x32xf32>
    %124 = vector.broadcast %103 : vector<1x32xf32> to vector<16x32xf32>
    %125 = arith.addf %123, %124 : vector<16x32xf32>
    %c0_56 = arith.constant 0 : index
    %c0_57 = arith.constant 0 : index
    %c0_58 = arith.constant 0 : index
    %126 = vector.load %arg9[%c0_56, %c0_57, %c0_58] : memref<2x32x128xf32, #tpu.memory_space<vmem>>, vector<1x32x128xf32>
    %127 = vector.shape_cast %126 : vector<1x32x128xf32> to vector<32x128xf32>
    %cst_59 = arith.constant dense<0.000000e+00> : vector<16x128xf32>
    %128 = tpu.matmul %125, %127, %cst_59 {dimension_numbers = #tpu.dot_dimension_numbers<[1], [0], [0], [1], [0, 0, 1, 1], [], []>} : vector<16x32xf32>, vector<32x128xf32>, vector<16x128xf32> -> vector<16x128xf32>
    %c0_60 = arith.constant 0 : index
    %c0_61 = arith.constant 0 : index
    %c0_62 = arith.constant 0 : index
    %129 = vector.load %arg10[%c0_60, %c0_61, %c0_62] : memref<2x1x128xf32, #tpu.memory_space<vmem>>, vector<1x1x128xf32>
    %130 = vector.shape_cast %129 : vector<1x1x128xf32> to vector<1x128xf32>
    %131 = vector.broadcast %130 : vector<1x128xf32> to vector<16x128xf32>
    %132 = arith.addf %128, %131 : vector<16x128xf32>
    %cst_63 = arith.constant 0.000000e+00 : f32
    %133 = vector.broadcast %cst_63 : f32 to vector<16x128xf32>
    %134 = arith.maximumf %132, %133 : vector<16x128xf32>
    %c0_64 = arith.constant 0 : index
    %c0_65 = arith.constant 0 : index
    %c0_66 = arith.constant 0 : index
    %135 = vector.load %arg11[%c0_64, %c0_65, %c0_66] : memref<2x128x32xf32, #tpu.memory_space<vmem>>, vector<1x128x32xf32>
    %136 = vector.shape_cast %135 : vector<1x128x32xf32> to vector<128x32xf32>
    %cst_67 = arith.constant dense<0.000000e+00> : vector<16x32xf32>
    %137 = tpu.matmul %134, %136, %cst_67 {dimension_numbers = #tpu.dot_dimension_numbers<[1], [0], [0], [1], [0, 0, 1, 1], [], []>} : vector<16x128xf32>, vector<128x32xf32>, vector<16x32xf32> -> vector<16x32xf32>
    %c0_68 = arith.constant 0 : index
    %c0_69 = arith.constant 0 : index
    %c0_70 = arith.constant 0 : index
    %138 = vector.load %arg12[%c0_68, %c0_69, %c0_70] : memref<2x1x32xf32, #tpu.memory_space<vmem>>, vector<1x1x32xf32>
    %139 = vector.shape_cast %138 : vector<1x1x32xf32> to vector<1x32xf32>
    %140 = vector.broadcast %139 : vector<1x32xf32> to vector<16x32xf32>
    %141 = arith.addf %137, %140 : vector<16x32xf32>
    %142 = arith.addf %141, %125 : vector<16x32xf32>
    %c0_71 = arith.constant 0 : index
    %c0_72 = arith.constant 0 : index
    %c0_73 = arith.constant 0 : index
    %143 = vector.load %arg13[%c0_71, %c0_72, %c0_73] : memref<2x1x32xf32, #tpu.memory_space<vmem>>, vector<1x1x32xf32>
    %144 = vector.shape_cast %143 : vector<1x1x32xf32> to vector<1x32xf32>
    %c0_74 = arith.constant 0 : index
    %c0_75 = arith.constant 0 : index
    %c0_76 = arith.constant 0 : index
    %145 = vector.load %arg14[%c0_74, %c0_75, %c0_76] : memref<2x1x32xf32, #tpu.memory_space<vmem>>, vector<1x1x32xf32>
    %146 = vector.shape_cast %145 : vector<1x1x32xf32> to vector<1x32xf32>
    %cst_77 = arith.constant dense<0.000000e+00> : vector<16xf32>
    %147 = vector.multi_reduction <add>, %142, %cst_77 [1] : vector<16x32xf32> to vector<16xf32>
    %148 = vector.shape_cast %147 : vector<16xf32> to vector<16x1xf32>
    %cst_78 = arith.constant 3.200000e+01 : f32
    %149 = vector.broadcast %cst_78 : f32 to vector<16x1xf32>
    %150 = arith.divf %148, %149 : vector<16x1xf32>
    %151 = vector.broadcast %150 : vector<16x1xf32> to vector<16x32xf32>
    %152 = arith.subf %142, %151 : vector<16x32xf32>
    %153 = arith.mulf %152, %152 : vector<16x32xf32>
    %cst_79 = arith.constant dense<0.000000e+00> : vector<16xf32>
    %154 = vector.multi_reduction <add>, %153, %cst_79 [1] : vector<16x32xf32> to vector<16xf32>
    %155 = vector.shape_cast %154 : vector<16xf32> to vector<16x1xf32>
    %cst_80 = arith.constant 3.200000e+01 : f32
    %156 = vector.broadcast %cst_80 : f32 to vector<16x1xf32>
    %157 = arith.divf %155, %156 : vector<16x1xf32>
    %158 = vector.broadcast %150 : vector<16x1xf32> to vector<16x32xf32>
    %159 = arith.subf %142, %158 : vector<16x32xf32>
    %cst_81 = arith.constant 9.99999974E-6 : f32
    %160 = vector.broadcast %cst_81 : f32 to vector<16x1xf32>
    %161 = arith.addf %157, %160 : vector<16x1xf32>
    %162 = math.rsqrt %161 : vector<16x1xf32>
    %163 = vector.broadcast %162 : vector<16x1xf32> to vector<16x32xf32>
    %164 = arith.mulf %159, %163 : vector<16x32xf32>
    %165 = vector.broadcast %144 : vector<1x32xf32> to vector<16x32xf32>
    %166 = arith.mulf %164, %165 : vector<16x32xf32>
    %167 = vector.broadcast %146 : vector<1x32xf32> to vector<16x32xf32>
    %168 = arith.addf %166, %167 : vector<16x32xf32>
    %c1 = arith.constant 1 : index
    %c0_82 = arith.constant 0 : index
    %c0_83 = arith.constant 0 : index
    %169 = vector.load %arg2[%c1, %c0_82, %c0_83] : memref<2x32x32xf32, #tpu.memory_space<vmem>>, vector<1x32x32xf32>
    %170 = vector.shape_cast %169 : vector<1x32x32xf32> to vector<32x32xf32>
    %cst_84 = arith.constant dense<0.000000e+00> : vector<16x32xf32>
    %171 = tpu.matmul %168, %170, %cst_84 {dimension_numbers = #tpu.dot_dimension_numbers<[1], [0], [0], [1], [0, 0, 1, 1], [], []>} : vector<16x32xf32>, vector<32x32xf32>, vector<16x32xf32> -> vector<16x32xf32>
    %172 = vector.broadcast %7 : f32 to vector<16x32xf32>
    %173 = arith.mulf %171, %172 : vector<16x32xf32>
    %c1_85 = arith.constant 1 : index
    %c0_86 = arith.constant 0 : index
    %c0_87 = arith.constant 0 : index
    %174 = vector.load %arg3[%c1_85, %c0_86, %c0_87] : memref<2x32x32xf32, #tpu.memory_space<vmem>>, vector<1x32x32xf32>
    %175 = vector.shape_cast %174 : vector<1x32x32xf32> to vector<32x32xf32>
    %cst_88 = arith.constant dense<0.000000e+00> : vector<16x32xf32>
    %176 = tpu.matmul %168, %175, %cst_88 {dimension_numbers = #tpu.dot_dimension_numbers<[1], [0], [0], [1], [0, 0, 1, 1], [], []>} : vector<16x32xf32>, vector<32x32xf32>, vector<16x32xf32> -> vector<16x32xf32>
    %c1_89 = arith.constant 1 : index
    %c0_90 = arith.constant 0 : index
    %c0_91 = arith.constant 0 : index
    %177 = vector.load %arg4[%c1_89, %c0_90, %c0_91] : memref<2x32x32xf32, #tpu.memory_space<vmem>>, vector<1x32x32xf32>
    %178 = vector.shape_cast %177 : vector<1x32x32xf32> to vector<32x32xf32>
    %cst_92 = arith.constant dense<0.000000e+00> : vector<16x32xf32>
    %179 = tpu.matmul %168, %178, %cst_92 {dimension_numbers = #tpu.dot_dimension_numbers<[1], [0], [0], [1], [0, 0, 1, 1], [], []>} : vector<16x32xf32>, vector<32x32xf32>, vector<16x32xf32> -> vector<16x32xf32>
    %180 = vector.shape_cast %173 : vector<16x32xf32> to vector<2x8x32xf32>
    %181 = vector.shape_cast %176 : vector<16x32xf32> to vector<2x8x32xf32>
    %182 = vector.shape_cast %179 : vector<16x32xf32> to vector<2x8x32xf32>
    %183 = vector.extract_strided_slice %180 {offsets = [0, 0, 0], sizes = [2, 8, 8], strides = [1, 1, 1]} : vector<2x8x32xf32> to vector<2x8x8xf32>
    %184 = vector.extract_strided_slice %181 {offsets = [0, 0, 0], sizes = [2, 8, 8], strides = [1, 1, 1]} : vector<2x8x32xf32> to vector<2x8x8xf32>
    "tpu.trace_start"() <{level = 10 : i32, message = "nqd,nkd->nqk"}> : () -> ()
    %cst_93 = arith.constant dense<0.000000e+00> : vector<2x8x8xf32>
    %185 = tpu.matmul %183, %184, %cst_93 {dimension_numbers = #tpu.dot_dimension_numbers<[2], [2], [1], [1], [0, 0, 0, 1, 1, 1], [0], [0]>} : vector<2x8x8xf32>, vector<2x8x8xf32>, vector<2x8x8xf32> -> vector<2x8x8xf32>
    %cst_94 = arith.constant -1.000000e+20 : f32
    "tpu.trace_stop"() : () -> ()
    %186 = vector.broadcast %cst_94 : f32 to vector<2x8x8xf32>
    %187 = arith.select %5, %186, %185 : vector<2x8x8xi1>, vector<2x8x8xf32>
    %cst_95 = arith.constant dense<0xFF800000> : vector<2x8xf32>
    %188 = vector.multi_reduction <maximumf>, %187, %cst_95 [2] : vector<2x8x8xf32> to vector<2x8xf32>
    %189 = vector.shape_cast %188 : vector<2x8xf32> to vector<2x8x1xf32>
    %190 = vector.broadcast %189 : vector<2x8x1xf32> to vector<2x8x8xf32>
    %191 = arith.subf %187, %190 : vector<2x8x8xf32>
    %192 = math.exp %191 : vector<2x8x8xf32>
    %cst_96 = arith.constant dense<0.000000e+00> : vector<2x8xf32>
    %193 = vector.multi_reduction <add>, %192, %cst_96 [2] : vector<2x8x8xf32> to vector<2x8xf32>
    %194 = vector.shape_cast %193 : vector<2x8xf32> to vector<2x8x1xf32>
    %195 = tpu.reciprocal %194 {approx = true} : vector<2x8x1xf32> -> vector<2x8x1xf32>
    %196 = vector.broadcast %195 : vector<2x8x1xf32> to vector<2x8x8xf32>
    %197 = arith.mulf %192, %196 : vector<2x8x8xf32>
    %198 = vector.extract_strided_slice %182 {offsets = [0, 0, 0], sizes = [2, 8, 8], strides = [1, 1, 1]} : vector<2x8x32xf32> to vector<2x8x8xf32>
    "tpu.trace_start"() <{level = 10 : i32, message = "nqk,nkd->nqd"}> : () -> ()
    %cst_97 = arith.constant dense<0.000000e+00> : vector<2x8x8xf32>
    %199 = tpu.matmul %197, %198, %cst_97 {dimension_numbers = #tpu.dot_dimension_numbers<[2], [1], [1], [2], [0, 0, 0, 1, 1, 2], [0], [0]>} : vector<2x8x8xf32>, vector<2x8x8xf32>, vector<2x8x8xf32> -> vector<2x8x8xf32>
    "tpu.trace_stop"() : () -> ()
    %200 = vector.extract_strided_slice %180 {offsets = [0, 0, 8], sizes = [2, 8, 8], strides = [1, 1, 1]} : vector<2x8x32xf32> to vector<2x8x8xf32>
    %201 = vector.extract_strided_slice %181 {offsets = [0, 0, 8], sizes = [2, 8, 8], strides = [1, 1, 1]} : vector<2x8x32xf32> to vector<2x8x8xf32>
    "tpu.trace_start"() <{level = 10 : i32, message = "nqd,nkd->nqk"}> : () -> ()
    %cst_98 = arith.constant dense<0.000000e+00> : vector<2x8x8xf32>
    %202 = tpu.matmul %200, %201, %cst_98 {dimension_numbers = #tpu.dot_dimension_numbers<[2], [2], [1], [1], [0, 0, 0, 1, 1, 1], [0], [0]>} : vector<2x8x8xf32>, vector<2x8x8xf32>, vector<2x8x8xf32> -> vector<2x8x8xf32>
    %cst_99 = arith.constant -1.000000e+20 : f32
    "tpu.trace_stop"() : () -> ()
    %203 = vector.broadcast %cst_99 : f32 to vector<2x8x8xf32>
    %204 = arith.select %5, %203, %202 : vector<2x8x8xi1>, vector<2x8x8xf32>
    %cst_100 = arith.constant dense<0xFF800000> : vector<2x8xf32>
    %205 = vector.multi_reduction <maximumf>, %204, %cst_100 [2] : vector<2x8x8xf32> to vector<2x8xf32>
    %206 = vector.shape_cast %205 : vector<2x8xf32> to vector<2x8x1xf32>
    %207 = vector.broadcast %206 : vector<2x8x1xf32> to vector<2x8x8xf32>
    %208 = arith.subf %204, %207 : vector<2x8x8xf32>
    %209 = math.exp %208 : vector<2x8x8xf32>
    %cst_101 = arith.constant dense<0.000000e+00> : vector<2x8xf32>
    %210 = vector.multi_reduction <add>, %209, %cst_101 [2] : vector<2x8x8xf32> to vector<2x8xf32>
    %211 = vector.shape_cast %210 : vector<2x8xf32> to vector<2x8x1xf32>
    %212 = tpu.reciprocal %211 {approx = true} : vector<2x8x1xf32> -> vector<2x8x1xf32>
    %213 = vector.broadcast %212 : vector<2x8x1xf32> to vector<2x8x8xf32>
    %214 = arith.mulf %209, %213 : vector<2x8x8xf32>
    %215 = vector.extract_strided_slice %182 {offsets = [0, 0, 8], sizes = [2, 8, 8], strides = [1, 1, 1]} : vector<2x8x32xf32> to vector<2x8x8xf32>
    "tpu.trace_start"() <{level = 10 : i32, message = "nqk,nkd->nqd"}> : () -> ()
    %cst_102 = arith.constant dense<0.000000e+00> : vector<2x8x8xf32>
    %216 = tpu.matmul %214, %215, %cst_102 {dimension_numbers = #tpu.dot_dimension_numbers<[2], [1], [1], [2], [0, 0, 0, 1, 1, 2], [0], [0]>} : vector<2x8x8xf32>, vector<2x8x8xf32>, vector<2x8x8xf32> -> vector<2x8x8xf32>
    "tpu.trace_stop"() : () -> ()
    %217 = vector.extract_strided_slice %180 {offsets = [0, 0, 16], sizes = [2, 8, 8], strides = [1, 1, 1]} : vector<2x8x32xf32> to vector<2x8x8xf32>
    %218 = vector.extract_strided_slice %181 {offsets = [0, 0, 16], sizes = [2, 8, 8], strides = [1, 1, 1]} : vector<2x8x32xf32> to vector<2x8x8xf32>
    "tpu.trace_start"() <{level = 10 : i32, message = "nqd,nkd->nqk"}> : () -> ()
    %cst_103 = arith.constant dense<0.000000e+00> : vector<2x8x8xf32>
    %219 = tpu.matmul %217, %218, %cst_103 {dimension_numbers = #tpu.dot_dimension_numbers<[2], [2], [1], [1], [0, 0, 0, 1, 1, 1], [0], [0]>} : vector<2x8x8xf32>, vector<2x8x8xf32>, vector<2x8x8xf32> -> vector<2x8x8xf32>
    %cst_104 = arith.constant -1.000000e+20 : f32
    "tpu.trace_stop"() : () -> ()
    %220 = vector.broadcast %cst_104 : f32 to vector<2x8x8xf32>
    %221 = arith.select %5, %220, %219 : vector<2x8x8xi1>, vector<2x8x8xf32>
    %cst_105 = arith.constant dense<0xFF800000> : vector<2x8xf32>
    %222 = vector.multi_reduction <maximumf>, %221, %cst_105 [2] : vector<2x8x8xf32> to vector<2x8xf32>
    %223 = vector.shape_cast %222 : vector<2x8xf32> to vector<2x8x1xf32>
    %224 = vector.broadcast %223 : vector<2x8x1xf32> to vector<2x8x8xf32>
    %225 = arith.subf %221, %224 : vector<2x8x8xf32>
    %226 = math.exp %225 : vector<2x8x8xf32>
    %cst_106 = arith.constant dense<0.000000e+00> : vector<2x8xf32>
    %227 = vector.multi_reduction <add>, %226, %cst_106 [2] : vector<2x8x8xf32> to vector<2x8xf32>
    %228 = vector.shape_cast %227 : vector<2x8xf32> to vector<2x8x1xf32>
    %229 = tpu.reciprocal %228 {approx = true} : vector<2x8x1xf32> -> vector<2x8x1xf32>
    %230 = vector.broadcast %229 : vector<2x8x1xf32> to vector<2x8x8xf32>
    %231 = arith.mulf %226, %230 : vector<2x8x8xf32>
    %232 = vector.extract_strided_slice %182 {offsets = [0, 0, 16], sizes = [2, 8, 8], strides = [1, 1, 1]} : vector<2x8x32xf32> to vector<2x8x8xf32>
    "tpu.trace_start"() <{level = 10 : i32, message = "nqk,nkd->nqd"}> : () -> ()
    %cst_107 = arith.constant dense<0.000000e+00> : vector<2x8x8xf32>
    %233 = tpu.matmul %231, %232, %cst_107 {dimension_numbers = #tpu.dot_dimension_numbers<[2], [1], [1], [2], [0, 0, 0, 1, 1, 2], [0], [0]>} : vector<2x8x8xf32>, vector<2x8x8xf32>, vector<2x8x8xf32> -> vector<2x8x8xf32>
    "tpu.trace_stop"() : () -> ()
    %234 = vector.extract_strided_slice %180 {offsets = [0, 0, 24], sizes = [2, 8, 8], strides = [1, 1, 1]} : vector<2x8x32xf32> to vector<2x8x8xf32>
    %235 = vector.extract_strided_slice %181 {offsets = [0, 0, 24], sizes = [2, 8, 8], strides = [1, 1, 1]} : vector<2x8x32xf32> to vector<2x8x8xf32>
    "tpu.trace_start"() <{level = 10 : i32, message = "nqd,nkd->nqk"}> : () -> ()
    %cst_108 = arith.constant dense<0.000000e+00> : vector<2x8x8xf32>
    %236 = tpu.matmul %234, %235, %cst_108 {dimension_numbers = #tpu.dot_dimension_numbers<[2], [2], [1], [1], [0, 0, 0, 1, 1, 1], [0], [0]>} : vector<2x8x8xf32>, vector<2x8x8xf32>, vector<2x8x8xf32> -> vector<2x8x8xf32>
    %cst_109 = arith.constant -1.000000e+20 : f32
    "tpu.trace_stop"() : () -> ()
    %237 = vector.broadcast %cst_109 : f32 to vector<2x8x8xf32>
    %238 = arith.select %5, %237, %236 : vector<2x8x8xi1>, vector<2x8x8xf32>
    %cst_110 = arith.constant dense<0xFF800000> : vector<2x8xf32>
    %239 = vector.multi_reduction <maximumf>, %238, %cst_110 [2] : vector<2x8x8xf32> to vector<2x8xf32>
    %240 = vector.shape_cast %239 : vector<2x8xf32> to vector<2x8x1xf32>
    %241 = vector.broadcast %240 : vector<2x8x1xf32> to vector<2x8x8xf32>
    %242 = arith.subf %238, %241 : vector<2x8x8xf32>
    %243 = math.exp %242 : vector<2x8x8xf32>
    %cst_111 = arith.constant dense<0.000000e+00> : vector<2x8xf32>
    %244 = vector.multi_reduction <add>, %243, %cst_111 [2] : vector<2x8x8xf32> to vector<2x8xf32>
    %245 = vector.shape_cast %244 : vector<2x8xf32> to vector<2x8x1xf32>
    %246 = tpu.reciprocal %245 {approx = true} : vector<2x8x1xf32> -> vector<2x8x1xf32>
    %247 = vector.broadcast %246 : vector<2x8x1xf32> to vector<2x8x8xf32>
    %248 = arith.mulf %243, %247 : vector<2x8x8xf32>
    %249 = vector.extract_strided_slice %182 {offsets = [0, 0, 24], sizes = [2, 8, 8], strides = [1, 1, 1]} : vector<2x8x32xf32> to vector<2x8x8xf32>
    "tpu.trace_start"() <{level = 10 : i32, message = "nqk,nkd->nqd"}> : () -> ()
    %cst_112 = arith.constant dense<0.000000e+00> : vector<2x8x8xf32>
    %250 = tpu.matmul %248, %249, %cst_112 {dimension_numbers = #tpu.dot_dimension_numbers<[2], [1], [1], [2], [0, 0, 0, 1, 1, 2], [0], [0]>} : vector<2x8x8xf32>, vector<2x8x8xf32>, vector<2x8x8xf32> -> vector<2x8x8xf32>
    "tpu.trace_stop"() : () -> ()
    %251 = tpu.concatenate %199, %216, %233, %250 in 2 : vector<2x8x8xf32>, vector<2x8x8xf32>, vector<2x8x8xf32>, vector<2x8x8xf32> -> vector<2x8x32xf32>
    %252 = vector.shape_cast %251 : vector<2x8x32xf32> to vector<16x32xf32>
    %c1_113 = arith.constant 1 : index
    %c0_114 = arith.constant 0 : index
    %c0_115 = arith.constant 0 : index
    %253 = vector.load %arg5[%c1_113, %c0_114, %c0_115] : memref<2x32x32xf32, #tpu.memory_space<vmem>>, vector<1x32x32xf32>
    %254 = vector.shape_cast %253 : vector<1x32x32xf32> to vector<32x32xf32>
    %cst_116 = arith.constant dense<0.000000e+00> : vector<16x32xf32>
    %255 = tpu.matmul %252, %254, %cst_116 {dimension_numbers = #tpu.dot_dimension_numbers<[1], [0], [0], [1], [0, 0, 1, 1], [], []>} : vector<16x32xf32>, vector<32x32xf32>, vector<16x32xf32> -> vector<16x32xf32>
    %c1_117 = arith.constant 1 : index
    %c0_118 = arith.constant 0 : index
    %c0_119 = arith.constant 0 : index
    %256 = vector.load %arg6[%c1_117, %c0_118, %c0_119] : memref<2x1x32xf32, #tpu.memory_space<vmem>>, vector<1x1x32xf32>
    %257 = vector.shape_cast %256 : vector<1x1x32xf32> to vector<1x32xf32>
    %258 = vector.broadcast %257 : vector<1x32xf32> to vector<16x32xf32>
    %259 = arith.addf %255, %258 : vector<16x32xf32>
    %260 = arith.addf %259, %168 : vector<16x32xf32>
    %c1_120 = arith.constant 1 : index
    %c0_121 = arith.constant 0 : index
    %c0_122 = arith.constant 0 : index
    %261 = vector.load %arg7[%c1_120, %c0_121, %c0_122] : memref<2x1x32xf32, #tpu.memory_space<vmem>>, vector<1x1x32xf32>
    %262 = vector.shape_cast %261 : vector<1x1x32xf32> to vector<1x32xf32>
    %c1_123 = arith.constant 1 : index
    %c0_124 = arith.constant 0 : index
    %c0_125 = arith.constant 0 : index
    %263 = vector.load %arg8[%c1_123, %c0_124, %c0_125] : memref<2x1x32xf32, #tpu.memory_space<vmem>>, vector<1x1x32xf32>
    %264 = vector.shape_cast %263 : vector<1x1x32xf32> to vector<1x32xf32>
    %cst_126 = arith.constant dense<0.000000e+00> : vector<16xf32>
    %265 = vector.multi_reduction <add>, %260, %cst_126 [1] : vector<16x32xf32> to vector<16xf32>
    %266 = vector.shape_cast %265 : vector<16xf32> to vector<16x1xf32>
    %cst_127 = arith.constant 3.200000e+01 : f32
    %267 = vector.broadcast %cst_127 : f32 to vector<16x1xf32>
    %268 = arith.divf %266, %267 : vector<16x1xf32>
    %269 = vector.broadcast %268 : vector<16x1xf32> to vector<16x32xf32>
    %270 = arith.subf %260, %269 : vector<16x32xf32>
    %271 = arith.mulf %270, %270 : vector<16x32xf32>
    %cst_128 = arith.constant dense<0.000000e+00> : vector<16xf32>
    %272 = vector.multi_reduction <add>, %271, %cst_128 [1] : vector<16x32xf32> to vector<16xf32>
    %273 = vector.shape_cast %272 : vector<16xf32> to vector<16x1xf32>
    %cst_129 = arith.constant 3.200000e+01 : f32
    %274 = vector.broadcast %cst_129 : f32 to vector<16x1xf32>
    %275 = arith.divf %273, %274 : vector<16x1xf32>
    %276 = vector.broadcast %268 : vector<16x1xf32> to vector<16x32xf32>
    %277 = arith.subf %260, %276 : vector<16x32xf32>
    %cst_130 = arith.constant 9.99999974E-6 : f32
    %278 = vector.broadcast %cst_130 : f32 to vector<16x1xf32>
    %279 = arith.addf %275, %278 : vector<16x1xf32>
    %280 = math.rsqrt %279 : vector<16x1xf32>
    %281 = vector.broadcast %280 : vector<16x1xf32> to vector<16x32xf32>
    %282 = arith.mulf %277, %281 : vector<16x32xf32>
    %283 = vector.broadcast %262 : vector<1x32xf32> to vector<16x32xf32>
    %284 = arith.mulf %282, %283 : vector<16x32xf32>
    %285 = vector.broadcast %264 : vector<1x32xf32> to vector<16x32xf32>
    %286 = arith.addf %284, %285 : vector<16x32xf32>
    %c1_131 = arith.constant 1 : index
    %c0_132 = arith.constant 0 : index
    %c0_133 = arith.constant 0 : index
    %287 = vector.load %arg9[%c1_131, %c0_132, %c0_133] : memref<2x32x128xf32, #tpu.memory_space<vmem>>, vector<1x32x128xf32>
    %288 = vector.shape_cast %287 : vector<1x32x128xf32> to vector<32x128xf32>
    %cst_134 = arith.constant dense<0.000000e+00> : vector<16x128xf32>
    %289 = tpu.matmul %286, %288, %cst_134 {dimension_numbers = #tpu.dot_dimension_numbers<[1], [0], [0], [1], [0, 0, 1, 1], [], []>} : vector<16x32xf32>, vector<32x128xf32>, vector<16x128xf32> -> vector<16x128xf32>
    %c1_135 = arith.constant 1 : index
    %c0_136 = arith.constant 0 : index
    %c0_137 = arith.constant 0 : index
    %290 = vector.load %arg10[%c1_135, %c0_136, %c0_137] : memref<2x1x128xf32, #tpu.memory_space<vmem>>, vector<1x1x128xf32>
    %291 = vector.shape_cast %290 : vector<1x1x128xf32> to vector<1x128xf32>
    %292 = vector.broadcast %291 : vector<1x128xf32> to vector<16x128xf32>
    %293 = arith.addf %289, %292 : vector<16x128xf32>
    %cst_138 = arith.constant 0.000000e+00 : f32
    %294 = vector.broadcast %cst_138 : f32 to vector<16x128xf32>
    %295 = arith.maximumf %293, %294 : vector<16x128xf32>
    %c1_139 = arith.constant 1 : index
    %c0_140 = arith.constant 0 : index
    %c0_141 = arith.constant 0 : index
    %296 = vector.load %arg11[%c1_139, %c0_140, %c0_141] : memref<2x128x32xf32, #tpu.memory_space<vmem>>, vector<1x128x32xf32>
    %297 = vector.shape_cast %296 : vector<1x128x32xf32> to vector<128x32xf32>
    %cst_142 = arith.constant dense<0.000000e+00> : vector<16x32xf32>
    %298 = tpu.matmul %295, %297, %cst_142 {dimension_numbers = #tpu.dot_dimension_numbers<[1], [0], [0], [1], [0, 0, 1, 1], [], []>} : vector<16x128xf32>, vector<128x32xf32>, vector<16x32xf32> -> vector<16x32xf32>
    %c1_143 = arith.constant 1 : index
    %c0_144 = arith.constant 0 : index
    %c0_145 = arith.constant 0 : index
    %299 = vector.load %arg12[%c1_143, %c0_144, %c0_145] : memref<2x1x32xf32, #tpu.memory_space<vmem>>, vector<1x1x32xf32>
    %300 = vector.shape_cast %299 : vector<1x1x32xf32> to vector<1x32xf32>
    %301 = vector.broadcast %300 : vector<1x32xf32> to vector<16x32xf32>
    %302 = arith.addf %298, %301 : vector<16x32xf32>
    %303 = arith.addf %302, %286 : vector<16x32xf32>
    %c1_146 = arith.constant 1 : index
    %c0_147 = arith.constant 0 : index
    %c0_148 = arith.constant 0 : index
    %304 = vector.load %arg13[%c1_146, %c0_147, %c0_148] : memref<2x1x32xf32, #tpu.memory_space<vmem>>, vector<1x1x32xf32>
    %305 = vector.shape_cast %304 : vector<1x1x32xf32> to vector<1x32xf32>
    %c1_149 = arith.constant 1 : index
    %c0_150 = arith.constant 0 : index
    %c0_151 = arith.constant 0 : index
    %306 = vector.load %arg14[%c1_149, %c0_150, %c0_151] : memref<2x1x32xf32, #tpu.memory_space<vmem>>, vector<1x1x32xf32>
    %307 = vector.shape_cast %306 : vector<1x1x32xf32> to vector<1x32xf32>
    %cst_152 = arith.constant dense<0.000000e+00> : vector<16xf32>
    %308 = vector.multi_reduction <add>, %303, %cst_152 [1] : vector<16x32xf32> to vector<16xf32>
    %309 = vector.shape_cast %308 : vector<16xf32> to vector<16x1xf32>
    %cst_153 = arith.constant 3.200000e+01 : f32
    %310 = vector.broadcast %cst_153 : f32 to vector<16x1xf32>
    %311 = arith.divf %309, %310 : vector<16x1xf32>
    %312 = vector.broadcast %311 : vector<16x1xf32> to vector<16x32xf32>
    %313 = arith.subf %303, %312 : vector<16x32xf32>
    %314 = arith.mulf %313, %313 : vector<16x32xf32>
    %cst_154 = arith.constant dense<0.000000e+00> : vector<16xf32>
    %315 = vector.multi_reduction <add>, %314, %cst_154 [1] : vector<16x32xf32> to vector<16xf32>
    %316 = vector.shape_cast %315 : vector<16xf32> to vector<16x1xf32>
    %cst_155 = arith.constant 3.200000e+01 : f32
    %317 = vector.broadcast %cst_155 : f32 to vector<16x1xf32>
    %318 = arith.divf %316, %317 : vector<16x1xf32>
    %319 = vector.broadcast %311 : vector<16x1xf32> to vector<16x32xf32>
    %320 = arith.subf %303, %319 : vector<16x32xf32>
    %cst_156 = arith.constant 9.99999974E-6 : f32
    %321 = vector.broadcast %cst_156 : f32 to vector<16x1xf32>
    %322 = arith.addf %318, %321 : vector<16x1xf32>
    %323 = math.rsqrt %322 : vector<16x1xf32>
    %324 = vector.broadcast %323 : vector<16x1xf32> to vector<16x32xf32>
    %325 = arith.mulf %320, %324 : vector<16x32xf32>
    %326 = vector.broadcast %305 : vector<1x32xf32> to vector<16x32xf32>
    %327 = arith.mulf %325, %326 : vector<16x32xf32>
    %328 = vector.broadcast %307 : vector<1x32xf32> to vector<16x32xf32>
    %329 = arith.addf %327, %328 : vector<16x32xf32>
    %c0_157 = arith.constant 0 : index
    %c0_158 = arith.constant 0 : index
    %330 = vector.load %arg15[%c0_157, %c0_158] : memref<16x32xf32, #tpu.memory_space<vmem>>, vector<16x32xf32>
    tpu.vector_store %arg15[%c0_157, %c0_158], %329 {strides = array<i32>} : memref<16x32xf32, #tpu.memory_space<vmem>>, vector<16x32xf32>,
    return
  }
}

</mosaic_0001>

<llo_original>
// kernel: encoder_forward.1
$region0: #{encoder_forward.1}
  #allocation0 [shape = 'u32[]', space=smem, size = 0x4, offset = 0x4, fixed_abs, tag = 'smem constant byte address 0x4 - core index']
  #allocation1 [shape = 'u32[144,128]{1,0:T(1,128)}', space=vmem, size = 0x12000, scoped, tag = 'internal scratch']
  %s0 = inlined_call_operand.vmem [shape: f32[16,32], index: 0, kind: input, shape index: {}]
  %s1 = inlined_call_operand.vmem [shape: f32[2,1,8], index: 1, kind: input, shape index: {}]
  %s2 = inlined_call_operand.vmem [shape: f32[2,32,32], index: 2, kind: input, shape index: {}]
  %s3 = inlined_call_operand.vmem [shape: f32[2,32,32], index: 3, kind: input, shape index: {}]
  %s4 = inlined_call_operand.vmem [shape: f32[2,32,32], index: 4, kind: input, shape index: {}]
  %s5 = inlined_call_operand.vmem [shape: f32[2,32,32], index: 5, kind: input, shape index: {}]
  %s6 = inlined_call_operand.vmem [shape: f32[2,1,32], index: 6, kind: input, shape index: {}]
  %s7 = inlined_call_operand.vmem [shape: f32[2,1,32], index: 7, kind: input, shape index: {}]
  %s8 = inlined_call_operand.vmem [shape: f32[2,1,32], index: 8, kind: input, shape index: {}]
  %s9 = inlined_call_operand.vmem [shape: f32[2,32,128], index: 9, kind: input, shape index: {}]
  %s10 = inlined_call_operand.vmem [shape: f32[2,1,128], index: 10, kind: input, shape index: {}]
  %s11 = inlined_call_operand.vmem [shape: f32[2,128,32], index: 11, kind: input, shape index: {}]
  %s12 = inlined_call_operand.vmem [shape: f32[2,1,32], index: 12, kind: input, shape index: {}]
  %s13 = inlined_call_operand.vmem [shape: f32[2,1,32], index: 13, kind: input, shape index: {}]
  %s14 = inlined_call_operand.vmem [shape: f32[2,1,32], index: 14, kind: input, shape index: {}]
  %s15 = inlined_call_operand.hbm [shape: f32[16,32], index: 15, kind: output, shape index: {}]
  %s16 = sld [smem:[#allocation0]]
  $region70: #{encoder_forward.1} parent=0
    _
  %s18 = ssub.s32 1, %s16
  %s19 = scalar_select 0, %s18, %s16
  $region1: #{encoder_forward.1} parent=0
    #allocation2 [shape = 'u8[8192]{0}', space=vmem, size = 0x2000, scoped, tag = 'output window, operand 0, single buffered']
    #allocation3 [shape = 's32[1]{0}', space=sflag, size = 0x4, scoped, tag = 'scoped memory for encoder_forward.1']
    %20 = vsyncpa [#allocation3], 0
    // Predicated region
    $region2: #{encoder_forward.1} parent=1 // pred_check
      _
    $region3: #{encoder_forward.1} parent=1 // pred_check_branch
      %22 = sbr.rel (0) target = $region5
    $region4: #{encoder_forward.1} parent=1 // pred_region
      _
    $region5: #{encoder_forward.1} parent=1 // pred_fallthru
      _
    // Predicated region
    $region6: #{encoder_forward.1} parent=1 // pred_check
      _
    $region7: #{encoder_forward.1} parent=1 // pred_check_branch
      %24 = sbr.rel (0) target = $region9
    $region8: #{encoder_forward.1} parent=1 // pred_region
      _
    $region9: #{encoder_forward.1} parent=1 // pred_fallthru
      _
    // Predicated region
    $region10: #{encoder_forward.1} parent=1 // pred_check
      _
    $region11: #{encoder_forward.1} parent=1 // pred_check_branch
      %26 = sbr.rel (0) target = $region13
    $region12: #{encoder_forward.1} parent=1 // pred_region
      _
    $region13: #{encoder_forward.1} parent=1 // pred_fallthru
      _
    // Predicated region
    $region14: #{encoder_forward.1} parent=1 // pred_check
      _
    $region15: #{encoder_forward.1} parent=1 // pred_check_branch
      %28 = sbr.rel (0) target = $region17
    $region16: #{encoder_forward.1} parent=1 // pred_region
      _
    $region17: #{encoder_forward.1} parent=1 // pred_fallthru
      _
    // Predicated region
    $region18: #{encoder_forward.1} parent=1 // pred_check
      _
    $region19: #{encoder_forward.1} parent=1 // pred_check_branch
      %30 = sbr.rel (0) target = $region21
    $region20: #{encoder_forward.1} parent=1 // pred_region
      _
    $region21: #{encoder_forward.1} parent=1 // pred_fallthru
      _
    // Predicated region
    $region22: #{encoder_forward.1} parent=1 // pred_check
      _
    $region23: #{encoder_forward.1} parent=1 // pred_check_branch
      %32 = sbr.rel (0) target = $region25
    $region24: #{encoder_forward.1} parent=1 // pred_region
      _
    $region25: #{encoder_forward.1} parent=1 // pred_fallthru
      _
    // Predicated region
    $region26: #{encoder_forward.1} parent=1 // pred_check
      _
    $region27: #{encoder_forward.1} parent=1 // pred_check_branch
      %34 = sbr.rel (0) target = $region29
    $region28: #{encoder_forward.1} parent=1 // pred_region
      _
    $region29: #{encoder_forward.1} parent=1 // pred_fallthru
      _
    // Predicated region
    $region30: #{encoder_forward.1} parent=1 // pred_check
      _
    $region31: #{encoder_forward.1} parent=1 // pred_check_branch
      %36 = sbr.rel (0) target = $region33
    $region32: #{encoder_forward.1} parent=1 // pred_region
      _
    $region33: #{encoder_forward.1} parent=1 // pred_fallthru
      _
    // Predicated region
    $region34: #{encoder_forward.1} parent=1 // pred_check
      _
    $region35: #{encoder_forward.1} parent=1 // pred_check_branch
      %38 = sbr.rel (0) target = $region37
    $region36: #{encoder_forward.1} parent=1 // pred_region
      _
    $region37: #{encoder_forward.1} parent=1 // pred_fallthru
      _
    // Predicated region
    $region38: #{encoder_forward.1} parent=1 // pred_check
      _
    $region39: #{encoder_forward.1} parent=1 // pred_check_branch
      %40 = sbr.rel (0) target = $region41
    $region40: #{encoder_forward.1} parent=1 // pred_region
      _
    $region41: #{encoder_forward.1} parent=1 // pred_fallthru
      _
    // Predicated region
    $region42: #{encoder_forward.1} parent=1 // pred_check
      _
    $region43: #{encoder_forward.1} parent=1 // pred_check_branch
      %42 = sbr.rel (0) target = $region45
    $region44: #{encoder_forward.1} parent=1 // pred_region
      _
    $region45: #{encoder_forward.1} parent=1 // pred_fallthru
      _
    // Predicated region
    $region46: #{encoder_forward.1} parent=1 // pred_check
      _
    $region47: #{encoder_forward.1} parent=1 // pred_check_branch
      %44 = sbr.rel (0) target = $region49
    $region48: #{encoder_forward.1} parent=1 // pred_region
      _
    $region49: #{encoder_forward.1} parent=1 // pred_fallthru
      _
    // Predicated region
    $region50: #{encoder_forward.1} parent=1 // pred_check
      _
    $region51: #{encoder_forward.1} parent=1 // pred_check_branch
      %46 = sbr.rel (0) target = $region53
    $region52: #{encoder_forward.1} parent=1 // pred_region
      _
    $region53: #{encoder_forward.1} parent=1 // pred_fallthru
      _
    // Predicated region
    $region54: #{encoder_forward.1} parent=1 // pred_check
      _
    $region55: #{encoder_forward.1} parent=1 // pred_check_branch
      %48 = sbr.rel (0) target = $region57
    $region56: #{encoder_forward.1} parent=1 // pred_region
      _
    $region57: #{encoder_forward.1} parent=1 // pred_fallthru
      _
    // Predicated region
    $region58: #{encoder_forward.1} parent=1 // pred_check
      _
    $region59: #{encoder_forward.1} parent=1 // pred_check_branch
      %50 = sbr.rel (0) target = $region61
    $region60: #{encoder_forward.1} parent=1 // pred_region
      _
    $region61: #{encoder_forward.1} parent=1 // pred_fallthru
      _
    %v51 = vld [vmem:[%s0] sm:$0xff]
    %v52 = vld [vmem:[%s0 + $0x8] sm:$0xff]
    %v53 = vld [vmem:[%s1] sm:$0x1]
    %v54 = vld [vmem:[%s1 + $0x1] sm:$0x1]
    %vm55 = vcmp.eq.f32.partialorder %v53, 0.0
    %vm56 = vcmp.eq.f32.partialorder %v54, 0.0
    %v57 = vsel %vm55, 1, 0
    %v58 = vsel %vm56, 1, 0
    %v59 = vlaneseq
    %v60 = vshrl.u32 %v59, 7
    %v61 = vsub.s32 0, %v60
    %v62 = vrot.slane %v57, %v61
    %v63 = vlaneseq
    %v64 = vshrl.u32 %v63, 7
    %v65 = vsub.s32 0, %v64
    %v66 = vrot.slane %v58, %v65
    %vm67 = vcmp.eq.s32.totalorder %v62, 1
    %vm68 = vcmp.eq.s32.totalorder %v66, 1
    %v69 = vld [vmem:[%s2] sm:$0xff]
    %v70 = vld [vmem:[%s2 + $0x8] sm:$0xff]
    %v71 = vld [vmem:[%s2 + $0x10] sm:$0xff]
    %v72 = vld [vmem:[%s2 + $0x18] sm:$0xff]
    %vm73 = vcmask 261120
    %v75 = vsel %vm73, %v51, 0
    %v78 = vsel %vm73, %v52, 0
    %80 = vmatprep.subr.mxu0 0.0
    %81 = vmatpush1.msra.mxu0 0.0
    %82 = vmatprep.subr.mxu0 0.0
    %83 = vmatpush1.msra.mxu0 0.0
    %84 = vmatprep.subr.mxu0 0.0
    %85 = vmatpush1.msra.mxu0 0.0
    %86 = vmatprep.subr.mxu0 0.0
    %87 = vmatpush1.msra.mxu0 0.0
    %88 = vmatprep.subr.mxu0 0.0
    %89 = vmatpush1.msra.mxu0 0.0
    %90 = vmatprep.subr.mxu0 0.0
    %91 = vmatpush1.msra.mxu0 0.0
    %92 = vmatprep.subr.mxu0 0.0
    %93 = vmatpush1.msra.mxu0 0.0
    %94 = vmatprep.subr.mxu0 0.0
    %95 = vmatpush1.msra.mxu0 0.0
    %96 = vmatprep.subr.mxu0 0.0
    %97 = vmatpush1.msra.mxu0 0.0
    %98 = vmatprep.subr.mxu0 0.0
    %99 = vmatpush1.msra.mxu0 0.0
    %100 = vmatprep.subr.mxu0 0.0
    %101 = vmatpush1.msra.mxu0 0.0
    %102 = vmatprep.subr.mxu0 0.0
    %103 = vmatpush1.msra.mxu0 0.0
    %104 = vmatprep.subr.mxu0 0.0
    %105 = vmatpush1.msra.mxu0 %v72
    %106 = vmatprep.subr.mxu0 0.0
    %107 = vmatpush1.msra.mxu0 %v71
    %108 = vmatprep.subr.mxu0 0.0
    %109 = vmatpush1.msra.mxu0 %v70
    %110 = vmatprep.subr.mxu0 0.0
    %111 = vmatpush1.msra.mxu0 %v69
    %112 = vmatprep.subr.mxu0 0.0
    %113 = vmatpush2.msra.mxu0 0.0
    %114 = vmatprep.subr.mxu0 0.0
    %115 = vmatpush2.msra.mxu0 0.0
    %116 = vmatprep.subr.mxu0 0.0
    %117 = vmatpush2.msra.mxu0 0.0
    %118 = vmatprep.subr.mxu0 0.0
    %119 = vmatpush2.msra.mxu0 0.0
    %120 = vmatprep.subr.mxu0 0.0
    %121 = vmatpush2.msra.mxu0 0.0
    %122 = vmatprep.subr.mxu0 0.0
    %123 = vmatpush2.msra.mxu0 0.0
    %124 = vmatprep.subr.mxu0 0.0
    %125 = vmatpush2.msra.mxu0 0.0
    %126 = vmatprep.subr.mxu0 0.0
    %127 = vmatpush2.msra.mxu0 0.0
    %128 = vmatprep.subr.mxu0 0.0
    %129 = vmatpush2.msra.mxu0 0.0
    %130 = vmatprep.subr.mxu0 0.0
    %131 = vmatpush2.msra.mxu0 0.0
    %132 = vmatprep.subr.mxu0 0.0
    %133 = vmatpush2.msra.mxu0 0.0
    %134 = vmatprep.subr.mxu0 0.0
    %135 = vmatpush2.msra.mxu0 0.0
    %136 = vmatprep.subr.mxu0 0.0
    %137 = vmatpush2.msra.mxu0 0.0
    %138 = vmatprep.subr.mxu0 0.0
    %139 = vmatpush2.msra.mxu0 0.0
    %140 = vmatprep.subr.mxu0 0.0
    %141 = vmatpush2.msra.mxu0 0.0
    %142 = vmatprep.subr.mxu0 0.0
    %143 = vmatpush2.msra.mxu0 0.0
    %144 = vmatprep.mubr.f32.mxu0 0.0
    %145 = vmatmul.mubr.f32.gmra.mxu0 %v75
    %v146 = vpop.f32.mrf.mxu0
    %v147 = vadd.f32 0.0, %v146
    %v148 = vpop.f32.mrf.mxu0
    %149 = vmatprep.mubr.f32.mxu0 0.0
    %150 = vmatmul.mubr.f32.gmra.mxu0 %v78
    %v151 = vpop.f32.mrf.mxu0
    %v152 = vadd.f32 0.0, %v151
    %v153 = vpop.f32.mrf.mxu0
    %154 = vdwg.mxu0
    %v155 = vmul.f32 %v147, 0.17677669
    %v156 = vmul.f32 %v152, 0.17677669
    %v157 = vld [vmem:[%s3] sm:$0xff]
    %v158 = vld [vmem:[%s3 + $0x8] sm:$0xff]
    %v159 = vld [vmem:[%s3 + $0x10] sm:$0xff]
    %v160 = vld [vmem:[%s3 + $0x18] sm:$0xff]
    %161 = vmatprep.subr.mxu0 0.0
    %162 = vmatpush1.msra.mxu0 0.0
    %163 = vmatprep.subr.mxu0 0.0
    %164 = vmatpush1.msra.mxu0 0.0
    %165 = vmatprep.subr.mxu0 0.0
    %166 = vmatpush1.msra.mxu0 0.0
    %167 = vmatprep.subr.mxu0 0.0
    %168 = vmatpush1.msra.mxu0 0.0
    %169 = vmatprep.subr.mxu0 0.0
    %170 = vmatpush1.msra.mxu0 0.0
    %171 = vmatprep.subr.mxu0 0.0
    %172 = vmatpush1.msra.mxu0 0.0
    %173 = vmatprep.subr.mxu0 0.0
    %174 = vmatpush1.msra.mxu0 0.0
    %175 = vmatprep.subr.mxu0 0.0
    %176 = vmatpush1.msra.mxu0 0.0
    %177 = vmatprep.subr.mxu0 0.0
    %178 = vmatpush1.msra.mxu0 0.0
    %179 = vmatprep.subr.mxu0 0.0
    %180 = vmatpush1.msra.mxu0 0.0
    %181 = vmatprep.subr.mxu0 0.0
    %182 = vmatpush1.msra.mxu0 0.0
    %183 = vmatprep.subr.mxu0 0.0
    %184 = vmatpush1.msra.mxu0 0.0
    %185 = vmatprep.subr.mxu0 0.0
    %186 = vmatpush1.msra.mxu0 %v160
    %187 = vmatprep.subr.mxu0 0.0
    %188 = vmatpush1.msra.mxu0 %v159
    %189 = vmatprep.subr.mxu0 0.0
    %190 = vmatpush1.msra.mxu0 %v158
    %191 = vmatprep.subr.mxu0 0.0
    %192 = vmatpush1.msra.mxu0 %v157
    %193 = vmatprep.subr.mxu0 0.0
    %194 = vmatpush2.msra.mxu0 0.0
    %195 = vmatprep.subr.mxu0 0.0
    %196 = vmatpush2.msra.mxu0 0.0
    %197 = vmatprep.subr.mxu0 0.0
    %198 = vmatpush2.msra.mxu0 0.0
    %199 = vmatprep.subr.mxu0 0.0
    %200 = vmatpush2.msra.mxu0 0.0
    %201 = vmatprep.subr.mxu0 0.0
    %202 = vmatpush2.msra.mxu0 0.0
    %203 = vmatprep.subr.mxu0 0.0
    %204 = vmatpush2.msra.mxu0 0.0
    %205 = vmatprep.subr.mxu0 0.0
    %206 = vmatpush2.msra.mxu0 0.0
    %207 = vmatprep.subr.mxu0 0.0
    %208 = vmatpush2.msra.mxu0 0.0
    %209 = vmatprep.subr.mxu0 0.0
    %210 = vmatpush2.msra.mxu0 0.0
    %211 = vmatprep.subr.mxu0 0.0
    %212 = vmatpush2.msra.mxu0 0.0
    %213 = vmatprep.subr.mxu0 0.0
    %214 = vmatpush2.msra.mxu0 0.0
    %215 = vmatprep.subr.mxu0 0.0
    %216 = vmatpush2.msra.mxu0 0.0
    %217 = vmatprep.subr.mxu0 0.0
    %218 = vmatpush2.msra.mxu0 0.0
    %219 = vmatprep.subr.mxu0 0.0
    %220 = vmatpush2.msra.mxu0 0.0
    %221 = vmatprep.subr.mxu0 0.0
    %222 = vmatpush2.msra.mxu0 0.0
    %223 = vmatprep.subr.mxu0 0.0
    %224 = vmatpush2.msra.mxu0 0.0
    %225 = vmatprep.mubr.f32.mxu0 0.0
    %226 = vmatmul.mubr.f32.gmra.mxu0 %v75
    %v227 = vpop.f32.mrf.mxu0
    %v228 = vadd.f32 0.0, %v227
    %v229 = vpop.f32.mrf.mxu0
    %230 = vmatprep.mubr.f32.mxu0 0.0
    %231 = vmatmul.mubr.f32.gmra.mxu0 %v78
    %v232 = vpop.f32.mrf.mxu0
    %v233 = vadd.f32 0.0, %v232
    %v234 = vpop.f32.mrf.mxu0
    %235 = vdwg.mxu0
    %v236 = vld [vmem:[%s4] sm:$0xff]
    %v237 = vld [vmem:[%s4 + $0x8] sm:$0xff]
    %v238 = vld [vmem:[%s4 + $0x10] sm:$0xff]
    %v239 = vld [vmem:[%s4 + $0x18] sm:$0xff]
    %240 = vmatprep.subr.mxu0 0.0
    %241 = vmatpush1.msra.mxu0 0.0
    %242 = vmatprep.subr.mxu0 0.0
    %243 = vmatpush1.msra.mxu0 0.0
    %244 = vmatprep.subr.mxu0 0.0
    %245 = vmatpush1.msra.mxu0 0.0
    %246 = vmatprep.subr.mxu0 0.0
    %247 = vmatpush1.msra.mxu0 0.0
    %248 = vmatprep.subr.mxu0 0.0
    %249 = vmatpush1.msra.mxu0 0.0
    %250 = vmatprep.subr.mxu0 0.0
    %251 = vmatpush1.msra.mxu0 0.0
    %252 = vmatprep.subr.mxu0 0.0
    %253 = vmatpush1.msra.mxu0 0.0
    %254 = vmatprep.subr.mxu0 0.0
    %255 = vmatpush1.msra.mxu0 0.0
    %256 = vmatprep.subr.mxu0 0.0
    %257 = vmatpush1.msra.mxu0 0.0
    %258 = vmatprep.subr.mxu0 0.0
    %259 = vmatpush1.msra.mxu0 0.0
    %260 = vmatprep.subr.mxu0 0.0
    %261 = vmatpush1.msra.mxu0 0.0
    %262 = vmatprep.subr.mxu0 0.0
    %263 = vmatpush1.msra.mxu0 0.0
    %264 = vmatprep.subr.mxu0 0.0
    %265 = vmatpush1.msra.mxu0 %v239
    %266 = vmatprep.subr.mxu0 0.0
    %267 = vmatpush1.msra.mxu0 %v238
    %268 = vmatprep.subr.mxu0 0.0
    %269 = vmatpush1.msra.mxu0 %v237
    %270 = vmatprep.subr.mxu0 0.0
    %271 = vmatpush1.msra.mxu0 %v236
    %272 = vmatprep.subr.mxu0 0.0
    %273 = vmatpush2.msra.mxu0 0.0
    %274 = vmatprep.subr.mxu0 0.0
    %275 = vmatpush2.msra.mxu0 0.0
    %276 = vmatprep.subr.mxu0 0.0
    %277 = vmatpush2.msra.mxu0 0.0
    %278 = vmatprep.subr.mxu0 0.0
    %279 = vmatpush2.msra.mxu0 0.0
    %280 = vmatprep.subr.mxu0 0.0
    %281 = vmatpush2.msra.mxu0 0.0
    %282 = vmatprep.subr.mxu0 0.0
    %283 = vmatpush2.msra.mxu0 0.0
    %284 = vmatprep.subr.mxu0 0.0
    %285 = vmatpush2.msra.mxu0 0.0
    %286 = vmatprep.subr.mxu0 0.0
    %287 = vmatpush2.msra.mxu0 0.0
    %288 = vmatprep.subr.mxu0 0.0
    %289 = vmatpush2.msra.mxu0 0.0
    %290 = vmatprep.subr.mxu0 0.0
    %291 = vmatpush2.msra.mxu0 0.0
    %292 = vmatprep.subr.mxu0 0.0
    %293 = vmatpush2.msra.mxu0 0.0
    %294 = vmatprep.subr.mxu0 0.0
    %295 = vmatpush2.msra.mxu0 0.0
    %296 = vmatprep.subr.mxu0 0.0
    %297 = vmatpush2.msra.mxu0 0.0
    %298 = vmatprep.subr.mxu0 0.0
    %299 = vmatpush2.msra.mxu0 0.0
    %300 = vmatprep.subr.mxu0 0.0
    %301 = vmatpush2.msra.mxu0 0.0
    %302 = vmatprep.subr.mxu0 0.0
    %303 = vmatpush2.msra.mxu0 0.0
    %304 = vmatprep.mubr.f32.mxu0 0.0
    %305 = vmatmul.mubr.f32.gmra.mxu0 %v75
    %v306 = vpop.f32.mrf.mxu0
    %v307 = vadd.f32 0.0, %v306
    %v308 = vpop.f32.mrf.mxu0
    %309 = vmatprep.mubr.f32.mxu0 0.0
    %310 = vmatmul.mubr.f32.gmra.mxu0 %v78
    %v311 = vpop.f32.mrf.mxu0
    %v312 = vadd.f32 0.0, %v311
    %v313 = vpop.f32.mrf.mxu0
    %314 = vdwg.mxu0
    %vm315 = vcmask 64512
    %v317 = vsel %vm315, %v155, 0
    %v320 = vsel %vm315, %v228, 0
    %322 = vmatprep.subr.mxu0 0.0
    %323 = vmatpush1.xpose.msra.mxu0 0.0
    %324 = vmatprep.subr.mxu0 0.0
    %325 = vmatpush1.xpose.msra.mxu0 0.0
    %326 = vmatprep.subr.mxu0 0.0
    %327 = vmatpush1.xpose.msra.mxu0 0.0
    %328 = vmatprep.subr.mxu0 0.0
    %329 = vmatpush1.xpose.msra.mxu0 0.0
    %330 = vmatprep.subr.mxu0 0.0
    %331 = vmatpush1.xpose.msra.mxu0 0.0
    %332 = vmatprep.subr.mxu0 0.0
    %333 = vmatpush1.xpose.msra.mxu0 0.0
    %334 = vmatprep.subr.mxu0 0.0
    %335 = vmatpush1.xpose.msra.mxu0 0.0
    %336 = vmatprep.subr.mxu0 0.0
    %337 = vmatpush1.xpose.msra.mxu0 0.0
    %338 = vmatprep.subr.mxu0 0.0
    %339 = vmatpush1.xpose.msra.mxu0 0.0
    %340 = vmatprep.subr.mxu0 0.0
    %341 = vmatpush1.xpose.msra.mxu0 0.0
    %342 = vmatprep.subr.mxu0 0.0
    %343 = vmatpush1.xpose.msra.mxu0 0.0
    %344 = vmatprep.subr.mxu0 0.0
    %345 = vmatpush1.xpose.msra.mxu0 0.0
    %346 = vmatprep.subr.mxu0 0.0
    %347 = vmatpush1.xpose.msra.mxu0 0.0
    %348 = vmatprep.subr.mxu0 0.0
    %349 = vmatpush1.xpose.msra.mxu0 0.0
    %350 = vmatprep.subr.mxu0 0.0
    %351 = vmatpush1.xpose.msra.mxu0 0.0
    %352 = vmatprep.subr.mxu0 0.0
    %353 = vmatpush1.xpose.msra.mxu0 %v320
    %354 = vmatprep.subr.mxu0 0.0
    %355 = vmatpush2.xpose.msra.mxu0 0.0
    %356 = vmatprep.subr.mxu0 0.0
    %357 = vmatpush2.xpose.msra.mxu0 0.0
    %358 = vmatprep.subr.mxu0 0.0
    %359 = vmatpush2.xpose.msra.mxu0 0.0
    %360 = vmatprep.subr.mxu0 0.0
    %361 = vmatpush2.xpose.msra.mxu0 0.0
    %362 = vmatprep.subr.mxu0 0.0
    %363 = vmatpush2.xpose.msra.mxu0 0.0
    %364 = vmatprep.subr.mxu0 0.0
    %365 = vmatpush2.xpose.msra.mxu0 0.0
    %366 = vmatprep.subr.mxu0 0.0
    %367 = vmatpush2.xpose.msra.mxu0 0.0
    %368 = vmatprep.subr.mxu0 0.0
    %369 = vmatpush2.xpose.msra.mxu0 0.0
    %370 = vmatprep.subr.mxu0 0.0
    %371 = vmatpush2.xpose.msra.mxu0 0.0
    %372 = vmatprep.subr.mxu0 0.0
    %373 = vmatpush2.xpose.msra.mxu0 0.0
    %374 = vmatprep.subr.mxu0 0.0
    %375 = vmatpush2.xpose.msra.mxu0 0.0
    %376 = vmatprep.subr.mxu0 0.0
    %377 = vmatpush2.xpose.msra.mxu0 0.0
    %378 = vmatprep.subr.mxu0 0.0
    %379 = vmatpush2.xpose.msra.mxu0 0.0
    %380 = vmatprep.subr.mxu0 0.0
    %381 = vmatpush2.xpose.msra.mxu0 0.0
    %382 = vmatprep.subr.mxu0 0.0
    %383 = vmatpush2.xpose.msra.mxu0 0.0
    %384 = vmatprep.subr.mxu0 0.0
    %385 = vmatpush2.xpose.msra.mxu0 0.0
    %386 = vmatprep.mubr.f32.mxu0 0.0
    %387 = vmatmul.mubr.f32.gmra.mxu0 %v317
    %v388 = vpop.f32.mrf.mxu0
    %v389 = vadd.f32 0.0, %v388
    %v390 = vpop.f32.mrf.mxu0
    %391 = vdwg.mxu0
    %v393 = vsel %vm315, %v156, 0
    %v396 = vsel %vm315, %v233, 0
    %398 = vmatprep.subr.mxu0 0.0
    %399 = vmatpush1.xpose.msra.mxu0 0.0
    %400 = vmatprep.subr.mxu0 0.0
    %401 = vmatpush1.xpose.msra.mxu0 0.0
    %402 = vmatprep.subr.mxu0 0.0
    %403 = vmatpush1.xpose.msra.mxu0 0.0
    %404 = vmatprep.subr.mxu0 0.0
    %405 = vmatpush1.xpose.msra.mxu0 0.0
    %406 = vmatprep.subr.mxu0 0.0
    %407 = vmatpush1.xpose.msra.mxu0 0.0
    %408 = vmatprep.subr.mxu0 0.0
    %409 = vmatpush1.xpose.msra.mxu0 0.0
    %410 = vmatprep.subr.mxu0 0.0
    %411 = vmatpush1.xpose.msra.mxu0 0.0
    %412 = vmatprep.subr.mxu0 0.0
    %413 = vmatpush1.xpose.msra.mxu0 0.0
    %414 = vmatprep.subr.mxu0 0.0
    %415 = vmatpush1.xpose.msra.mxu0 0.0
    %416 = vmatprep.subr.mxu0 0.0
    %417 = vmatpush1.xpose.msra.mxu0 0.0
    %418 = vmatprep.subr.mxu0 0.0
    %419 = vmatpush1.xpose.msra.mxu0 0.0
    %420 = vmatprep.subr.mxu0 0.0
    %421 = vmatpush1.xpose.msra.mxu0 0.0
    %422 = vmatprep.subr.mxu0 0.0
    %423 = vmatpush1.xpose.msra.mxu0 0.0
    %424 = vmatprep.subr.mxu0 0.0
    %425 = vmatpush1.xpose.msra.mxu0 0.0
    %426 = vmatprep.subr.mxu0 0.0
    %427 = vmatpush1.xpose.msra.mxu0 0.0
    %428 = vmatprep.subr.mxu0 0.0
    %429 = vmatpush1.xpose.msra.mxu0 %v396
    %430 = vmatprep.subr.mxu0 0.0
    %431 = vmatpush2.xpose.msra.mxu0 0.0
    %432 = vmatprep.subr.mxu0 0.0
    %433 = vmatpush2.xpose.msra.mxu0 0.0
    %434 = vmatprep.subr.mxu0 0.0
    %435 = vmatpush2.xpose.msra.mxu0 0.0
    %436 = vmatprep.subr.mxu0 0.0
    %437 = vmatpush2.xpose.msra.mxu0 0.0
    %438 = vmatprep.subr.mxu0 0.0
    %439 = vmatpush2.xpose.msra.mxu0 0.0
    %440 = vmatprep.subr.mxu0 0.0
    %441 = vmatpush2.xpose.msra.mxu0 0.0
    %442 = vmatprep.subr.mxu0 0.0
    %443 = vmatpush2.xpose.msra.mxu0 0.0
    %444 = vmatprep.subr.mxu0 0.0
    %445 = vmatpush2.xpose.msra.mxu0 0.0
    %446 = vmatprep.subr.mxu0 0.0
    %447 = vmatpush2.xpose.msra.mxu0 0.0
    %448 = vmatprep.subr.mxu0 0.0
    %449 = vmatpush2.xpose.msra.mxu0 0.0
    %450 = vmatprep.subr.mxu0 0.0
    %451 = vmatpush2.xpose.msra.mxu0 0.0
    %452 = vmatprep.subr.mxu0 0.0
    %453 = vmatpush2.xpose.msra.mxu0 0.0
    %454 = vmatprep.subr.mxu0 0.0
    %455 = vmatpush2.xpose.msra.mxu0 0.0
    %456 = vmatprep.subr.mxu0 0.0
    %457 = vmatpush2.xpose.msra.mxu0 0.0
    %458 = vmatprep.subr.mxu0 0.0
    %459 = vmatpush2.xpose.msra.mxu0 0.0
    %460 = vmatprep.subr.mxu0 0.0
    %461 = vmatpush2.xpose.msra.mxu0 0.0
    %462 = vmatprep.mubr.f32.mxu0 0.0
    %463 = vmatmul.mubr.f32.gmra.mxu0 %v393
    %v464 = vpop.f32.mrf.mxu0
    %v465 = vadd.f32 0.0, %v464
    %v466 = vpop.f32.mrf.mxu0
    %467 = vdwg.mxu0
    %v468 = vsel %vm67, -1e+20, %v389
    %v469 = vsel %vm68, -1e+20, %v465
    %v470 = vsel %vm315, %v468, -inf
    %471 = vmax.xlane.f32.xlu0 %v470
    %v472 = vpop.xlane.xlu0 %471
    %v473 = vsel %vm315, %v469, -inf
    %474 = vmax.xlane.f32.xlu0 %v473
    %v475 = vpop.xlane.xlu0 %474
    %v476 = vsub.f32 %v468, %v472
    %v477 = vsub.f32 %v469, %v475
    %v478 = vmul.f32 %v476, 1.442695
    %v479 = vpow.pop %v478
    %v480 = vmul.f32 %v477, 1.442695
    %v481 = vpow.pop %v480
    %v482 = vsel %vm315, %v479, 0.0
    %483 = vadd.xlane.f32.xlu0 %v482
    %v484 = vpop.xlane.xlu0 %483
    %v485 = vsel %vm315, %v481, 0.0
    %486 = vadd.xlane.f32.xlu0 %v485
    %v487 = vpop.xlane.xlu0 %486
    %v488 = vrcp.pop %v484
    %v489 = vrcp.pop %v487
    %v490 = vmul.f32 %v479, %v488
    %v491 = vmul.f32 %v481, %v489
    %v493 = vsel %vm315, %v490, 0
    %495 = vmatprep.subr.mxu0 0.0
    %496 = vmatpush1.msra.mxu0 0.0
    %497 = vmatprep.subr.mxu0 0.0
    %498 = vmatpush1.msra.mxu0 0.0
    %499 = vmatprep.subr.mxu0 0.0
    %500 = vmatpush1.msra.mxu0 0.0
    %501 = vmatprep.subr.mxu0 0.0
    %502 = vmatpush1.msra.mxu0 0.0
    %503 = vmatprep.subr.mxu0 0.0
    %504 = vmatpush1.msra.mxu0 0.0
    %505 = vmatprep.subr.mxu0 0.0
    %506 = vmatpush1.msra.mxu0 0.0
    %507 = vmatprep.subr.mxu0 0.0
    %508 = vmatpush1.msra.mxu0 0.0
    %509 = vmatprep.subr.mxu0 0.0
    %510 = vmatpush1.msra.mxu0 0.0
    %511 = vmatprep.subr.mxu0 0.0
    %512 = vmatpush1.msra.mxu0 0.0
    %513 = vmatprep.subr.mxu0 0.0
    %514 = vmatpush1.msra.mxu0 0.0
    %515 = vmatprep.subr.mxu0 0.0
    %516 = vmatpush1.msra.mxu0 0.0
    %517 = vmatprep.subr.mxu0 0.0
    %518 = vmatpush1.msra.mxu0 0.0
    %519 = vmatprep.subr.mxu0 0.0
    %520 = vmatpush1.msra.mxu0 0.0
    %521 = vmatprep.subr.mxu0 0.0
    %522 = vmatpush1.msra.mxu0 0.0
    %523 = vmatprep.subr.mxu0 0.0
    %524 = vmatpush1.msra.mxu0 0.0
    %525 = vmatprep.subr.mxu0 0.0
    %526 = vmatpush1.msra.mxu0 %v307
    %527 = vmatprep.subr.mxu0 0.0
    %528 = vmatpush2.msra.mxu0 0.0
    %529 = vmatprep.subr.mxu0 0.0
    %530 = vmatpush2.msra.mxu0 0.0
    %531 = vmatprep.subr.mxu0 0.0
    %532 = vmatpush2.msra.mxu0 0.0
    %533 = vmatprep.subr.mxu0 0.0
    %534 = vmatpush2.msra.mxu0 0.0
    %535 = vmatprep.subr.mxu0 0.0
    %536 = vmatpush2.msra.mxu0 0.0
    %537 = vmatprep.subr.mxu0 0.0
    %538 = vmatpush2.msra.mxu0 0.0
    %539 = vmatprep.subr.mxu0 0.0
    %540 = vmatpush2.msra.mxu0 0.0
    %541 = vmatprep.subr.mxu0 0.0
    %542 = vmatpush2.msra.mxu0 0.0
    %543 = vmatprep.subr.mxu0 0.0
    %544 = vmatpush2.msra.mxu0 0.0
    %545 = vmatprep.subr.mxu0 0.0
    %546 = vmatpush2.msra.mxu0 0.0
    %547 = vmatprep.subr.mxu0 0.0
    %548 = vmatpush2.msra.mxu0 0.0
    %549 = vmatprep.subr.mxu0 0.0
    %550 = vmatpush2.msra.mxu0 0.0
    %551 = vmatprep.subr.mxu0 0.0
    %552 = vmatpush2.msra.mxu0 0.0
    %553 = vmatprep.subr.mxu0 0.0
    %554 = vmatpush2.msra.mxu0 0.0
    %555 = vmatprep.subr.mxu0 0.0
    %556 = vmatpush2.msra.mxu0 0.0
    %557 = vmatprep.subr.mxu0 0.0
    %558 = vmatpush2.msra.mxu0 0.0
    %559 = vmatprep.mubr.f32.mxu0 0.0
    %560 = vmatmul.mubr.f32.gmra.mxu0 %v493
    %v561 = vpop.f32.mrf.mxu0
    %v562 = vadd.f32 0.0, %v561
    %v563 = vpop.f32.mrf.mxu0
    %564 = vdwg.mxu0
    %v566 = vsel %vm315, %v491, 0
    %568 = vmatprep.subr.mxu0 0.0
    %569 = vmatpush1.msra.mxu0 0.0
    %570 = vmatprep.subr.mxu0 0.0
    %571 = vmatpush1.msra.mxu0 0.0
    %572 = vmatprep.subr.mxu0 0.0
    %573 = vmatpush1.msra.mxu0 0.0
    %574 = vmatprep.subr.mxu0 0.0
    %575 = vmatpush1.msra.mxu0 0.0
    %576 = vmatprep.subr.mxu0 0.0
    %577 = vmatpush1.msra.mxu0 0.0
    %578 = vmatprep.subr.mxu0 0.0
    %579 = vmatpush1.msra.mxu0 0.0
    %580 = vmatprep.subr.mxu0 0.0
    %581 = vmatpush1.msra.mxu0 0.0
    %582 = vmatprep.subr.mxu0 0.0
    %583 = vmatpush1.msra.mxu0 0.0
    %584 = vmatprep.subr.mxu0 0.0
    %585 = vmatpush1.msra.mxu0 0.0
    %586 = vmatprep.subr.mxu0 0.0
    %587 = vmatpush1.msra.mxu0 0.0
    %588 = vmatprep.subr.mxu0 0.0
    %589 = vmatpush1.msra.mxu0 0.0
    %590 = vmatprep.subr.mxu0 0.0
    %591 = vmatpush1.msra.mxu0 0.0
    %592 = vmatprep.subr.mxu0 0.0
    %593 = vmatpush1.msra.mxu0 0.0
    %594 = vmatprep.subr.mxu0 0.0
    %595 = vmatpush1.msra.mxu0 0.0
    %596 = vmatprep.subr.mxu0 0.0
    %597 = vmatpush1.msra.mxu0 0.0
    %598 = vmatprep.subr.mxu0 0.0
    %599 = vmatpush1.msra.mxu0 %v312
    %600 = vmatprep.subr.mxu0 0.0
    %601 = vmatpush2.msra.mxu0 0.0
    %602 = vmatprep.subr.mxu0 0.0
    %603 = vmatpush2.msra.mxu0 0.0
    %604 = vmatprep.subr.mxu0 0.0
    %605 = vmatpush2.msra.mxu0 0.0
    %606 = vmatprep.subr.mxu0 0.0
    %607 = vmatpush2.msra.mxu0 0.0
    %608 = vmatprep.subr.mxu0 0.0
    %609 = vmatpush2.msra.mxu0 0.0
    %610 = vmatprep.subr.mxu0 0.0
    %611 = vmatpush2.msra.mxu0 0.0
    %612 = vmatprep.subr.mxu0 0.0
    %613 = vmatpush2.msra.mxu0 0.0
    %614 = vmatprep.subr.mxu0 0.0
    %615 = vmatpush2.msra.mxu0 0.0
    %616 = vmatprep.subr.mxu0 0.0
    %617 = vmatpush2.msra.mxu0 0.0
    %618 = vmatprep.subr.mxu0 0.0
    %619 = vmatpush2.msra.mxu0 0.0
    %620 = vmatprep.subr.mxu0 0.0
    %621 = vmatpush2.msra.mxu0 0.0
    %622 = vmatprep.subr.mxu0 0.0
    %623 = vmatpush2.msra.mxu0 0.0
    %624 = vmatprep.subr.mxu0 0.0
    %625 = vmatpush2.msra.mxu0 0.0
    %626 = vmatprep.subr.mxu0 0.0
    %627 = vmatpush2.msra.mxu0 0.0
    %628 = vmatprep.subr.mxu0 0.0
    %629 = vmatpush2.msra.mxu0 0.0
    %630 = vmatprep.subr.mxu0 0.0
    %631 = vmatpush2.msra.mxu0 0.0
    %632 = vmatprep.mubr.f32.mxu0 0.0
    %633 = vmatmul.mubr.f32.gmra.mxu0 %v566
    %v634 = vpop.f32.mrf.mxu0
    %v635 = vadd.f32 0.0, %v634
    %v636 = vpop.f32.mrf.mxu0
    %637 = vdwg.mxu0
    %638 = vrot.lane.b32.xlu0 %v155, 120
    %v639 = vpop.permute.xlu0 %638
    %640 = vrot.lane.b32.xlu0 %v228, 120
    %v641 = vpop.permute.xlu0 %640
    %v642 = vsel %vm315, %v639, 0
    %v644 = vsel %vm315, %v641, 0
    %646 = vmatprep.subr.mxu0 0.0
    %647 = vmatpush1.xpose.msra.mxu0 0.0
    %648 = vmatprep.subr.mxu0 0.0
    %649 = vmatpush1.xpose.msra.mxu0 0.0
    %650 = vmatprep.subr.mxu0 0.0
    %651 = vmatpush1.xpose.msra.mxu0 0.0
    %652 = vmatprep.subr.mxu0 0.0
    %653 = vmatpush1.xpose.msra.mxu0 0.0
    %654 = vmatprep.subr.mxu0 0.0
    %655 = vmatpush1.xpose.msra.mxu0 0.0
    %656 = vmatprep.subr.mxu0 0.0
    %657 = vmatpush1.xpose.msra.mxu0 0.0
    %658 = vmatprep.subr.mxu0 0.0
    %659 = vmatpush1.xpose.msra.mxu0 0.0
    %660 = vmatprep.subr.mxu0 0.0
    %661 = vmatpush1.xpose.msra.mxu0 0.0
    %662 = vmatprep.subr.mxu0 0.0
    %663 = vmatpush1.xpose.msra.mxu0 0.0
    %664 = vmatprep.subr.mxu0 0.0
    %665 = vmatpush1.xpose.msra.mxu0 0.0
    %666 = vmatprep.subr.mxu0 0.0
    %667 = vmatpush1.xpose.msra.mxu0 0.0
    %668 = vmatprep.subr.mxu0 0.0
    %669 = vmatpush1.xpose.msra.mxu0 0.0
    %670 = vmatprep.subr.mxu0 0.0
    %671 = vmatpush1.xpose.msra.mxu0 0.0
    %672 = vmatprep.subr.mxu0 0.0
    %673 = vmatpush1.xpose.msra.mxu0 0.0
    %674 = vmatprep.subr.mxu0 0.0
    %675 = vmatpush1.xpose.msra.mxu0 0.0
    %676 = vmatprep.subr.mxu0 0.0
    %677 = vmatpush1.xpose.msra.mxu0 %v644
    %678 = vmatprep.subr.mxu0 0.0
    %679 = vmatpush2.xpose.msra.mxu0 0.0
    %680 = vmatprep.subr.mxu0 0.0
    %681 = vmatpush2.xpose.msra.mxu0 0.0
    %682 = vmatprep.subr.mxu0 0.0
    %683 = vmatpush2.xpose.msra.mxu0 0.0
    %684 = vmatprep.subr.mxu0 0.0
    %685 = vmatpush2.xpose.msra.mxu0 0.0
    %686 = vmatprep.subr.mxu0 0.0
    %687 = vmatpush2.xpose.msra.mxu0 0.0
    %688 = vmatprep.subr.mxu0 0.0
    %689 = vmatpush2.xpose.msra.mxu0 0.0
    %690 = vmatprep.subr.mxu0 0.0
    %691 = vmatpush2.xpose.msra.mxu0 0.0
    %692 = vmatprep.subr.mxu0 0.0
    %693 = vmatpush2.xpose.msra.mxu0 0.0
    %694 = vmatprep.subr.mxu0 0.0
    %695 = vmatpush2.xpose.msra.mxu0 0.0
    %696 = vmatprep.subr.mxu0 0.0
    %697 = vmatpush2.xpose.msra.mxu0 0.0
    %698 = vmatprep.subr.mxu0 0.0
    %699 = vmatpush2.xpose.msra.mxu0 0.0
    %700 = vmatprep.subr.mxu0 0.0
    %701 = vmatpush2.xpose.msra.mxu0 0.0
    %702 = vmatprep.subr.mxu0 0.0
    %703 = vmatpush2.xpose.msra.mxu0 0.0
    %704 = vmatprep.subr.mxu0 0.0
    %705 = vmatpush2.xpose.msra.mxu0 0.0
    %706 = vmatprep.subr.mxu0 0.0
    %707 = vmatpush2.xpose.msra.mxu0 0.0
    %708 = vmatprep.subr.mxu0 0.0
    %709 = vmatpush2.xpose.msra.mxu0 0.0
    %710 = vmatprep.mubr.f32.mxu0 0.0
    %711 = vmatmul.mubr.f32.gmra.mxu0 %v642
    %v712 = vpop.f32.mrf.mxu0
    %v713 = vadd.f32 0.0, %v712
    %v714 = vpop.f32.mrf.mxu0
    %715 = vdwg.mxu0
    %716 = vrot.lane.b32.xlu0 %v156, 120
    %v717 = vpop.permute.xlu0 %716
    %718 = vrot.lane.b32.xlu0 %v233, 120
    %v719 = vpop.permute.xlu0 %718
    %v720 = vsel %vm315, %v717, 0
    %v722 = vsel %vm315, %v719, 0
    %724 = vmatprep.subr.mxu0 0.0
    %725 = vmatpush1.xpose.msra.mxu0 0.0
    %726 = vmatprep.subr.mxu0 0.0
    %727 = vmatpush1.xpose.msra.mxu0 0.0
    %728 = vmatprep.subr.mxu0 0.0
    %729 = vmatpush1.xpose.msra.mxu0 0.0
    %730 = vmatprep.subr.mxu0 0.0
    %731 = vmatpush1.xpose.msra.mxu0 0.0
    %732 = vmatprep.subr.mxu0 0.0
    %733 = vmatpush1.xpose.msra.mxu0 0.0
    %734 = vmatprep.subr.mxu0 0.0
    %735 = vmatpush1.xpose.msra.mxu0 0.0
    %736 = vmatprep.subr.mxu0 0.0
    %737 = vmatpush1.xpose.msra.mxu0 0.0
    %738 = vmatprep.subr.mxu0 0.0
    %739 = vmatpush1.xpose.msra.mxu0 0.0
    %740 = vmatprep.subr.mxu0 0.0
    %741 = vmatpush1.xpose.msra.mxu0 0.0
    %742 = vmatprep.subr.mxu0 0.0
    %743 = vmatpush1.xpose.msra.mxu0 0.0
    %744 = vmatprep.subr.mxu0 0.0
    %745 = vmatpush1.xpose.msra.mxu0 0.0
    %746 = vmatprep.subr.mxu0 0.0
    %747 = vmatpush1.xpose.msra.mxu0 0.0
    %748 = vmatprep.subr.mxu0 0.0
    %749 = vmatpush1.xpose.msra.mxu0 0.0
    %750 = vmatprep.subr.mxu0 0.0
    %751 = vmatpush1.xpose.msra.mxu0 0.0
    %752 = vmatprep.subr.mxu0 0.0
    %753 = vmatpush1.xpose.msra.mxu0 0.0
    %754 = vmatprep.subr.mxu0 0.0
    %755 = vmatpush1.xpose.msra.mxu0 %v722
    %756 = vmatprep.subr.mxu0 0.0
    %757 = vmatpush2.xpose.msra.mxu0 0.0
    %758 = vmatprep.subr.mxu0 0.0
    %759 = vmatpush2.xpose.msra.mxu0 0.0
    %760 = vmatprep.subr.mxu0 0.0
    %761 = vmatpush2.xpose.msra.mxu0 0.0
    %762 = vmatprep.subr.mxu0 0.0
    %763 = vmatpush2.xpose.msra.mxu0 0.0
    %764 = vmatprep.subr.mxu0 0.0
    %765 = vmatpush2.xpose.msra.mxu0 0.0
    %766 = vmatprep.subr.mxu0 0.0
    %767 = vmatpush2.xpose.msra.mxu0 0.0
    %768 = vmatprep.subr.mxu0 0.0
    %769 = vmatpush2.xpose.msra.mxu0 0.0
    %770 = vmatprep.subr.mxu0 0.0
    %771 = vmatpush2.xpose.msra.mxu0 0.0
    %772 = vmatprep.subr.mxu0 0.0
    %773 = vmatpush2.xpose.msra.mxu0 0.0
    %774 = vmatprep.subr.mxu0 0.0
    %775 = vmatpush2.xpose.msra.mxu0 0.0
    %776 = vmatprep.subr.mxu0 0.0
    %777 = vmatpush2.xpose.msra.mxu0 0.0
    %778 = vmatprep.subr.mxu0 0.0
    %779 = vmatpush2.xpose.msra.mxu0 0.0
    %780 = vmatprep.subr.mxu0 0.0
    %781 = vmatpush2.xpose.msra.mxu0 0.0
    %782 = vmatprep.subr.mxu0 0.0
    %783 = vmatpush2.xpose.msra.mxu0 0.0
    %784 = vmatprep.subr.mxu0 0.0
    %785 = vmatpush2.xpose.msra.mxu0 0.0
    %786 = vmatprep.subr.mxu0 0.0
    %787 = vmatpush2.xpose.msra.mxu0 0.0
    %788 = vmatprep.mubr.f32.mxu0 0.0
    %789 = vmatmul.mubr.f32.gmra.mxu0 %v720
    %v790 = vpop.f32.mrf.mxu0
    %v791 = vadd.f32 0.0, %v790
    %v792 = vpop.f32.mrf.mxu0
    %793 = vdwg.mxu0
    %v794 = vsel %vm67, -1e+20, %v713
    %v795 = vsel %vm68, -1e+20, %v791
    %v796 = vsel %vm315, %v794, -inf
    %797 = vmax.xlane.f32.xlu0 %v796
    %v798 = vpop.xlane.xlu0 %797
    %v799 = vsel %vm315, %v795, -inf
    %800 = vmax.xlane.f32.xlu0 %v799
    %v801 = vpop.xlane.xlu0 %800
    %v802 = vsub.f32 %v794, %v798
    %v803 = vsub.f32 %v795, %v801
    %v804 = vmul.f32 %v802, 1.442695
    %v805 = vpow.pop %v804
    %v806 = vmul.f32 %v803, 1.442695
    %v807 = vpow.pop %v806
    %v808 = vsel %vm315, %v805, 0.0
    %809 = vadd.xlane.f32.xlu0 %v808
    %v810 = vpop.xlane.xlu0 %809
    %v811 = vsel %vm315, %v807, 0.0
    %812 = vadd.xlane.f32.xlu0 %v811
    %v813 = vpop.xlane.xlu0 %812
    %v814 = vrcp.pop %v810
    %v815 = vrcp.pop %v813
    %v816 = vmul.f32 %v805, %v814
    %v817 = vmul.f32 %v807, %v815
    %819 = vrot.lane.b32.xlu0 %v307, 120
    %v820 = vpop.permute.xlu0 %819
    %v823 = vsel %vm315, %v816, 0
    %825 = vmatprep.subr.mxu0 0.0
    %826 = vmatpush1.msra.mxu0 0.0
    %827 = vmatprep.subr.mxu0 0.0
    %828 = vmatpush1.msra.mxu0 0.0
    %829 = vmatprep.subr.mxu0 0.0
    %830 = vmatpush1.msra.mxu0 0.0
    %831 = vmatprep.subr.mxu0 0.0
    %832 = vmatpush1.msra.mxu0 0.0
    %833 = vmatprep.subr.mxu0 0.0
    %834 = vmatpush1.msra.mxu0 0.0
    %835 = vmatprep.subr.mxu0 0.0
    %836 = vmatpush1.msra.mxu0 0.0
    %837 = vmatprep.subr.mxu0 0.0
    %838 = vmatpush1.msra.mxu0 0.0
    %839 = vmatprep.subr.mxu0 0.0
    %840 = vmatpush1.msra.mxu0 0.0
    %841 = vmatprep.subr.mxu0 0.0
    %842 = vmatpush1.msra.mxu0 0.0
    %843 = vmatprep.subr.mxu0 0.0
    %844 = vmatpush1.msra.mxu0 0.0
    %845 = vmatprep.subr.mxu0 0.0
    %846 = vmatpush1.msra.mxu0 0.0
    %847 = vmatprep.subr.mxu0 0.0
    %848 = vmatpush1.msra.mxu0 0.0
    %849 = vmatprep.subr.mxu0 0.0
    %850 = vmatpush1.msra.mxu0 0.0
    %851 = vmatprep.subr.mxu0 0.0
    %852 = vmatpush1.msra.mxu0 0.0
    %853 = vmatprep.subr.mxu0 0.0
    %854 = vmatpush1.msra.mxu0 0.0
    %855 = vmatprep.subr.mxu0 0.0
    %856 = vmatpush1.msra.mxu0 %v820
    %857 = vmatprep.subr.mxu0 0.0
    %858 = vmatpush2.msra.mxu0 0.0
    %859 = vmatprep.subr.mxu0 0.0
    %860 = vmatpush2.msra.mxu0 0.0
    %861 = vmatprep.subr.mxu0 0.0
    %862 = vmatpush2.msra.mxu0 0.0
    %863 = vmatprep.subr.mxu0 0.0
    %864 = vmatpush2.msra.mxu0 0.0
    %865 = vmatprep.subr.mxu0 0.0
    %866 = vmatpush2.msra.mxu0 0.0
    %867 = vmatprep.subr.mxu0 0.0
    %868 = vmatpush2.msra.mxu0 0.0
    %869 = vmatprep.subr.mxu0 0.0
    %870 = vmatpush2.msra.mxu0 0.0
    %871 = vmatprep.subr.mxu0 0.0
    %872 = vmatpush2.msra.mxu0 0.0
    %873 = vmatprep.subr.mxu0 0.0
    %874 = vmatpush2.msra.mxu0 0.0
    %875 = vmatprep.subr.mxu0 0.0
    %876 = vmatpush2.msra.mxu0 0.0
    %877 = vmatprep.subr.mxu0 0.0
    %878 = vmatpush2.msra.mxu0 0.0
    %879 = vmatprep.subr.mxu0 0.0
    %880 = vmatpush2.msra.mxu0 0.0
    %881 = vmatprep.subr.mxu0 0.0
    %882 = vmatpush2.msra.mxu0 0.0
    %883 = vmatprep.subr.mxu0 0.0
    %884 = vmatpush2.msra.mxu0 0.0
    %885 = vmatprep.subr.mxu0 0.0
    %886 = vmatpush2.msra.mxu0 0.0
    %887 = vmatprep.subr.mxu0 0.0
    %888 = vmatpush2.msra.mxu0 0.0
    %889 = vmatprep.mubr.f32.mxu0 0.0
    %890 = vmatmul.mubr.f32.gmra.mxu0 %v823
    %v891 = vpop.f32.mrf.mxu0
    %v892 = vadd.f32 0.0, %v891
    %v893 = vpop.f32.mrf.mxu0
    %894 = vdwg.mxu0
    %896 = vrot.lane.b32.xlu0 %v312, 120
    %v897 = vpop.permute.xlu0 %896
    %v900 = vsel %vm315, %v817, 0
    %902 = vmatprep.subr.mxu0 0.0
    %903 = vmatpush1.msra.mxu0 0.0
    %904 = vmatprep.subr.mxu0 0.0
    %905 = vmatpush1.msra.mxu0 0.0
    %906 = vmatprep.subr.mxu0 0.0
    %907 = vmatpush1.msra.mxu0 0.0
    %908 = vmatprep.subr.mxu0 0.0
    %909 = vmatpush1.msra.mxu0 0.0
    %910 = vmatprep.subr.mxu0 0.0
    %911 = vmatpush1.msra.mxu0 0.0
    %912 = vmatprep.subr.mxu0 0.0
    %913 = vmatpush1.msra.mxu0 0.0
    %914 = vmatprep.subr.mxu0 0.0
    %915 = vmatpush1.msra.mxu0 0.0
    %916 = vmatprep.subr.mxu0 0.0
    %917 = vmatpush1.msra.mxu0 0.0
    %918 = vmatprep.subr.mxu0 0.0
    %919 = vmatpush1.msra.mxu0 0.0
    %920 = vmatprep.subr.mxu0 0.0
    %921 = vmatpush1.msra.mxu0 0.0
    %922 = vmatprep.subr.mxu0 0.0
    %923 = vmatpush1.msra.mxu0 0.0
    %924 = vmatprep.subr.mxu0 0.0
    %925 = vmatpush1.msra.mxu0 0.0
    %926 = vmatprep.subr.mxu0 0.0
    %927 = vmatpush1.msra.mxu0 0.0
    %928 = vmatprep.subr.mxu0 0.0
    %929 = vmatpush1.msra.mxu0 0.0
    %930 = vmatprep.subr.mxu0 0.0
    %931 = vmatpush1.msra.mxu0 0.0
    %932 = vmatprep.subr.mxu0 0.0
    %933 = vmatpush1.msra.mxu0 %v897
    %934 = vmatprep.subr.mxu0 0.0
    %935 = vmatpush2.msra.mxu0 0.0
    %936 = vmatprep.subr.mxu0 0.0
    %937 = vmatpush2.msra.mxu0 0.0
    %938 = vmatprep.subr.mxu0 0.0
    %939 = vmatpush2.msra.mxu0 0.0
    %940 = vmatprep.subr.mxu0 0.0
    %941 = vmatpush2.msra.mxu0 0.0
    %942 = vmatprep.subr.mxu0 0.0
    %943 = vmatpush2.msra.mxu0 0.0
    %944 = vmatprep.subr.mxu0 0.0
    %945 = vmatpush2.msra.mxu0 0.0
    %946 = vmatprep.subr.mxu0 0.0
    %947 = vmatpush2.msra.mxu0 0.0
    %948 = vmatprep.subr.mxu0 0.0
    %949 = vmatpush2.msra.mxu0 0.0
    %950 = vmatprep.subr.mxu0 0.0
    %951 = vmatpush2.msra.mxu0 0.0
    %952 = vmatprep.subr.mxu0 0.0
    %953 = vmatpush2.msra.mxu0 0.0
    %954 = vmatprep.subr.mxu0 0.0
    %955 = vmatpush2.msra.mxu0 0.0
    %956 = vmatprep.subr.mxu0 0.0
    %957 = vmatpush2.msra.mxu0 0.0
    %958 = vmatprep.subr.mxu0 0.0
    %959 = vmatpush2.msra.mxu0 0.0
    %960 = vmatprep.subr.mxu0 0.0
    %961 = vmatpush2.msra.mxu0 0.0
    %962 = vmatprep.subr.mxu0 0.0
    %963 = vmatpush2.msra.mxu0 0.0
    %964 = vmatprep.subr.mxu0 0.0
    %965 = vmatpush2.msra.mxu0 0.0
    %966 = vmatprep.mubr.f32.mxu0 0.0
    %967 = vmatmul.mubr.f32.gmra.mxu0 %v900
    %v968 = vpop.f32.mrf.mxu0
    %v969 = vadd.f32 0.0, %v968
    %v970 = vpop.f32.mrf.mxu0
    %971 = vdwg.mxu0
    %972 = vrot.lane.b32.xlu0 %v155, 112
    %v973 = vpop.permute.xlu0 %972
    %974 = vrot.lane.b32.xlu0 %v228, 112
    %v975 = vpop.permute.xlu0 %974
    %v976 = vsel %vm315, %v973, 0
    %v978 = vsel %vm315, %v975, 0
    %980 = vmatprep.subr.mxu0 0.0
    %981 = vmatpush1.xpose.msra.mxu0 0.0
    %982 = vmatprep.subr.mxu0 0.0
    %983 = vmatpush1.xpose.msra.mxu0 0.0
    %984 = vmatprep.subr.mxu0 0.0
    %985 = vmatpush1.xpose.msra.mxu0 0.0
    %986 = vmatprep.subr.mxu0 0.0
    %987 = vmatpush1.xpose.msra.mxu0 0.0
    %988 = vmatprep.subr.mxu0 0.0
    %989 = vmatpush1.xpose.msra.mxu0 0.0
    %990 = vmatprep.subr.mxu0 0.0
    %991 = vmatpush1.xpose.msra.mxu0 0.0
    %992 = vmatprep.subr.mxu0 0.0
    %993 = vmatpush1.xpose.msra.mxu0 0.0
    %994 = vmatprep.subr.mxu0 0.0
    %995 = vmatpush1.xpose.msra.mxu0 0.0
    %996 = vmatprep.subr.mxu0 0.0
    %997 = vmatpush1.xpose.msra.mxu0 0.0
    %998 = vmatprep.subr.mxu0 0.0
    %999 = vmatpush1.xpose.msra.mxu0 0.0
    %1000 = vmatprep.subr.mxu0 0.0
    %1001 = vmatpush1.xpose.msra.mxu0 0.0
    %1002 = vmatprep.subr.mxu0 0.0
    %1003 = vmatpush1.xpose.msra.mxu0 0.0
    %1004 = vmatprep.subr.mxu0 0.0
    %1005 = vmatpush1.xpose.msra.mxu0 0.0
    %1006 = vmatprep.subr.mxu0 0.0
    %1007 = vmatpush1.xpose.msra.mxu0 0.0
    %1008 = vmatprep.subr.mxu0 0.0
    %1009 = vmatpush1.xpose.msra.mxu0 0.0
    %1010 = vmatprep.subr.mxu0 0.0
    %1011 = vmatpush1.xpose.msra.mxu0 %v978
    %1012 = vmatprep.subr.mxu0 0.0
    %1013 = vmatpush2.xpose.msra.mxu0 0.0
    %1014 = vmatprep.subr.mxu0 0.0
    %1015 = vmatpush2.xpose.msra.mxu0 0.0
    %1016 = vmatprep.subr.mxu0 0.0
    %1017 = vmatpush2.xpose.msra.mxu0 0.0
    %1018 = vmatprep.subr.mxu0 0.0
    %1019 = vmatpush2.xpose.msra.mxu0 0.0
    %1020 = vmatprep.subr.mxu0 0.0
    %1021 = vmatpush2.xpose.msra.mxu0 0.0
    %1022 = vmatprep.subr.mxu0 0.0
    %1023 = vmatpush2.xpose.msra.mxu0 0.0
    %1024 = vmatprep.subr.mxu0 0.0
    %1025 = vmatpush2.xpose.msra.mxu0 0.0
    %1026 = vmatprep.subr.mxu0 0.0
    %1027 = vmatpush2.xpose.msra.mxu0 0.0
    %1028 = vmatprep.subr.mxu0 0.0
    %1029 = vmatpush2.xpose.msra.mxu0 0.0
    %1030 = vmatprep.subr.mxu0 0.0
    %1031 = vmatpush2.xpose.msra.mxu0 0.0
    %1032 = vmatprep.subr.mxu0 0.0
    %1033 = vmatpush2.xpose.msra.mxu0 0.0
    %1034 = vmatprep.subr.mxu0 0.0
    %1035 = vmatpush2.xpose.msra.mxu0 0.0
    %1036 = vmatprep.subr.mxu0 0.0
    %1037 = vmatpush2.xpose.msra.mxu0 0.0
    %1038 = vmatprep.subr.mxu0 0.0
    %1039 = vmatpush2.xpose.msra.mxu0 0.0
    %1040 = vmatprep.subr.mxu0 0.0
    %1041 = vmatpush2.xpose.msra.mxu0 0.0
    %1042 = vmatprep.subr.mxu0 0.0
    %1043 = vmatpush2.xpose.msra.mxu0 0.0
    %1044 = vmatprep.mubr.f32.mxu0 0.0
    %1045 = vmatmul.mubr.f32.gmra.mxu0 %v976
    %v1046 = vpop.f32.mrf.mxu0
    %v1047 = vadd.f32 0.0, %v1046
    %v1048 = vpop.f32.mrf.mxu0
    %1049 = vdwg.mxu0
    %1050 = vrot.lane.b32.xlu0 %v156, 112
    %v1051 = vpop.permute.xlu0 %1050
    %1052 = vrot.lane.b32.xlu0 %v233, 112
    %v1053 = vpop.permute.xlu0 %1052
    %v1054 = vsel %vm315, %v1051, 0
    %v1056 = vsel %vm315, %v1053, 0
    %1058 = vmatprep.subr.mxu0 0.0
    %1059 = vmatpush1.xpose.msra.mxu0 0.0
    %1060 = vmatprep.subr.mxu0 0.0
    %1061 = vmatpush1.xpose.msra.mxu0 0.0
    %1062 = vmatprep.subr.mxu0 0.0
    %1063 = vmatpush1.xpose.msra.mxu0 0.0
    %1064 = vmatprep.subr.mxu0 0.0
    %1065 = vmatpush1.xpose.msra.mxu0 0.0
    %1066 = vmatprep.subr.mxu0 0.0
    %1067 = vmatpush1.xpose.msra.mxu0 0.0
    %1068 = vmatprep.subr.mxu0 0.0
    %1069 = vmatpush1.xpose.msra.mxu0 0.0
    %1070 = vmatprep.subr.mxu0 0.0
    %1071 = vmatpush1.xpose.msra.mxu0 0.0
    %1072 = vmatprep.subr.mxu0 0.0
    %1073 = vmatpush1.xpose.msra.mxu0 0.0
    %1074 = vmatprep.subr.mxu0 0.0
    %1075 = vmatpush1.xpose.msra.mxu0 0.0
    %1076 = vmatprep.subr.mxu0 0.0
    %1077 = vmatpush1.xpose.msra.mxu0 0.0
    %1078 = vmatprep.subr.mxu0 0.0
    %1079 = vmatpush1.xpose.msra.mxu0 0.0
    %1080 = vmatprep.subr.mxu0 0.0
    %1081 = vmatpush1.xpose.msra.mxu0 0.0
    %1082 = vmatprep.subr.mxu0 0.0
    %1083 = vmatpush1.xpose.msra.mxu0 0.0
    %1084 = vmatprep.subr.mxu0 0.0
    %1085 = vmatpush1.xpose.msra.mxu0 0.0
    %1086 = vmatprep.subr.mxu0 0.0
    %1087 = vmatpush1.xpose.msra.mxu0 0.0
    %1088 = vmatprep.subr.mxu0 0.0
    %1089 = vmatpush1.xpose.msra.mxu0 %v1056
    %1090 = vmatprep.subr.mxu0 0.0
    %1091 = vmatpush2.xpose.msra.mxu0 0.0
    %1092 = vmatprep.subr.mxu0 0.0
    %1093 = vmatpush2.xpose.msra.mxu0 0.0
    %1094 = vmatprep.subr.mxu0 0.0
    %1095 = vmatpush2.xpose.msra.mxu0 0.0
    %1096 = vmatprep.subr.mxu0 0.0
    %1097 = vmatpush2.xpose.msra.mxu0 0.0
    %1098 = vmatprep.subr.mxu0 0.0
    %1099 = vmatpush2.xpose.msra.mxu0 0.0
    %1100 = vmatprep.subr.mxu0 0.0
    %1101 = vmatpush2.xpose.msra.mxu0 0.0
    %1102 = vmatprep.subr.mxu0 0.0
    %1103 = vmatpush2.xpose.msra.mxu0 0.0
    %1104 = vmatprep.subr.mxu0 0.0
    %1105 = vmatpush2.xpose.msra.mxu0 0.0
    %1106 = vmatprep.subr.mxu0 0.0
    %1107 = vmatpush2.xpose.msra.mxu0 0.0
    %1108 = vmatprep.subr.mxu0 0.0
    %1109 = vmatpush2.xpose.msra.mxu0 0.0
    %1110 = vmatprep.subr.mxu0 0.0
    %1111 = vmatpush2.xpose.msra.mxu0 0.0
    %1112 = vmatprep.subr.mxu0 0.0
    %1113 = vmatpush2.xpose.msra.mxu0 0.0
    %1114 = vmatprep.subr.mxu0 0.0
    %1115 = vmatpush2.xpose.msra.mxu0 0.0
    %1116 = vmatprep.subr.mxu0 0.0
    %1117 = vmatpush2.xpose.msra.mxu0 0.0
    %1118 = vmatprep.subr.mxu0 0.0
    %1119 = vmatpush2.xpose.msra.mxu0 0.0
    %1120 = vmatprep.subr.mxu0 0.0
    %1121 = vmatpush2.xpose.msra.mxu0 0.0
    %1122 = vmatprep.mubr.f32.mxu0 0.0
    %1123 = vmatmul.mubr.f32.gmra.mxu0 %v1054
    %v1124 = vpop.f32.mrf.mxu0
    %v1125 = vadd.f32 0.0, %v1124
    %v1126 = vpop.f32.mrf.mxu0
    %1127 = vdwg.mxu0
    %v1128 = vsel %vm67, -1e+20, %v1047
    %v1129 = vsel %vm68, -1e+20, %v1125
    %v1130 = vsel %vm315, %v1128, -inf
    %1131 = vmax.xlane.f32.xlu0 %v1130
    %v1132 = vpop.xlane.xlu0 %1131
    %v1133 = vsel %vm315, %v1129, -inf
    %1134 = vmax.xlane.f32.xlu0 %v1133
    %v1135 = vpop.xlane.xlu0 %1134
    %v1136 = vsub.f32 %v1128, %v1132
    %v1137 = vsub.f32 %v1129, %v1135
    %v1138 = vmul.f32 %v1136, 1.442695
    %v1139 = vpow.pop %v1138
    %v1140 = vmul.f32 %v1137, 1.442695
    %v1141 = vpow.pop %v1140
    %v1142 = vsel %vm315, %v1139, 0.0
    %1143 = vadd.xlane.f32.xlu0 %v1142
    %v1144 = vpop.xlane.xlu0 %1143
    %v1145 = vsel %vm315, %v1141, 0.0
    %1146 = vadd.xlane.f32.xlu0 %v1145
    %v1147 = vpop.xlane.xlu0 %1146
    %v1148 = vrcp.pop %v1144
    %v1149 = vrcp.pop %v1147
    %v1150 = vmul.f32 %v1139, %v1148
    %v1151 = vmul.f32 %v1141, %v1149
    %1152 = vrot.lane.b32.xlu0 %v307, 112
    %v1153 = vpop.permute.xlu0 %1152
    %v1156 = vsel %vm315, %v1150, 0
    %1158 = vmatprep.subr.mxu0 0.0
    %1159 = vmatpush1.msra.mxu0 0.0
    %1160 = vmatprep.subr.mxu0 0.0
    %1161 = vmatpush1.msra.mxu0 0.0
    %1162 = vmatprep.subr.mxu0 0.0
    %1163 = vmatpush1.msra.mxu0 0.0
    %1164 = vmatprep.subr.mxu0 0.0
    %1165 = vmatpush1.msra.mxu0 0.0
    %1166 = vmatprep.subr.mxu0 0.0
    %1167 = vmatpush1.msra.mxu0 0.0
    %1168 = vmatprep.subr.mxu0 0.0
    %1169 = vmatpush1.msra.mxu0 0.0
    %1170 = vmatprep.subr.mxu0 0.0
    %1171 = vmatpush1.msra.mxu0 0.0
    %1172 = vmatprep.subr.mxu0 0.0
    %1173 = vmatpush1.msra.mxu0 0.0
    %1174 = vmatprep.subr.mxu0 0.0
    %1175 = vmatpush1.msra.mxu0 0.0
    %1176 = vmatprep.subr.mxu0 0.0
    %1177 = vmatpush1.msra.mxu0 0.0
    %1178 = vmatprep.subr.mxu0 0.0
    %1179 = vmatpush1.msra.mxu0 0.0
    %1180 = vmatprep.subr.mxu0 0.0
    %1181 = vmatpush1.msra.mxu0 0.0
    %1182 = vmatprep.subr.mxu0 0.0
    %1183 = vmatpush1.msra.mxu0 0.0
    %1184 = vmatprep.subr.mxu0 0.0
    %1185 = vmatpush1.msra.mxu0 0.0
    %1186 = vmatprep.subr.mxu0 0.0
    %1187 = vmatpush1.msra.mxu0 0.0
    %1188 = vmatprep.subr.mxu0 0.0
    %1189 = vmatpush1.msra.mxu0 %v1153
    %1190 = vmatprep.subr.mxu0 0.0
    %1191 = vmatpush2.msra.mxu0 0.0
    %1192 = vmatprep.subr.mxu0 0.0
    %1193 = vmatpush2.msra.mxu0 0.0
    %1194 = vmatprep.subr.mxu0 0.0
    %1195 = vmatpush2.msra.mxu0 0.0
    %1196 = vmatprep.subr.mxu0 0.0
    %1197 = vmatpush2.msra.mxu0 0.0
    %1198 = vmatprep.subr.mxu0 0.0
    %1199 = vmatpush2.msra.mxu0 0.0
    %1200 = vmatprep.subr.mxu0 0.0
    %1201 = vmatpush2.msra.mxu0 0.0
    %1202 = vmatprep.subr.mxu0 0.0
    %1203 = vmatpush2.msra.mxu0 0.0
    %1204 = vmatprep.subr.mxu0 0.0
    %1205 = vmatpush2.msra.mxu0 0.0
    %1206 = vmatprep.subr.mxu0 0.0
    %1207 = vmatpush2.msra.mxu0 0.0
    %1208 = vmatprep.subr.mxu0 0.0
    %1209 = vmatpush2.msra.mxu0 0.0
    %1210 = vmatprep.subr.mxu0 0.0
    %1211 = vmatpush2.msra.mxu0 0.0
    %1212 = vmatprep.subr.mxu0 0.0
    %1213 = vmatpush2.msra.mxu0 0.0
    %1214 = vmatprep.subr.mxu0 0.0
    %1215 = vmatpush2.msra.mxu0 0.0
    %1216 = vmatprep.subr.mxu0 0.0
    %1217 = vmatpush2.msra.mxu0 0.0
    %1218 = vmatprep.subr.mxu0 0.0
    %1219 = vmatpush2.msra.mxu0 0.0
    %1220 = vmatprep.subr.mxu0 0.0
    %1221 = vmatpush2.msra.mxu0 0.0
    %1222 = vmatprep.mubr.f32.mxu0 0.0
    %1223 = vmatmul.mubr.f32.gmra.mxu0 %v1156
    %v1224 = vpop.f32.mrf.mxu0
    %v1225 = vadd.f32 0.0, %v1224
    %v1226 = vpop.f32.mrf.mxu0
    %1227 = vdwg.mxu0
    %1228 = vrot.lane.b32.xlu0 %v312, 112
    %v1229 = vpop.permute.xlu0 %1228
    %v1232 = vsel %vm315, %v1151, 0
    %1234 = vmatprep.subr.mxu0 0.0
    %1235 = vmatpush1.msra.mxu0 0.0
    %1236 = vmatprep.subr.mxu0 0.0
    %1237 = vmatpush1.msra.mxu0 0.0
    %1238 = vmatprep.subr.mxu0 0.0
    %1239 = vmatpush1.msra.mxu0 0.0
    %1240 = vmatprep.subr.mxu0 0.0
    %1241 = vmatpush1.msra.mxu0 0.0
    %1242 = vmatprep.subr.mxu0 0.0
    %1243 = vmatpush1.msra.mxu0 0.0
    %1244 = vmatprep.subr.mxu0 0.0
    %1245 = vmatpush1.msra.mxu0 0.0
    %1246 = vmatprep.subr.mxu0 0.0
    %1247 = vmatpush1.msra.mxu0 0.0
    %1248 = vmatprep.subr.mxu0 0.0
    %1249 = vmatpush1.msra.mxu0 0.0
    %1250 = vmatprep.subr.mxu0 0.0
    %1251 = vmatpush1.msra.mxu0 0.0
    %1252 = vmatprep.subr.mxu0 0.0
    %1253 = vmatpush1.msra.mxu0 0.0
    %1254 = vmatprep.subr.mxu0 0.0
    %1255 = vmatpush1.msra.mxu0 0.0
    %1256 = vmatprep.subr.mxu0 0.0
    %1257 = vmatpush1.msra.mxu0 0.0
    %1258 = vmatprep.subr.mxu0 0.0
    %1259 = vmatpush1.msra.mxu0 0.0
    %1260 = vmatprep.subr.mxu0 0.0
    %1261 = vmatpush1.msra.mxu0 0.0
    %1262 = vmatprep.subr.mxu0 0.0
    %1263 = vmatpush1.msra.mxu0 0.0
    %1264 = vmatprep.subr.mxu0 0.0
    %1265 = vmatpush1.msra.mxu0 %v1229
    %1266 = vmatprep.subr.mxu0 0.0
    %1267 = vmatpush2.msra.mxu0 0.0
    %1268 = vmatprep.subr.mxu0 0.0
    %1269 = vmatpush2.msra.mxu0 0.0
    %1270 = vmatprep.subr.mxu0 0.0
    %1271 = vmatpush2.msra.mxu0 0.0
    %1272 = vmatprep.subr.mxu0 0.0
    %1273 = vmatpush2.msra.mxu0 0.0
    %1274 = vmatprep.subr.mxu0 0.0
    %1275 = vmatpush2.msra.mxu0 0.0
    %1276 = vmatprep.subr.mxu0 0.0
    %1277 = vmatpush2.msra.mxu0 0.0
    %1278 = vmatprep.subr.mxu0 0.0
    %1279 = vmatpush2.msra.mxu0 0.0
    %1280 = vmatprep.subr.mxu0 0.0
    %1281 = vmatpush2.msra.mxu0 0.0
    %1282 = vmatprep.subr.mxu0 0.0
    %1283 = vmatpush2.msra.mxu0 0.0
    %1284 = vmatprep.subr.mxu0 0.0
    %1285 = vmatpush2.msra.mxu0 0.0
    %1286 = vmatprep.subr.mxu0 0.0
    %1287 = vmatpush2.msra.mxu0 0.0
    %1288 = vmatprep.subr.mxu0 0.0
    %1289 = vmatpush2.msra.mxu0 0.0
    %1290 = vmatprep.subr.mxu0 0.0
    %1291 = vmatpush2.msra.mxu0 0.0
    %1292 = vmatprep.subr.mxu0 0.0
    %1293 = vmatpush2.msra.mxu0 0.0
    %1294 = vmatprep.subr.mxu0 0.0
    %1295 = vmatpush2.msra.mxu0 0.0
    %1296 = vmatprep.subr.mxu0 0.0
    %1297 = vmatpush2.msra.mxu0 0.0
    %1298 = vmatprep.mubr.f32.mxu0 0.0
    %1299 = vmatmul.mubr.f32.gmra.mxu0 %v1232
    %v1300 = vpop.f32.mrf.mxu0
    %v1301 = vadd.f32 0.0, %v1300
    %v1302 = vpop.f32.mrf.mxu0
    %1303 = vdwg.mxu0
    %1304 = vrot.lane.b32.xlu0 %v155, 104
    %v1305 = vpop.permute.xlu0 %1304
    %1306 = vrot.lane.b32.xlu0 %v228, 104
    %v1307 = vpop.permute.xlu0 %1306
    %v1308 = vsel %vm315, %v1305, 0
    %v1310 = vsel %vm315, %v1307, 0
    %1312 = vmatprep.subr.mxu0 0.0
    %1313 = vmatpush1.xpose.msra.mxu0 0.0
    %1314 = vmatprep.subr.mxu0 0.0
    %1315 = vmatpush1.xpose.msra.mxu0 0.0
    %1316 = vmatprep.subr.mxu0 0.0
    %1317 = vmatpush1.xpose.msra.mxu0 0.0
    %1318 = vmatprep.subr.mxu0 0.0
    %1319 = vmatpush1.xpose.msra.mxu0 0.0
    %1320 = vmatprep.subr.mxu0 0.0
    %1321 = vmatpush1.xpose.msra.mxu0 0.0
    %1322 = vmatprep.subr.mxu0 0.0
    %1323 = vmatpush1.xpose.msra.mxu0 0.0
    %1324 = vmatprep.subr.mxu0 0.0
    %1325 = vmatpush1.xpose.msra.mxu0 0.0
    %1326 = vmatprep.subr.mxu0 0.0
    %1327 = vmatpush1.xpose.msra.mxu0 0.0
    %1328 = vmatprep.subr.mxu0 0.0
    %1329 = vmatpush1.xpose.msra.mxu0 0.0
    %1330 = vmatprep.subr.mxu0 0.0
    %1331 = vmatpush1.xpose.msra.mxu0 0.0
    %1332 = vmatprep.subr.mxu0 0.0
    %1333 = vmatpush1.xpose.msra.mxu0 0.0
    %1334 = vmatprep.subr.mxu0 0.0
    %1335 = vmatpush1.xpose.msra.mxu0 0.0
    %1336 = vmatprep.subr.mxu0 0.0
    %1337 = vmatpush1.xpose.msra.mxu0 0.0
    %1338 = vmatprep.subr.mxu0 0.0
    %1339 = vmatpush1.xpose.msra.mxu0 0.0
    %1340 = vmatprep.subr.mxu0 0.0
    %1341 = vmatpush1.xpose.msra.mxu0 0.0
    %1342 = vmatprep.subr.mxu0 0.0
    %1343 = vmatpush1.xpose.msra.mxu0 %v1310
    %1344 = vmatprep.subr.mxu0 0.0
    %1345 = vmatpush2.xpose.msra.mxu0 0.0
    %1346 = vmatprep.subr.mxu0 0.0
    %1347 = vmatpush2.xpose.msra.mxu0 0.0
    %1348 = vmatprep.subr.mxu0 0.0
    %1349 = vmatpush2.xpose.msra.mxu0 0.0
    %1350 = vmatprep.subr.mxu0 0.0
    %1351 = vmatpush2.xpose.msra.mxu0 0.0
    %1352 = vmatprep.subr.mxu0 0.0
    %1353 = vmatpush2.xpose.msra.mxu0 0.0
    %1354 = vmatprep.subr.mxu0 0.0
    %1355 = vmatpush2.xpose.msra.mxu0 0.0
    %1356 = vmatprep.subr.mxu0 0.0
    %1357 = vmatpush2.xpose.msra.mxu0 0.0
    %1358 = vmatprep.subr.mxu0 0.0
    %1359 = vmatpush2.xpose.msra.mxu0 0.0
    %1360 = vmatprep.subr.mxu0 0.0
    %1361 = vmatpush2.xpose.msra.mxu0 0.0
    %1362 = vmatprep.subr.mxu0 0.0
    %1363 = vmatpush2.xpose.msra.mxu0 0.0
    %1364 = vmatprep.subr.mxu0 0.0
    %1365 = vmatpush2.xpose.msra.mxu0 0.0
    %1366 = vmatprep.subr.mxu0 0.0
    %1367 = vmatpush2.xpose.msra.mxu0 0.0
    %1368 = vmatprep.subr.mxu0 0.0
    %1369 = vmatpush2.xpose.msra.mxu0 0.0
    %1370 = vmatprep.subr.mxu0 0.0
    %1371 = vmatpush2.xpose.msra.mxu0 0.0
    %1372 = vmatprep.subr.mxu0 0.0
    %1373 = vmatpush2.xpose.msra.mxu0 0.0
    %1374 = vmatprep.subr.mxu0 0.0
    %1375 = vmatpush2.xpose.msra.mxu0 0.0
    %1376 = vmatprep.mubr.f32.mxu0 0.0
    %1377 = vmatmul.mubr.f32.gmra.mxu0 %v1308
    %v1378 = vpop.f32.mrf.mxu0
    %v1379 = vadd.f32 0.0, %v1378
    %v1380 = vpop.f32.mrf.mxu0
    %1381 = vdwg.mxu0
    %1382 = vrot.lane.b32.xlu0 %v156, 104
    %v1383 = vpop.permute.xlu0 %1382
    %1384 = vrot.lane.b32.xlu0 %v233, 104
    %v1385 = vpop.permute.xlu0 %1384
    %v1386 = vsel %vm315, %v1383, 0
    %v1388 = vsel %vm315, %v1385, 0
    %1390 = vmatprep.subr.mxu0 0.0
    %1391 = vmatpush1.xpose.msra.mxu0 0.0
    %1392 = vmatprep.subr.mxu0 0.0
    %1393 = vmatpush1.xpose.msra.mxu0 0.0
    %1394 = vmatprep.subr.mxu0 0.0
    %1395 = vmatpush1.xpose.msra.mxu0 0.0
    %1396 = vmatprep.subr.mxu0 0.0
    %1397 = vmatpush1.xpose.msra.mxu0 0.0
    %1398 = vmatprep.subr.mxu0 0.0
    %1399 = vmatpush1.xpose.msra.mxu0 0.0
    %1400 = vmatprep.subr.mxu0 0.0
    %1401 = vmatpush1.xpose.msra.mxu0 0.0
    %1402 = vmatprep.subr.mxu0 0.0
    %1403 = vmatpush1.xpose.msra.mxu0 0.0
    %1404 = vmatprep.subr.mxu0 0.0
    %1405 = vmatpush1.xpose.msra.mxu0 0.0
    %1406 = vmatprep.subr.mxu0 0.0
    %1407 = vmatpush1.xpose.msra.mxu0 0.0
    %1408 = vmatprep.subr.mxu0 0.0
    %1409 = vmatpush1.xpose.msra.mxu0 0.0
    %1410 = vmatprep.subr.mxu0 0.0
    %1411 = vmatpush1.xpose.msra.mxu0 0.0
    %1412 = vmatprep.subr.mxu0 0.0
    %1413 = vmatpush1.xpose.msra.mxu0 0.0
    %1414 = vmatprep.subr.mxu0 0.0
    %1415 = vmatpush1.xpose.msra.mxu0 0.0
    %1416 = vmatprep.subr.mxu0 0.0
    %1417 = vmatpush1.xpose.msra.mxu0 0.0
    %1418 = vmatprep.subr.mxu0 0.0
    %1419 = vmatpush1.xpose.msra.mxu0 0.0
    %1420 = vmatprep.subr.mxu0 0.0
    %1421 = vmatpush1.xpose.msra.mxu0 %v1388
    %1422 = vmatprep.subr.mxu0 0.0
    %1423 = vmatpush2.xpose.msra.mxu0 0.0
    %1424 = vmatprep.subr.mxu0 0.0
    %1425 = vmatpush2.xpose.msra.mxu0 0.0
    %1426 = vmatprep.subr.mxu0 0.0
    %1427 = vmatpush2.xpose.msra.mxu0 0.0
    %1428 = vmatprep.subr.mxu0 0.0
    %1429 = vmatpush2.xpose.msra.mxu0 0.0
    %1430 = vmatprep.subr.mxu0 0.0
    %1431 = vmatpush2.xpose.msra.mxu0 0.0
    %1432 = vmatprep.subr.mxu0 0.0
    %1433 = vmatpush2.xpose.msra.mxu0 0.0
    %1434 = vmatprep.subr.mxu0 0.0
    %1435 = vmatpush2.xpose.msra.mxu0 0.0
    %1436 = vmatprep.subr.mxu0 0.0
    %1437 = vmatpush2.xpose.msra.mxu0 0.0
    %1438 = vmatprep.subr.mxu0 0.0
    %1439 = vmatpush2.xpose.msra.mxu0 0.0
    %1440 = vmatprep.subr.mxu0 0.0
    %1441 = vmatpush2.xpose.msra.mxu0 0.0
    %1442 = vmatprep.subr.mxu0 0.0
    %1443 = vmatpush2.xpose.msra.mxu0 0.0
    %1444 = vmatprep.subr.mxu0 0.0
    %1445 = vmatpush2.xpose.msra.mxu0 0.0
    %1446 = vmatprep.subr.mxu0 0.0
    %1447 = vmatpush2.xpose.msra.mxu0 0.0
    %1448 = vmatprep.subr.mxu0 0.0
    %1449 = vmatpush2.xpose.msra.mxu0 0.0
    %1450 = vmatprep.subr.mxu0 0.0
    %1451 = vmatpush2.xpose.msra.mxu0 0.0
    %1452 = vmatprep.subr.mxu0 0.0
    %1453 = vmatpush2.xpose.msra.mxu0 0.0
    %1454 = vmatprep.mubr.f32.mxu0 0.0
    %1455 = vmatmul.mubr.f32.gmra.mxu0 %v1386
    %v1456 = vpop.f32.mrf.mxu0
    %v1457 = vadd.f32 0.0, %v1456
    %v1458 = vpop.f32.mrf.mxu0
    %1459 = vdwg.mxu0
    %v1460 = vsel %vm67, -1e+20, %v1379
    %v1461 = vsel %vm68, -1e+20, %v1457
    %v1462 = vsel %vm315, %v1460, -inf
    %1463 = vmax.xlane.f32.xlu0 %v1462
    %v1464 = vpop.xlane.xlu0 %1463
    %v1465 = vsel %vm315, %v1461, -inf
    %1466 = vmax.xlane.f32.xlu0 %v1465
    %v1467 = vpop.xlane.xlu0 %1466
    %v1468 = vsub.f32 %v1460, %v1464
    %v1469 = vsub.f32 %v1461, %v1467
    %v1470 = vmul.f32 %v1468, 1.442695
    %v1471 = vpow.pop %v1470
    %v1472 = vmul.f32 %v1469, 1.442695
    %v1473 = vpow.pop %v1472
    %v1474 = vsel %vm315, %v1471, 0.0
    %1475 = vadd.xlane.f32.xlu0 %v1474
    %v1476 = vpop.xlane.xlu0 %1475
    %v1477 = vsel %vm315, %v1473, 0.0
    %1478 = vadd.xlane.f32.xlu0 %v1477
    %v1479 = vpop.xlane.xlu0 %1478
    %v1480 = vrcp.pop %v1476
    %v1481 = vrcp.pop %v1479
    %v1482 = vmul.f32 %v1471, %v1480
    %v1483 = vmul.f32 %v1473, %v1481
    %1484 = vrot.lane.b32.xlu0 %v307, 104
    %v1485 = vpop.permute.xlu0 %1484
    %v1488 = vsel %vm315, %v1482, 0
    %1490 = vmatprep.subr.mxu0 0.0
    %1491 = vmatpush1.msra.mxu0 0.0
    %1492 = vmatprep.subr.mxu0 0.0
    %1493 = vmatpush1.msra.mxu0 0.0
    %1494 = vmatprep.subr.mxu0 0.0
    %1495 = vmatpush1.msra.mxu0 0.0
    %1496 = vmatprep.subr.mxu0 0.0
    %1497 = vmatpush1.msra.mxu0 0.0
    %1498 = vmatprep.subr.mxu0 0.0
    %1499 = vmatpush1.msra.mxu0 0.0
    %1500 = vmatprep.subr.mxu0 0.0
    %1501 = vmatpush1.msra.mxu0 0.0
    %1502 = vmatprep.subr.mxu0 0.0
    %1503 = vmatpush1.msra.mxu0 0.0
    %1504 = vmatprep.subr.mxu0 0.0
    %1505 = vmatpush1.msra.mxu0 0.0
    %1506 = vmatprep.subr.mxu0 0.0
    %1507 = vmatpush1.msra.mxu0 0.0
    %1508 = vmatprep.subr.mxu0 0.0
    %1509 = vmatpush1.msra.mxu0 0.0
    %1510 = vmatprep.subr.mxu0 0.0
    %1511 = vmatpush1.msra.mxu0 0.0
    %1512 = vmatprep.subr.mxu0 0.0
    %1513 = vmatpush1.msra.mxu0 0.0
    %1514 = vmatprep.subr.mxu0 0.0
    %1515 = vmatpush1.msra.mxu0 0.0
    %1516 = vmatprep.subr.mxu0 0.0
    %1517 = vmatpush1.msra.mxu0 0.0
    %1518 = vmatprep.subr.mxu0 0.0
    %1519 = vmatpush1.msra.mxu0 0.0
    %1520 = vmatprep.subr.mxu0 0.0
    %1521 = vmatpush1.msra.mxu0 %v1485
    %1522 = vmatprep.subr.mxu0 0.0
    %1523 = vmatpush2.msra.mxu0 0.0
    %1524 = vmatprep.subr.mxu0 0.0
    %1525 = vmatpush2.msra.mxu0 0.0
    %1526 = vmatprep.subr.mxu0 0.0
    %1527 = vmatpush2.msra.mxu0 0.0
    %1528 = vmatprep.subr.mxu0 0.0
    %1529 = vmatpush2.msra.mxu0 0.0
    %1530 = vmatprep.subr.mxu0 0.0
    %1531 = vmatpush2.msra.mxu0 0.0
    %1532 = vmatprep.subr.mxu0 0.0
    %1533 = vmatpush2.msra.mxu0 0.0
    %1534 = vmatprep.subr.mxu0 0.0
    %1535 = vmatpush2.msra.mxu0 0.0
    %1536 = vmatprep.subr.mxu0 0.0
    %1537 = vmatpush2.msra.mxu0 0.0
    %1538 = vmatprep.subr.mxu0 0.0
    %1539 = vmatpush2.msra.mxu0 0.0
    %1540 = vmatprep.subr.mxu0 0.0
    %1541 = vmatpush2.msra.mxu0 0.0
    %1542 = vmatprep.subr.mxu0 0.0
    %1543 = vmatpush2.msra.mxu0 0.0
    %1544 = vmatprep.subr.mxu0 0.0
    %1545 = vmatpush2.msra.mxu0 0.0
    %1546 = vmatprep.subr.mxu0 0.0
    %1547 = vmatpush2.msra.mxu0 0.0
    %1548 = vmatprep.subr.mxu0 0.0
    %1549 = vmatpush2.msra.mxu0 0.0
    %1550 = vmatprep.subr.mxu0 0.0
    %1551 = vmatpush2.msra.mxu0 0.0
    %1552 = vmatprep.subr.mxu0 0.0
    %1553 = vmatpush2.msra.mxu0 0.0
    %1554 = vmatprep.mubr.f32.mxu0 0.0
    %1555 = vmatmul.mubr.f32.gmra.mxu0 %v1488
    %v1556 = vpop.f32.mrf.mxu0
    %v1557 = vadd.f32 0.0, %v1556
    %v1558 = vpop.f32.mrf.mxu0
    %1559 = vdwg.mxu0
    %1560 = vrot.lane.b32.xlu0 %v312, 104
    %v1561 = vpop.permute.xlu0 %1560
    %v1564 = vsel %vm315, %v1483, 0
    %1566 = vmatprep.subr.mxu0 0.0
    %1567 = vmatpush1.msra.mxu0 0.0
    %1568 = vmatprep.subr.mxu0 0.0
    %1569 = vmatpush1.msra.mxu0 0.0
    %1570 = vmatprep.subr.mxu0 0.0
    %1571 = vmatpush1.msra.mxu0 0.0
    %1572 = vmatprep.subr.mxu0 0.0
    %1573 = vmatpush1.msra.mxu0 0.0
    %1574 = vmatprep.subr.mxu0 0.0
    %1575 = vmatpush1.msra.mxu0 0.0
    %1576 = vmatprep.subr.mxu0 0.0
    %1577 = vmatpush1.msra.mxu0 0.0
    %1578 = vmatprep.subr.mxu0 0.0
    %1579 = vmatpush1.msra.mxu0 0.0
    %1580 = vmatprep.subr.mxu0 0.0
    %1581 = vmatpush1.msra.mxu0 0.0
    %1582 = vmatprep.subr.mxu0 0.0
    %1583 = vmatpush1.msra.mxu0 0.0
    %1584 = vmatprep.subr.mxu0 0.0
    %1585 = vmatpush1.msra.mxu0 0.0
    %1586 = vmatprep.subr.mxu0 0.0
    %1587 = vmatpush1.msra.mxu0 0.0
    %1588 = vmatprep.subr.mxu0 0.0
    %1589 = vmatpush1.msra.mxu0 0.0
    %1590 = vmatprep.subr.mxu0 0.0
    %1591 = vmatpush1.msra.mxu0 0.0
    %1592 = vmatprep.subr.mxu0 0.0
    %1593 = vmatpush1.msra.mxu0 0.0
    %1594 = vmatprep.subr.mxu0 0.0
    %1595 = vmatpush1.msra.mxu0 0.0
    %1596 = vmatprep.subr.mxu0 0.0
    %1597 = vmatpush1.msra.mxu0 %v1561
    %1598 = vmatprep.subr.mxu0 0.0
    %1599 = vmatpush2.msra.mxu0 0.0
    %1600 = vmatprep.subr.mxu0 0.0
    %1601 = vmatpush2.msra.mxu0 0.0
    %1602 = vmatprep.subr.mxu0 0.0
    %1603 = vmatpush2.msra.mxu0 0.0
    %1604 = vmatprep.subr.mxu0 0.0
    %1605 = vmatpush2.msra.mxu0 0.0
    %1606 = vmatprep.subr.mxu0 0.0
    %1607 = vmatpush2.msra.mxu0 0.0
    %1608 = vmatprep.subr.mxu0 0.0
    %1609 = vmatpush2.msra.mxu0 0.0
    %1610 = vmatprep.subr.mxu0 0.0
    %1611 = vmatpush2.msra.mxu0 0.0
    %1612 = vmatprep.subr.mxu0 0.0
    %1613 = vmatpush2.msra.mxu0 0.0
    %1614 = vmatprep.subr.mxu0 0.0
    %1615 = vmatpush2.msra.mxu0 0.0
    %1616 = vmatprep.subr.mxu0 0.0
    %1617 = vmatpush2.msra.mxu0 0.0
    %1618 = vmatprep.subr.mxu0 0.0
    %1619 = vmatpush2.msra.mxu0 0.0
    %1620 = vmatprep.subr.mxu0 0.0
    %1621 = vmatpush2.msra.mxu0 0.0
    %1622 = vmatprep.subr.mxu0 0.0
    %1623 = vmatpush2.msra.mxu0 0.0
    %1624 = vmatprep.subr.mxu0 0.0
    %1625 = vmatpush2.msra.mxu0 0.0
    %1626 = vmatprep.subr.mxu0 0.0
    %1627 = vmatpush2.msra.mxu0 0.0
    %1628 = vmatprep.subr.mxu0 0.0
    %1629 = vmatpush2.msra.mxu0 0.0
    %1630 = vmatprep.mubr.f32.mxu0 0.0
    %1631 = vmatmul.mubr.f32.gmra.mxu0 %v1564
    %v1632 = vpop.f32.mrf.mxu0
    %v1633 = vadd.f32 0.0, %v1632
    %v1634 = vpop.f32.mrf.mxu0
    %1635 = vdwg.mxu0
    %1638 = vrot.lane.b32.xlu0 %v892, 8
    %v1639 = vpop.permute.xlu0 %1638
    %1640 = vrot.lane.b32.xlu0 %v969, 8
    %v1641 = vpop.permute.xlu0 %1640
    %1646 = vrot.lane.b32.xlu0 %v1225, 16
    %v1647 = vpop.permute.xlu0 %1646
    %1648 = vrot.lane.b32.xlu0 %v1301, 16
    %v1649 = vpop.permute.xlu0 %1648
    %1654 = vrot.lane.b32.xlu0 %v1557, 24
    %v1655 = vpop.permute.xlu0 %1654
    %1656 = vrot.lane.b32.xlu0 %v1633, 24
    %v1657 = vpop.permute.xlu0 %1656
    %v1660 = vsel %vm315, %v562, %v1639
    %v1661 = vsel %vm315, %v635, %v1641
    %vm1662 = vcmask 130048
    %v1663 = vsel %vm1662, %v1660, %v1647
    %v1664 = vsel %vm1662, %v1661, %v1649
    %vm1665 = vcmask 195584
    %v1666 = vsel %vm1665, %v1663, %v1655
    %v1667 = vsel %vm1665, %v1664, %v1657
    %v1668 = vld [vmem:[%s5] sm:$0xff]
    %v1669 = vld [vmem:[%s5 + $0x8] sm:$0xff]
    %v1670 = vld [vmem:[%s5 + $0x10] sm:$0xff]
    %v1671 = vld [vmem:[%s5 + $0x18] sm:$0xff]
    %v1672 = vld [vmem:[%s6] sm:$0x1]
    %v1674 = vlaneseq
    %v1675 = vshrl.u32 %v1674, 7
    %v1676 = vsub.s32 0, %v1675
    %v1677 = vrot.slane %v1672, %v1676
    %v1680 = vsel %vm73, %v1666, 0
    %v1683 = vsel %vm73, %v1667, 0
    %1685 = vmatprep.subr.mxu0 0.0
    %1686 = vmatpush1.msra.mxu0 0.0
    %1687 = vmatprep.subr.mxu0 0.0
    %1688 = vmatpush1.msra.mxu0 0.0
    %1689 = vmatprep.subr.mxu0 0.0
    %1690 = vmatpush1.msra.mxu0 0.0
    %1691 = vmatprep.subr.mxu0 0.0
    %1692 = vmatpush1.msra.mxu0 0.0
    %1693 = vmatprep.subr.mxu0 0.0
    %1694 = vmatpush1.msra.mxu0 0.0
    %1695 = vmatprep.subr.mxu0 0.0
    %1696 = vmatpush1.msra.mxu0 0.0
    %1697 = vmatprep.subr.mxu0 0.0
    %1698 = vmatpush1.msra.mxu0 0.0
    %1699 = vmatprep.subr.mxu0 0.0
    %1700 = vmatpush1.msra.mxu0 0.0
    %1701 = vmatprep.subr.mxu0 0.0
    %1702 = vmatpush1.msra.mxu0 0.0
    %1703 = vmatprep.subr.mxu0 0.0
    %1704 = vmatpush1.msra.mxu0 0.0
    %1705 = vmatprep.subr.mxu0 0.0
    %1706 = vmatpush1.msra.mxu0 0.0
    %1707 = vmatprep.subr.mxu0 0.0
    %1708 = vmatpush1.msra.mxu0 0.0
    %1709 = vmatprep.subr.mxu0 0.0
    %1710 = vmatpush1.msra.mxu0 %v1671
    %1711 = vmatprep.subr.mxu0 0.0
    %1712 = vmatpush1.msra.mxu0 %v1670
    %1713 = vmatprep.subr.mxu0 0.0
    %1714 = vmatpush1.msra.mxu0 %v1669
    %1715 = vmatprep.subr.mxu0 0.0
    %1716 = vmatpush1.msra.mxu0 %v1668
    %1717 = vmatprep.subr.mxu0 0.0
    %1718 = vmatpush2.msra.mxu0 0.0
    %1719 = vmatprep.subr.mxu0 0.0
    %1720 = vmatpush2.msra.mxu0 0.0
    %1721 = vmatprep.subr.mxu0 0.0
    %1722 = vmatpush2.msra.mxu0 0.0
    %1723 = vmatprep.subr.mxu0 0.0
    %1724 = vmatpush2.msra.mxu0 0.0
    %1725 = vmatprep.subr.mxu0 0.0
    %1726 = vmatpush2.msra.mxu0 0.0
    %1727 = vmatprep.subr.mxu0 0.0
    %1728 = vmatpush2.msra.mxu0 0.0
    %1729 = vmatprep.subr.mxu0 0.0
    %1730 = vmatpush2.msra.mxu0 0.0
    %1731 = vmatprep.subr.mxu0 0.0
    %1732 = vmatpush2.msra.mxu0 0.0
    %1733 = vmatprep.subr.mxu0 0.0
    %1734 = vmatpush2.msra.mxu0 0.0
    %1735 = vmatprep.subr.mxu0 0.0
    %1736 = vmatpush2.msra.mxu0 0.0
    %1737 = vmatprep.subr.mxu0 0.0
    %1738 = vmatpush2.msra.mxu0 0.0
    %1739 = vmatprep.subr.mxu0 0.0
    %1740 = vmatpush2.msra.mxu0 0.0
    %1741 = vmatprep.subr.mxu0 0.0
    %1742 = vmatpush2.msra.mxu0 0.0
    %1743 = vmatprep.subr.mxu0 0.0
    %1744 = vmatpush2.msra.mxu0 0.0
    %1745 = vmatprep.subr.mxu0 0.0
    %1746 = vmatpush2.msra.mxu0 0.0
    %1747 = vmatprep.subr.mxu0 0.0
    %1748 = vmatpush2.msra.mxu0 0.0
    %1749 = vmatprep.mubr.f32.mxu0 0.0
    %1750 = vmatmul.mubr.f32.gmra.mxu0 %v1680
    %v1751 = vpop.f32.mrf.mxu0
    %v1752 = vadd.f32 %v1677, %v1751
    %v1753 = vpop.f32.mrf.mxu0
    %1754 = vmatprep.mubr.f32.mxu0 0.0
    %1755 = vmatmul.mubr.f32.gmra.mxu0 %v1683
    %v1756 = vpop.f32.mrf.mxu0
    %v1757 = vadd.f32 %v1677, %v1756
    %v1758 = vpop.f32.mrf.mxu0
    %1759 = vdwg.mxu0
    %v1760 = vadd.f32 %v1752, %v51
    %v1761 = vadd.f32 %v1757, %v52
    %v1762 = vld [vmem:[%s7] sm:$0x1]
    %v1763 = vld [vmem:[%s8] sm:$0x1]
    %v1764 = vsel %vm73, %v1760, 0.0
    %1765 = vadd.xlane.f32.xlu0 %v1764
    %v1766 = vpop.xlane.xlu0 %1765
    %v1767 = vsel %vm73, %v1761, 0.0
    %1768 = vadd.xlane.f32.xlu0 %v1767
    %v1769 = vpop.xlane.xlu0 %1768
    %v1770 = vrcp.pop 32.0
    %v1771 = vmul.f32 %v1766, %v1770
    %v1772 = vmul.f32 %v1769, %v1770
    %v1773 = vsub.f32 %v1760, %v1771
    %v1774 = vsub.f32 %v1761, %v1772
    %v1775 = vmul.f32 %v1773, %v1773
    %v1776 = vmul.f32 %v1774, %v1774
    %v1777 = vsel %vm73, %v1775, 0.0
    %1778 = vadd.xlane.f32.xlu0 %v1777
    %v1779 = vpop.xlane.xlu0 %1778
    %v1780 = vsel %vm73, %v1776, 0.0
    %1781 = vadd.xlane.f32.xlu0 %v1780
    %v1782 = vpop.xlane.xlu0 %1781
    %v1783 = vmul.f32 %v1779, %v1770
    %v1784 = vmul.f32 %v1782, %v1770
    %v1785 = vadd.f32 %v1783, 1e-05
    %v1786 = vadd.f32 %v1784, 1e-05
    %v1787 = vrsqrt.pop %v1785
    %v1788 = vrsqrt.pop %v1786
    %v1789 = vmul.f32 %v1773, %v1787
    %v1790 = vmul.f32 %v1774, %v1788
    %v1792 = vlaneseq
    %v1793 = vshrl.u32 %v1792, 7
    %v1794 = vsub.s32 0, %v1793
    %v1795 = vrot.slane %v1762, %v1794
    %v1797 = vmul.f32 %v1789, %v1795
    %v1798 = vmul.f32 %v1790, %v1795
    %v1800 = vlaneseq
    %v1801 = vshrl.u32 %v1800, 7
    %v1802 = vsub.s32 0, %v1801
    %v1803 = vrot.slane %v1763, %v1802
    %v1805 = vadd.f32 %v1797, %v1803
    %v1806 = vadd.f32 %v1798, %v1803
    %v1807 = vld [vmem:[%s9] sm:$0xff]
    %v1808 = vld [vmem:[%s9 + $0x8] sm:$0xff]
    %v1809 = vld [vmem:[%s9 + $0x10] sm:$0xff]
    %v1810 = vld [vmem:[%s9 + $0x18] sm:$0xff]
    %v1811 = vld [vmem:[%s10] sm:$0x1]
    %v1813 = vlaneseq
    %v1814 = vshrl.u32 %v1813, 7
    %v1815 = vsub.s32 0, %v1814
    %v1816 = vrot.slane %v1811, %v1815
    %v1819 = vsel %vm73, %v1805, 0
    %v1822 = vsel %vm73, %v1806, 0
    %1824 = vmatprep.subr.mxu0 0.0
    %1825 = vmatpush1.msra.mxu0 0.0
    %1826 = vmatprep.subr.mxu0 0.0
    %1827 = vmatpush1.msra.mxu0 0.0
    %1828 = vmatprep.subr.mxu0 0.0
    %1829 = vmatpush1.msra.mxu0 0.0
    %1830 = vmatprep.subr.mxu0 0.0
    %1831 = vmatpush1.msra.mxu0 0.0
    %1832 = vmatprep.subr.mxu0 0.0
    %1833 = vmatpush1.msra.mxu0 0.0
    %1834 = vmatprep.subr.mxu0 0.0
    %1835 = vmatpush1.msra.mxu0 0.0
    %1836 = vmatprep.subr.mxu0 0.0
    %1837 = vmatpush1.msra.mxu0 0.0
    %1838 = vmatprep.subr.mxu0 0.0
    %1839 = vmatpush1.msra.mxu0 0.0
    %1840 = vmatprep.subr.mxu0 0.0
    %1841 = vmatpush1.msra.mxu0 0.0
    %1842 = vmatprep.subr.mxu0 0.0
    %1843 = vmatpush1.msra.mxu0 0.0
    %1844 = vmatprep.subr.mxu0 0.0
    %1845 = vmatpush1.msra.mxu0 0.0
    %1846 = vmatprep.subr.mxu0 0.0
    %1847 = vmatpush1.msra.mxu0 0.0
    %1848 = vmatprep.subr.mxu0 0.0
    %1849 = vmatpush1.msra.mxu0 %v1810
    %1850 = vmatprep.subr.mxu0 0.0
    %1851 = vmatpush1.msra.mxu0 %v1809
    %1852 = vmatprep.subr.mxu0 0.0
    %1853 = vmatpush1.msra.mxu0 %v1808
    %1854 = vmatprep.subr.mxu0 0.0
    %1855 = vmatpush1.msra.mxu0 %v1807
    %1856 = vmatprep.subr.mxu0 0.0
    %1857 = vmatpush2.msra.mxu0 0.0
    %1858 = vmatprep.subr.mxu0 0.0
    %1859 = vmatpush2.msra.mxu0 0.0
    %1860 = vmatprep.subr.mxu0 0.0
    %1861 = vmatpush2.msra.mxu0 0.0
    %1862 = vmatprep.subr.mxu0 0.0
    %1863 = vmatpush2.msra.mxu0 0.0
    %1864 = vmatprep.subr.mxu0 0.0
    %1865 = vmatpush2.msra.mxu0 0.0
    %1866 = vmatprep.subr.mxu0 0.0
    %1867 = vmatpush2.msra.mxu0 0.0
    %1868 = vmatprep.subr.mxu0 0.0
    %1869 = vmatpush2.msra.mxu0 0.0
    %1870 = vmatprep.subr.mxu0 0.0
    %1871 = vmatpush2.msra.mxu0 0.0
    %1872 = vmatprep.subr.mxu0 0.0
    %1873 = vmatpush2.msra.mxu0 0.0
    %1874 = vmatprep.subr.mxu0 0.0
    %1875 = vmatpush2.msra.mxu0 0.0
    %1876 = vmatprep.subr.mxu0 0.0
    %1877 = vmatpush2.msra.mxu0 0.0
    %1878 = vmatprep.subr.mxu0 0.0
    %1879 = vmatpush2.msra.mxu0 0.0
    %1880 = vmatprep.subr.mxu0 0.0
    %1881 = vmatpush2.msra.mxu0 0.0
    %1882 = vmatprep.subr.mxu0 0.0
    %1883 = vmatpush2.msra.mxu0 0.0
    %1884 = vmatprep.subr.mxu0 0.0
    %1885 = vmatpush2.msra.mxu0 0.0
    %1886 = vmatprep.subr.mxu0 0.0
    %1887 = vmatpush2.msra.mxu0 0.0
    %1888 = vmatprep.mubr.f32.mxu0 0.0
    %1889 = vmatmul.mubr.f32.gmra.mxu0 %v1819
    %v1890 = vpop.f32.mrf.mxu0
    %v1891 = vadd.f32 %v1816, %v1890
    %v1892 = vpop.f32.mrf.mxu0
    %1893 = vmatprep.mubr.f32.mxu0 0.0
    %1894 = vmatmul.mubr.f32.gmra.mxu0 %v1822
    %v1895 = vpop.f32.mrf.mxu0
    %v1896 = vadd.f32 %v1816, %v1895
    %v1897 = vpop.f32.mrf.mxu0
    %1898 = vdwg.mxu0
    %v1899 = vmax.f32 %v1891, 0.0
    %v1900 = vmax.f32 %v1896, 0.0
    %v1901 = vld [vmem:[%s11] sm:$0xff]
    %v1902 = vld [vmem:[%s11 + $0x8] sm:$0xff]
    %v1903 = vld [vmem:[%s11 + $0x10] sm:$0xff]
    %v1904 = vld [vmem:[%s11 + $0x18] sm:$0xff]
    %v1905 = vld [vmem:[%s11 + $0x20] sm:$0xff]
    %v1906 = vld [vmem:[%s11 + $0x28] sm:$0xff]
    %v1907 = vld [vmem:[%s11 + $0x30] sm:$0xff]
    %v1908 = vld [vmem:[%s11 + $0x38] sm:$0xff]
    %v1909 = vld [vmem:[%s11 + $0x40] sm:$0xff]
    %v1910 = vld [vmem:[%s11 + $0x48] sm:$0xff]
    %v1911 = vld [vmem:[%s11 + $0x50] sm:$0xff]
    %v1912 = vld [vmem:[%s11 + $0x58] sm:$0xff]
    %v1913 = vld [vmem:[%s11 + $0x60] sm:$0xff]
    %v1914 = vld [vmem:[%s11 + $0x68] sm:$0xff]
    %v1915 = vld [vmem:[%s11 + $0x70] sm:$0xff]
    %v1916 = vld [vmem:[%s11 + $0x78] sm:$0xff]
    %v1917 = vld [vmem:[%s12] sm:$0x1]
    %v1919 = vlaneseq
    %v1920 = vshrl.u32 %v1919, 7
    %v1921 = vsub.s32 0, %v1920
    %v1922 = vrot.slane %v1917, %v1921
    %1924 = vmatprep.subr.mxu0 0.0
    %1925 = vmatpush1.msra.mxu0 %v1916
    %1926 = vmatprep.subr.mxu0 0.0
    %1927 = vmatpush1.msra.mxu0 %v1915
    %1928 = vmatprep.subr.mxu0 0.0
    %1929 = vmatpush1.msra.mxu0 %v1914
    %1930 = vmatprep.subr.mxu0 0.0
    %1931 = vmatpush1.msra.mxu0 %v1913
    %1932 = vmatprep.subr.mxu0 0.0
    %1933 = vmatpush1.msra.mxu0 %v1912
    %1934 = vmatprep.subr.mxu0 0.0
    %1935 = vmatpush1.msra.mxu0 %v1911
    %1936 = vmatprep.subr.mxu0 0.0
    %1937 = vmatpush1.msra.mxu0 %v1910
    %1938 = vmatprep.subr.mxu0 0.0
    %1939 = vmatpush1.msra.mxu0 %v1909
    %1940 = vmatprep.subr.mxu0 0.0
    %1941 = vmatpush1.msra.mxu0 %v1908
    %1942 = vmatprep.subr.mxu0 0.0
    %1943 = vmatpush1.msra.mxu0 %v1907
    %1944 = vmatprep.subr.mxu0 0.0
    %1945 = vmatpush1.msra.mxu0 %v1906
    %1946 = vmatprep.subr.mxu0 0.0
    %1947 = vmatpush1.msra.mxu0 %v1905
    %1948 = vmatprep.subr.mxu0 0.0
    %1949 = vmatpush1.msra.mxu0 %v1904
    %1950 = vmatprep.subr.mxu0 0.0
    %1951 = vmatpush1.msra.mxu0 %v1903
    %1952 = vmatprep.subr.mxu0 0.0
    %1953 = vmatpush1.msra.mxu0 %v1902
    %1954 = vmatprep.subr.mxu0 0.0
    %1955 = vmatpush1.msra.mxu0 %v1901
    %1956 = vmatprep.subr.mxu0 0.0
    %1957 = vmatpush2.msra.mxu0 0.0
    %1958 = vmatprep.subr.mxu0 0.0
    %1959 = vmatpush2.msra.mxu0 0.0
    %1960 = vmatprep.subr.mxu0 0.0
    %1961 = vmatpush2.msra.mxu0 0.0
    %1962 = vmatprep.subr.mxu0 0.0
    %1963 = vmatpush2.msra.mxu0 0.0
    %1964 = vmatprep.subr.mxu0 0.0
    %1965 = vmatpush2.msra.mxu0 0.0
    %1966 = vmatprep.subr.mxu0 0.0
    %1967 = vmatpush2.msra.mxu0 0.0
    %1968 = vmatprep.subr.mxu0 0.0
    %1969 = vmatpush2.msra.mxu0 0.0
    %1970 = vmatprep.subr.mxu0 0.0
    %1971 = vmatpush2.msra.mxu0 0.0
    %1972 = vmatprep.subr.mxu0 0.0
    %1973 = vmatpush2.msra.mxu0 0.0
    %1974 = vmatprep.subr.mxu0 0.0
    %1975 = vmatpush2.msra.mxu0 0.0
    %1976 = vmatprep.subr.mxu0 0.0
    %1977 = vmatpush2.msra.mxu0 0.0
    %1978 = vmatprep.subr.mxu0 0.0
    %1979 = vmatpush2.msra.mxu0 0.0
    %1980 = vmatprep.subr.mxu0 0.0
    %1981 = vmatpush2.msra.mxu0 0.0
    %1982 = vmatprep.subr.mxu0 0.0
    %1983 = vmatpush2.msra.mxu0 0.0
    %1984 = vmatprep.subr.mxu0 0.0
    %1985 = vmatpush2.msra.mxu0 0.0
    %1986 = vmatprep.subr.mxu0 0.0
    %1987 = vmatpush2.msra.mxu0 0.0
    %1988 = vmatprep.mubr.f32.mxu0 0.0
    %1989 = vmatmul.mubr.f32.gmra.mxu0 %v1899
    %v1990 = vpop.f32.mrf.mxu0
    %v1991 = vadd.f32 %v1922, %v1990
    %v1992 = vpop.f32.mrf.mxu0
    %1993 = vmatprep.mubr.f32.mxu0 0.0
    %1994 = vmatmul.mubr.f32.gmra.mxu0 %v1900
    %v1995 = vpop.f32.mrf.mxu0
    %v1996 = vadd.f32 %v1922, %v1995
    %v1997 = vpop.f32.mrf.mxu0
    %1998 = vdwg.mxu0
    %v1999 = vadd.f32 %v1991, %v1805
    %v2000 = vadd.f32 %v1996, %v1806
    %v2001 = vld [vmem:[%s13] sm:$0x1]
    %v2002 = vld [vmem:[%s14] sm:$0x1]
    %v2003 = vsel %vm73, %v1999, 0.0
    %2004 = vadd.xlane.f32.xlu0 %v2003
    %v2005 = vpop.xlane.xlu0 %2004
    %v2006 = vsel %vm73, %v2000, 0.0
    %2007 = vadd.xlane.f32.xlu0 %v2006
    %v2008 = vpop.xlane.xlu0 %2007
    %v2009 = vmul.f32 %v2005, %v1770
    %v2010 = vmul.f32 %v2008, %v1770
    %v2011 = vsub.f32 %v1999, %v2009
    %v2012 = vsub.f32 %v2000, %v2010
    %v2013 = vmul.f32 %v2011, %v2011
    %v2014 = vmul.f32 %v2012, %v2012
    %v2015 = vsel %vm73, %v2013, 0.0
    %2016 = vadd.xlane.f32.xlu0 %v2015
    %v2017 = vpop.xlane.xlu0 %2016
    %v2018 = vsel %vm73, %v2014, 0.0
    %2019 = vadd.xlane.f32.xlu0 %v2018
    %v2020 = vpop.xlane.xlu0 %2019
    %v2021 = vmul.f32 %v2017, %v1770
    %v2022 = vmul.f32 %v2020, %v1770
    %v2023 = vadd.f32 %v2021, 1e-05
    %v2024 = vadd.f32 %v2022, 1e-05
    %v2025 = vrsqrt.pop %v2023
    %v2026 = vrsqrt.pop %v2024
    %v2027 = vmul.f32 %v2011, %v2025
    %v2028 = vmul.f32 %v2012, %v2026
    %v2030 = vlaneseq
    %v2031 = vshrl.u32 %v2030, 7
    %v2032 = vsub.s32 0, %v2031
    %v2033 = vrot.slane %v2001, %v2032
    %v2035 = vmul.f32 %v2027, %v2033
    %v2036 = vmul.f32 %v2028, %v2033
    %v2038 = vlaneseq
    %v2039 = vshrl.u32 %v2038, 7
    %v2040 = vsub.s32 0, %v2039
    %v2041 = vrot.slane %v2002, %v2040
    %v2043 = vadd.f32 %v2035, %v2041
    %v2044 = vadd.f32 %v2036, %v2041
    %s2045 = scalar_lea.vmem %s2, 32
    %v2046 = vld [vmem:[%s2045] sm:$0xff]
    %v2047 = vld [vmem:[%s2045 + $0x8] sm:$0xff]
    %v2048 = vld [vmem:[%s2045 + $0x10] sm:$0xff]
    %v2049 = vld [vmem:[%s2045 + $0x18] sm:$0xff]
    %v2051 = vsel %vm73, %v2043, 0
    %v2054 = vsel %vm73, %v2044, 0
    %2056 = vmatprep.subr.mxu0 0.0
    %2057 = vmatpush1.msra.mxu0 0.0
    %2058 = vmatprep.subr.mxu0 0.0
    %2059 = vmatpush1.msra.mxu0 0.0
    %2060 = vmatprep.subr.mxu0 0.0
    %2061 = vmatpush1.msra.mxu0 0.0
    %2062 = vmatprep.subr.mxu0 0.0
    %2063 = vmatpush1.msra.mxu0 0.0
    %2064 = vmatprep.subr.mxu0 0.0
    %2065 = vmatpush1.msra.mxu0 0.0
    %2066 = vmatprep.subr.mxu0 0.0
    %2067 = vmatpush1.msra.mxu0 0.0
    %2068 = vmatprep.subr.mxu0 0.0
    %2069 = vmatpush1.msra.mxu0 0.0
    %2070 = vmatprep.subr.mxu0 0.0
    %2071 = vmatpush1.msra.mxu0 0.0
    %2072 = vmatprep.subr.mxu0 0.0
    %2073 = vmatpush1.msra.mxu0 0.0
    %2074 = vmatprep.subr.mxu0 0.0
    %2075 = vmatpush1.msra.mxu0 0.0
    %2076 = vmatprep.subr.mxu0 0.0
    %2077 = vmatpush1.msra.mxu0 0.0
    %2078 = vmatprep.subr.mxu0 0.0
    %2079 = vmatpush1.msra.mxu0 0.0
    %2080 = vmatprep.subr.mxu0 0.0
    %2081 = vmatpush1.msra.mxu0 %v2049
    %2082 = vmatprep.subr.mxu0 0.0
    %2083 = vmatpush1.msra.mxu0 %v2048
    %2084 = vmatprep.subr.mxu0 0.0
    %2085 = vmatpush1.msra.mxu0 %v2047
    %2086 = vmatprep.subr.mxu0 0.0
    %2087 = vmatpush1.msra.mxu0 %v2046
    %2088 = vmatprep.subr.mxu0 0.0
    %2089 = vmatpush2.msra.mxu0 0.0
    %2090 = vmatprep.subr.mxu0 0.0
    %2091 = vmatpush2.msra.mxu0 0.0
    %2092 = vmatprep.subr.mxu0 0.0
    %2093 = vmatpush2.msra.mxu0 0.0
    %2094 = vmatprep.subr.mxu0 0.0
    %2095 = vmatpush2.msra.mxu0 0.0
    %2096 = vmatprep.subr.mxu0 0.0
    %2097 = vmatpush2.msra.mxu0 0.0
    %2098 = vmatprep.subr.mxu0 0.0
    %2099 = vmatpush2.msra.mxu0 0.0
    %2100 = vmatprep.subr.mxu0 0.0
    %2101 = vmatpush2.msra.mxu0 0.0
    %2102 = vmatprep.subr.mxu0 0.0
    %2103 = vmatpush2.msra.mxu0 0.0
    %2104 = vmatprep.subr.mxu0 0.0
    %2105 = vmatpush2.msra.mxu0 0.0
    %2106 = vmatprep.subr.mxu0 0.0
    %2107 = vmatpush2.msra.mxu0 0.0
    %2108 = vmatprep.subr.mxu0 0.0
    %2109 = vmatpush2.msra.mxu0 0.0
    %2110 = vmatprep.subr.mxu0 0.0
    %2111 = vmatpush2.msra.mxu0 0.0
    %2112 = vmatprep.subr.mxu0 0.0
    %2113 = vmatpush2.msra.mxu0 0.0
    %2114 = vmatprep.subr.mxu0 0.0
    %2115 = vmatpush2.msra.mxu0 0.0
    %2116 = vmatprep.subr.mxu0 0.0
    %2117 = vmatpush2.msra.mxu0 0.0
    %2118 = vmatprep.subr.mxu0 0.0
    %2119 = vmatpush2.msra.mxu0 0.0
    %2120 = vmatprep.mubr.f32.mxu0 0.0
    %2121 = vmatmul.mubr.f32.gmra.mxu0 %v2051
    %v2122 = vpop.f32.mrf.mxu0
    %v2123 = vadd.f32 0.0, %v2122
    %v2124 = vpop.f32.mrf.mxu0
    %2125 = vmatprep.mubr.f32.mxu0 0.0
    %2126 = vmatmul.mubr.f32.gmra.mxu0 %v2054
    %v2127 = vpop.f32.mrf.mxu0
    %v2128 = vadd.f32 0.0, %v2127
    %v2129 = vpop.f32.mrf.mxu0
    %2130 = vdwg.mxu0
    %v2131 = vmul.f32 %v2123, 0.17677669
    %v2132 = vmul.f32 %v2128, 0.17677669
    %s2133 = scalar_lea.vmem %s3, 32
    %v2134 = vld [vmem:[%s2133] sm:$0xff]
    %v2135 = vld [vmem:[%s2133 + $0x8] sm:$0xff]
    %v2136 = vld [vmem:[%s2133 + $0x10] sm:$0xff]
    %v2137 = vld [vmem:[%s2133 + $0x18] sm:$0xff]
    %2138 = vmatprep.subr.mxu0 0.0
    %2139 = vmatpush1.msra.mxu0 0.0
    %2140 = vmatprep.subr.mxu0 0.0
    %2141 = vmatpush1.msra.mxu0 0.0
    %2142 = vmatprep.subr.mxu0 0.0
    %2143 = vmatpush1.msra.mxu0 0.0
    %2144 = vmatprep.subr.mxu0 0.0
    %2145 = vmatpush1.msra.mxu0 0.0
    %2146 = vmatprep.subr.mxu0 0.0
    %2147 = vmatpush1.msra.mxu0 0.0
    %2148 = vmatprep.subr.mxu0 0.0
    %2149 = vmatpush1.msra.mxu0 0.0
    %2150 = vmatprep.subr.mxu0 0.0
    %2151 = vmatpush1.msra.mxu0 0.0
    %2152 = vmatprep.subr.mxu0 0.0
    %2153 = vmatpush1.msra.mxu0 0.0
    %2154 = vmatprep.subr.mxu0 0.0
    %2155 = vmatpush1.msra.mxu0 0.0
    %2156 = vmatprep.subr.mxu0 0.0
    %2157 = vmatpush1.msra.mxu0 0.0
    %2158 = vmatprep.subr.mxu0 0.0
    %2159 = vmatpush1.msra.mxu0 0.0
    %2160 = vmatprep.subr.mxu0 0.0
    %2161 = vmatpush1.msra.mxu0 0.0
    %2162 = vmatprep.subr.mxu0 0.0
    %2163 = vmatpush1.msra.mxu0 %v2137
    %2164 = vmatprep.subr.mxu0 0.0
    %2165 = vmatpush1.msra.mxu0 %v2136
    %2166 = vmatprep.subr.mxu0 0.0
    %2167 = vmatpush1.msra.mxu0 %v2135
    %2168 = vmatprep.subr.mxu0 0.0
    %2169 = vmatpush1.msra.mxu0 %v2134
    %2170 = vmatprep.subr.mxu0 0.0
    %2171 = vmatpush2.msra.mxu0 0.0
    %2172 = vmatprep.subr.mxu0 0.0
    %2173 = vmatpush2.msra.mxu0 0.0
    %2174 = vmatprep.subr.mxu0 0.0
    %2175 = vmatpush2.msra.mxu0 0.0
    %2176 = vmatprep.subr.mxu0 0.0
    %2177 = vmatpush2.msra.mxu0 0.0
    %2178 = vmatprep.subr.mxu0 0.0
    %2179 = vmatpush2.msra.mxu0 0.0
    %2180 = vmatprep.subr.mxu0 0.0
    %2181 = vmatpush2.msra.mxu0 0.0
    %2182 = vmatprep.subr.mxu0 0.0
    %2183 = vmatpush2.msra.mxu0 0.0
    %2184 = vmatprep.subr.mxu0 0.0
    %2185 = vmatpush2.msra.mxu0 0.0
    %2186 = vmatprep.subr.mxu0 0.0
    %2187 = vmatpush2.msra.mxu0 0.0
    %2188 = vmatprep.subr.mxu0 0.0
    %2189 = vmatpush2.msra.mxu0 0.0
    %2190 = vmatprep.subr.mxu0 0.0
    %2191 = vmatpush2.msra.mxu0 0.0
    %2192 = vmatprep.subr.mxu0 0.0
    %2193 = vmatpush2.msra.mxu0 0.0
    %2194 = vmatprep.subr.mxu0 0.0
    %2195 = vmatpush2.msra.mxu0 0.0
    %2196 = vmatprep.subr.mxu0 0.0
    %2197 = vmatpush2.msra.mxu0 0.0
    %2198 = vmatprep.subr.mxu0 0.0
    %2199 = vmatpush2.msra.mxu0 0.0
    %2200 = vmatprep.subr.mxu0 0.0
    %2201 = vmatpush2.msra.mxu0 0.0
    %2202 = vmatprep.mubr.f32.mxu0 0.0
    %2203 = vmatmul.mubr.f32.gmra.mxu0 %v2051
    %v2204 = vpop.f32.mrf.mxu0
    %v2205 = vadd.f32 0.0, %v2204
    %v2206 = vpop.f32.mrf.mxu0
    %2207 = vmatprep.mubr.f32.mxu0 0.0
    %2208 = vmatmul.mubr.f32.gmra.mxu0 %v2054
    %v2209 = vpop.f32.mrf.mxu0
    %v2210 = vadd.f32 0.0, %v2209
    %v2211 = vpop.f32.mrf.mxu0
    %2212 = vdwg.mxu0
    %s2213 = scalar_lea.vmem %s4, 32
    %v2214 = vld [vmem:[%s2213] sm:$0xff]
    %v2215 = vld [vmem:[%s2213 + $0x8] sm:$0xff]
    %v2216 = vld [vmem:[%s2213 + $0x10] sm:$0xff]
    %v2217 = vld [vmem:[%s2213 + $0x18] sm:$0xff]
    %2218 = vmatprep.subr.mxu0 0.0
    %2219 = vmatpush1.msra.mxu0 0.0
    %2220 = vmatprep.subr.mxu0 0.0
    %2221 = vmatpush1.msra.mxu0 0.0
    %2222 = vmatprep.subr.mxu0 0.0
    %2223 = vmatpush1.msra.mxu0 0.0
    %2224 = vmatprep.subr.mxu0 0.0
    %2225 = vmatpush1.msra.mxu0 0.0
    %2226 = vmatprep.subr.mxu0 0.0
    %2227 = vmatpush1.msra.mxu0 0.0
    %2228 = vmatprep.subr.mxu0 0.0
    %2229 = vmatpush1.msra.mxu0 0.0
    %2230 = vmatprep.subr.mxu0 0.0
    %2231 = vmatpush1.msra.mxu0 0.0
    %2232 = vmatprep.subr.mxu0 0.0
    %2233 = vmatpush1.msra.mxu0 0.0
    %2234 = vmatprep.subr.mxu0 0.0
    %2235 = vmatpush1.msra.mxu0 0.0
    %2236 = vmatprep.subr.mxu0 0.0
    %2237 = vmatpush1.msra.mxu0 0.0
    %2238 = vmatprep.subr.mxu0 0.0
    %2239 = vmatpush1.msra.mxu0 0.0
    %2240 = vmatprep.subr.mxu0 0.0
    %2241 = vmatpush1.msra.mxu0 0.0
    %2242 = vmatprep.subr.mxu0 0.0
    %2243 = vmatpush1.msra.mxu0 %v2217
    %2244 = vmatprep.subr.mxu0 0.0
    %2245 = vmatpush1.msra.mxu0 %v2216
    %2246 = vmatprep.subr.mxu0 0.0
    %2247 = vmatpush1.msra.mxu0 %v2215
    %2248 = vmatprep.subr.mxu0 0.0
    %2249 = vmatpush1.msra.mxu0 %v2214
    %2250 = vmatprep.subr.mxu0 0.0
    %2251 = vmatpush2.msra.mxu0 0.0
    %2252 = vmatprep.subr.mxu0 0.0
    %2253 = vmatpush2.msra.mxu0 0.0
    %2254 = vmatprep.subr.mxu0 0.0
    %2255 = vmatpush2.msra.mxu0 0.0
    %2256 = vmatprep.subr.mxu0 0.0
    %2257 = vmatpush2.msra.mxu0 0.0
    %2258 = vmatprep.subr.mxu0 0.0
    %2259 = vmatpush2.msra.mxu0 0.0
    %2260 = vmatprep.subr.mxu0 0.0
    %2261 = vmatpush2.msra.mxu0 0.0
    %2262 = vmatprep.subr.mxu0 0.0
    %2263 = vmatpush2.msra.mxu0 0.0
    %2264 = vmatprep.subr.mxu0 0.0
    %2265 = vmatpush2.msra.mxu0 0.0
    %2266 = vmatprep.subr.mxu0 0.0
    %2267 = vmatpush2.msra.mxu0 0.0
    %2268 = vmatprep.subr.mxu0 0.0
    %2269 = vmatpush2.msra.mxu0 0.0
    %2270 = vmatprep.subr.mxu0 0.0
    %2271 = vmatpush2.msra.mxu0 0.0
    %2272 = vmatprep.subr.mxu0 0.0
    %2273 = vmatpush2.msra.mxu0 0.0
    %2274 = vmatprep.subr.mxu0 0.0
    %2275 = vmatpush2.msra.mxu0 0.0
    %2276 = vmatprep.subr.mxu0 0.0
    %2277 = vmatpush2.msra.mxu0 0.0
    %2278 = vmatprep.subr.mxu0 0.0
    %2279 = vmatpush2.msra.mxu0 0.0
    %2280 = vmatprep.subr.mxu0 0.0
    %2281 = vmatpush2.msra.mxu0 0.0
    %2282 = vmatprep.mubr.f32.mxu0 0.0
    %2283 = vmatmul.mubr.f32.gmra.mxu0 %v2051
    %v2284 = vpop.f32.mrf.mxu0
    %v2285 = vadd.f32 0.0, %v2284
    %v2286 = vpop.f32.mrf.mxu0
    %2287 = vmatprep.mubr.f32.mxu0 0.0
    %2288 = vmatmul.mubr.f32.gmra.mxu0 %v2054
    %v2289 = vpop.f32.mrf.mxu0
    %v2290 = vadd.f32 0.0, %v2289
    %v2291 = vpop.f32.mrf.mxu0
    %2292 = vdwg.mxu0
    %v2294 = vsel %vm315, %v2131, 0
    %v2297 = vsel %vm315, %v2205, 0
    %2299 = vmatprep.subr.mxu0 0.0
    %2300 = vmatpush1.xpose.msra.mxu0 0.0
    %2301 = vmatprep.subr.mxu0 0.0
    %2302 = vmatpush1.xpose.msra.mxu0 0.0
    %2303 = vmatprep.subr.mxu0 0.0
    %2304 = vmatpush1.xpose.msra.mxu0 0.0
    %2305 = vmatprep.subr.mxu0 0.0
    %2306 = vmatpush1.xpose.msra.mxu0 0.0
    %2307 = vmatprep.subr.mxu0 0.0
    %2308 = vmatpush1.xpose.msra.mxu0 0.0
    %2309 = vmatprep.subr.mxu0 0.0
    %2310 = vmatpush1.xpose.msra.mxu0 0.0
    %2311 = vmatprep.subr.mxu0 0.0
    %2312 = vmatpush1.xpose.msra.mxu0 0.0
    %2313 = vmatprep.subr.mxu0 0.0
    %2314 = vmatpush1.xpose.msra.mxu0 0.0
    %2315 = vmatprep.subr.mxu0 0.0
    %2316 = vmatpush1.xpose.msra.mxu0 0.0
    %2317 = vmatprep.subr.mxu0 0.0
    %2318 = vmatpush1.xpose.msra.mxu0 0.0
    %2319 = vmatprep.subr.mxu0 0.0
    %2320 = vmatpush1.xpose.msra.mxu0 0.0
    %2321 = vmatprep.subr.mxu0 0.0
    %2322 = vmatpush1.xpose.msra.mxu0 0.0
    %2323 = vmatprep.subr.mxu0 0.0
    %2324 = vmatpush1.xpose.msra.mxu0 0.0
    %2325 = vmatprep.subr.mxu0 0.0
    %2326 = vmatpush1.xpose.msra.mxu0 0.0
    %2327 = vmatprep.subr.mxu0 0.0
    %2328 = vmatpush1.xpose.msra.mxu0 0.0
    %2329 = vmatprep.subr.mxu0 0.0
    %2330 = vmatpush1.xpose.msra.mxu0 %v2297
    %2331 = vmatprep.subr.mxu0 0.0
    %2332 = vmatpush2.xpose.msra.mxu0 0.0
    %2333 = vmatprep.subr.mxu0 0.0
    %2334 = vmatpush2.xpose.msra.mxu0 0.0
    %2335 = vmatprep.subr.mxu0 0.0
    %2336 = vmatpush2.xpose.msra.mxu0 0.0
    %2337 = vmatprep.subr.mxu0 0.0
    %2338 = vmatpush2.xpose.msra.mxu0 0.0
    %2339 = vmatprep.subr.mxu0 0.0
    %2340 = vmatpush2.xpose.msra.mxu0 0.0
    %2341 = vmatprep.subr.mxu0 0.0
    %2342 = vmatpush2.xpose.msra.mxu0 0.0
    %2343 = vmatprep.subr.mxu0 0.0
    %2344 = vmatpush2.xpose.msra.mxu0 0.0
    %2345 = vmatprep.subr.mxu0 0.0
    %2346 = vmatpush2.xpose.msra.mxu0 0.0
    %2347 = vmatprep.subr.mxu0 0.0
    %2348 = vmatpush2.xpose.msra.mxu0 0.0
    %2349 = vmatprep.subr.mxu0 0.0
    %2350 = vmatpush2.xpose.msra.mxu0 0.0
    %2351 = vmatprep.subr.mxu0 0.0
    %2352 = vmatpush2.xpose.msra.mxu0 0.0
    %2353 = vmatprep.subr.mxu0 0.0
    %2354 = vmatpush2.xpose.msra.mxu0 0.0
    %2355 = vmatprep.subr.mxu0 0.0
    %2356 = vmatpush2.xpose.msra.mxu0 0.0
    %2357 = vmatprep.subr.mxu0 0.0
    %2358 = vmatpush2.xpose.msra.mxu0 0.0
    %2359 = vmatprep.subr.mxu0 0.0
    %2360 = vmatpush2.xpose.msra.mxu0 0.0
    %2361 = vmatprep.subr.mxu0 0.0
    %2362 = vmatpush2.xpose.msra.mxu0 0.0
    %2363 = vmatprep.mubr.f32.mxu0 0.0
    %2364 = vmatmul.mubr.f32.gmra.mxu0 %v2294
    %v2365 = vpop.f32.mrf.mxu0
    %v2366 = vadd.f32 0.0, %v2365
    %v2367 = vpop.f32.mrf.mxu0
    %2368 = vdwg.mxu0
    %v2370 = vsel %vm315, %v2132, 0
    %v2373 = vsel %vm315, %v2210, 0
    %2375 = vmatprep.subr.mxu0 0.0
    %2376 = vmatpush1.xpose.msra.mxu0 0.0
    %2377 = vmatprep.subr.mxu0 0.0
    %2378 = vmatpush1.xpose.msra.mxu0 0.0
    %2379 = vmatprep.subr.mxu0 0.0
    %2380 = vmatpush1.xpose.msra.mxu0 0.0
    %2381 = vmatprep.subr.mxu0 0.0
    %2382 = vmatpush1.xpose.msra.mxu0 0.0
    %2383 = vmatprep.subr.mxu0 0.0
    %2384 = vmatpush1.xpose.msra.mxu0 0.0
    %2385 = vmatprep.subr.mxu0 0.0
    %2386 = vmatpush1.xpose.msra.mxu0 0.0
    %2387 = vmatprep.subr.mxu0 0.0
    %2388 = vmatpush1.xpose.msra.mxu0 0.0
    %2389 = vmatprep.subr.mxu0 0.0
    %2390 = vmatpush1.xpose.msra.mxu0 0.0
    %2391 = vmatprep.subr.mxu0 0.0
    %2392 = vmatpush1.xpose.msra.mxu0 0.0
    %2393 = vmatprep.subr.mxu0 0.0
    %2394 = vmatpush1.xpose.msra.mxu0 0.0
    %2395 = vmatprep.subr.mxu0 0.0
    %2396 = vmatpush1.xpose.msra.mxu0 0.0
    %2397 = vmatprep.subr.mxu0 0.0
    %2398 = vmatpush1.xpose.msra.mxu0 0.0
    %2399 = vmatprep.subr.mxu0 0.0
    %2400 = vmatpush1.xpose.msra.mxu0 0.0
    %2401 = vmatprep.subr.mxu0 0.0
    %2402 = vmatpush1.xpose.msra.mxu0 0.0
    %2403 = vmatprep.subr.mxu0 0.0
    %2404 = vmatpush1.xpose.msra.mxu0 0.0
    %2405 = vmatprep.subr.mxu0 0.0
    %2406 = vmatpush1.xpose.msra.mxu0 %v2373
    %2407 = vmatprep.subr.mxu0 0.0
    %2408 = vmatpush2.xpose.msra.mxu0 0.0
    %2409 = vmatprep.subr.mxu0 0.0
    %2410 = vmatpush2.xpose.msra.mxu0 0.0
    %2411 = vmatprep.subr.mxu0 0.0
    %2412 = vmatpush2.xpose.msra.mxu0 0.0
    %2413 = vmatprep.subr.mxu0 0.0
    %2414 = vmatpush2.xpose.msra.mxu0 0.0
    %2415 = vmatprep.subr.mxu0 0.0
    %2416 = vmatpush2.xpose.msra.mxu0 0.0
    %2417 = vmatprep.subr.mxu0 0.0
    %2418 = vmatpush2.xpose.msra.mxu0 0.0
    %2419 = vmatprep.subr.mxu0 0.0
    %2420 = vmatpush2.xpose.msra.mxu0 0.0
    %2421 = vmatprep.subr.mxu0 0.0
    %2422 = vmatpush2.xpose.msra.mxu0 0.0
    %2423 = vmatprep.subr.mxu0 0.0
    %2424 = vmatpush2.xpose.msra.mxu0 0.0
    %2425 = vmatprep.subr.mxu0 0.0
    %2426 = vmatpush2.xpose.msra.mxu0 0.0
    %2427 = vmatprep.subr.mxu0 0.0
    %2428 = vmatpush2.xpose.msra.mxu0 0.0
    %2429 = vmatprep.subr.mxu0 0.0
    %2430 = vmatpush2.xpose.msra.mxu0 0.0
    %2431 = vmatprep.subr.mxu0 0.0
    %2432 = vmatpush2.xpose.msra.mxu0 0.0
    %2433 = vmatprep.subr.mxu0 0.0
    %2434 = vmatpush2.xpose.msra.mxu0 0.0
    %2435 = vmatprep.subr.mxu0 0.0
    %2436 = vmatpush2.xpose.msra.mxu0 0.0
    %2437 = vmatprep.subr.mxu0 0.0
    %2438 = vmatpush2.xpose.msra.mxu0 0.0
    %2439 = vmatprep.mubr.f32.mxu0 0.0
    %2440 = vmatmul.mubr.f32.gmra.mxu0 %v2370
    %v2441 = vpop.f32.mrf.mxu0
    %v2442 = vadd.f32 0.0, %v2441
    %v2443 = vpop.f32.mrf.mxu0
    %2444 = vdwg.mxu0
    %v2445 = vsel %vm67, -1e+20, %v2366
    %v2446 = vsel %vm68, -1e+20, %v2442
    %v2447 = vsel %vm315, %v2445, -inf
    %2448 = vmax.xlane.f32.xlu0 %v2447
    %v2449 = vpop.xlane.xlu0 %2448
    %v2450 = vsel %vm315, %v2446, -inf
    %2451 = vmax.xlane.f32.xlu0 %v2450
    %v2452 = vpop.xlane.xlu0 %2451
    %v2453 = vsub.f32 %v2445, %v2449
    %v2454 = vsub.f32 %v2446, %v2452
    %v2455 = vmul.f32 %v2453, 1.442695
    %v2456 = vpow.pop %v2455
    %v2457 = vmul.f32 %v2454, 1.442695
    %v2458 = vpow.pop %v2457
    %v2459 = vsel %vm315, %v2456, 0.0
    %2460 = vadd.xlane.f32.xlu0 %v2459
    %v2461 = vpop.xlane.xlu0 %2460
    %v2462 = vsel %vm315, %v2458, 0.0
    %2463 = vadd.xlane.f32.xlu0 %v2462
    %v2464 = vpop.xlane.xlu0 %2463
    %v2465 = vrcp.pop %v2461
    %v2466 = vrcp.pop %v2464
    %v2467 = vmul.f32 %v2456, %v2465
    %v2468 = vmul.f32 %v2458, %v2466
    %v2470 = vsel %vm315, %v2467, 0
    %2472 = vmatprep.subr.mxu0 0.0
    %2473 = vmatpush1.msra.mxu0 0.0
    %2474 = vmatprep.subr.mxu0 0.0
    %2475 = vmatpush1.msra.mxu0 0.0
    %2476 = vmatprep.subr.mxu0 0.0
    %2477 = vmatpush1.msra.mxu0 0.0
    %2478 = vmatprep.subr.mxu0 0.0
    %2479 = vmatpush1.msra.mxu0 0.0
    %2480 = vmatprep.subr.mxu0 0.0
    %2481 = vmatpush1.msra.mxu0 0.0
    %2482 = vmatprep.subr.mxu0 0.0
    %2483 = vmatpush1.msra.mxu0 0.0
    %2484 = vmatprep.subr.mxu0 0.0
    %2485 = vmatpush1.msra.mxu0 0.0
    %2486 = vmatprep.subr.mxu0 0.0
    %2487 = vmatpush1.msra.mxu0 0.0
    %2488 = vmatprep.subr.mxu0 0.0
    %2489 = vmatpush1.msra.mxu0 0.0
    %2490 = vmatprep.subr.mxu0 0.0
    %2491 = vmatpush1.msra.mxu0 0.0
    %2492 = vmatprep.subr.mxu0 0.0
    %2493 = vmatpush1.msra.mxu0 0.0
    %2494 = vmatprep.subr.mxu0 0.0
    %2495 = vmatpush1.msra.mxu0 0.0
    %2496 = vmatprep.subr.mxu0 0.0
    %2497 = vmatpush1.msra.mxu0 0.0
    %2498 = vmatprep.subr.mxu0 0.0
    %2499 = vmatpush1.msra.mxu0 0.0
    %2500 = vmatprep.subr.mxu0 0.0
    %2501 = vmatpush1.msra.mxu0 0.0
    %2502 = vmatprep.subr.mxu0 0.0
    %2503 = vmatpush1.msra.mxu0 %v2285
    %2504 = vmatprep.subr.mxu0 0.0
    %2505 = vmatpush2.msra.mxu0 0.0
    %2506 = vmatprep.subr.mxu0 0.0
    %2507 = vmatpush2.msra.mxu0 0.0
    %2508 = vmatprep.subr.mxu0 0.0
    %2509 = vmatpush2.msra.mxu0 0.0
    %2510 = vmatprep.subr.mxu0 0.0
    %2511 = vmatpush2.msra.mxu0 0.0
    %2512 = vmatprep.subr.mxu0 0.0
    %2513 = vmatpush2.msra.mxu0 0.0
    %2514 = vmatprep.subr.mxu0 0.0
    %2515 = vmatpush2.msra.mxu0 0.0
    %2516 = vmatprep.subr.mxu0 0.0
    %2517 = vmatpush2.msra.mxu0 0.0
    %2518 = vmatprep.subr.mxu0 0.0
    %2519 = vmatpush2.msra.mxu0 0.0
    %2520 = vmatprep.subr.mxu0 0.0
    %2521 = vmatpush2.msra.mxu0 0.0
    %2522 = vmatprep.subr.mxu0 0.0
    %2523 = vmatpush2.msra.mxu0 0.0
    %2524 = vmatprep.subr.mxu0 0.0
    %2525 = vmatpush2.msra.mxu0 0.0
    %2526 = vmatprep.subr.mxu0 0.0
    %2527 = vmatpush2.msra.mxu0 0.0
    %2528 = vmatprep.subr.mxu0 0.0
    %2529 = vmatpush2.msra.mxu0 0.0
    %2530 = vmatprep.subr.mxu0 0.0
    %2531 = vmatpush2.msra.mxu0 0.0
    %2532 = vmatprep.subr.mxu0 0.0
    %2533 = vmatpush2.msra.mxu0 0.0
    %2534 = vmatprep.subr.mxu0 0.0
    %2535 = vmatpush2.msra.mxu0 0.0
    %2536 = vmatprep.mubr.f32.mxu0 0.0
    %2537 = vmatmul.mubr.f32.gmra.mxu0 %v2470
    %v2538 = vpop.f32.mrf.mxu0
    %v2539 = vadd.f32 0.0, %v2538
    %v2540 = vpop.f32.mrf.mxu0
    %2541 = vdwg.mxu0
    %v2543 = vsel %vm315, %v2468, 0
    %2545 = vmatprep.subr.mxu0 0.0
    %2546 = vmatpush1.msra.mxu0 0.0
    %2547 = vmatprep.subr.mxu0 0.0
    %2548 = vmatpush1.msra.mxu0 0.0
    %2549 = vmatprep.subr.mxu0 0.0
    %2550 = vmatpush1.msra.mxu0 0.0
    %2551 = vmatprep.subr.mxu0 0.0
    %2552 = vmatpush1.msra.mxu0 0.0
    %2553 = vmatprep.subr.mxu0 0.0
    %2554 = vmatpush1.msra.mxu0 0.0
    %2555 = vmatprep.subr.mxu0 0.0
    %2556 = vmatpush1.msra.mxu0 0.0
    %2557 = vmatprep.subr.mxu0 0.0
    %2558 = vmatpush1.msra.mxu0 0.0
    %2559 = vmatprep.subr.mxu0 0.0
    %2560 = vmatpush1.msra.mxu0 0.0
    %2561 = vmatprep.subr.mxu0 0.0
    %2562 = vmatpush1.msra.mxu0 0.0
    %2563 = vmatprep.subr.mxu0 0.0
    %2564 = vmatpush1.msra.mxu0 0.0
    %2565 = vmatprep.subr.mxu0 0.0
    %2566 = vmatpush1.msra.mxu0 0.0
    %2567 = vmatprep.subr.mxu0 0.0
    %2568 = vmatpush1.msra.mxu0 0.0
    %2569 = vmatprep.subr.mxu0 0.0
    %2570 = vmatpush1.msra.mxu0 0.0
    %2571 = vmatprep.subr.mxu0 0.0
    %2572 = vmatpush1.msra.mxu0 0.0
    %2573 = vmatprep.subr.mxu0 0.0
    %2574 = vmatpush1.msra.mxu0 0.0
    %2575 = vmatprep.subr.mxu0 0.0
    %2576 = vmatpush1.msra.mxu0 %v2290
    %2577 = vmatprep.subr.mxu0 0.0
    %2578 = vmatpush2.msra.mxu0 0.0
    %2579 = vmatprep.subr.mxu0 0.0
    %2580 = vmatpush2.msra.mxu0 0.0
    %2581 = vmatprep.subr.mxu0 0.0
    %2582 = vmatpush2.msra.mxu0 0.0
    %2583 = vmatprep.subr.mxu0 0.0
    %2584 = vmatpush2.msra.mxu0 0.0
    %2585 = vmatprep.subr.mxu0 0.0
    %2586 = vmatpush2.msra.mxu0 0.0
    %2587 = vmatprep.subr.mxu0 0.0
    %2588 = vmatpush2.msra.mxu0 0.0
    %2589 = vmatprep.subr.mxu0 0.0
    %2590 = vmatpush2.msra.mxu0 0.0
    %2591 = vmatprep.subr.mxu0 0.0
    %2592 = vmatpush2.msra.mxu0 0.0
    %2593 = vmatprep.subr.mxu0 0.0
    %2594 = vmatpush2.msra.mxu0 0.0
    %2595 = vmatprep.subr.mxu0 0.0
    %2596 = vmatpush2.msra.mxu0 0.0
    %2597 = vmatprep.subr.mxu0 0.0
    %2598 = vmatpush2.msra.mxu0 0.0
    %2599 = vmatprep.subr.mxu0 0.0
    %2600 = vmatpush2.msra.mxu0 0.0
    %2601 = vmatprep.subr.mxu0 0.0
    %2602 = vmatpush2.msra.mxu0 0.0
    %2603 = vmatprep.subr.mxu0 0.0
    %2604 = vmatpush2.msra.mxu0 0.0
    %2605 = vmatprep.subr.mxu0 0.0
    %2606 = vmatpush2.msra.mxu0 0.0
    %2607 = vmatprep.subr.mxu0 0.0
    %2608 = vmatpush2.msra.mxu0 0.0
    %2609 = vmatprep.mubr.f32.mxu0 0.0
    %2610 = vmatmul.mubr.f32.gmra.mxu0 %v2543
    %v2611 = vpop.f32.mrf.mxu0
    %v2612 = vadd.f32 0.0, %v2611
    %v2613 = vpop.f32.mrf.mxu0
    %2614 = vdwg.mxu0
    %2615 = vrot.lane.b32.xlu0 %v2131, 120
    %v2616 = vpop.permute.xlu0 %2615
    %2617 = vrot.lane.b32.xlu0 %v2205, 120
    %v2618 = vpop.permute.xlu0 %2617
    %v2619 = vsel %vm315, %v2616, 0
    %v2621 = vsel %vm315, %v2618, 0
    %2623 = vmatprep.subr.mxu0 0.0
    %2624 = vmatpush1.xpose.msra.mxu0 0.0
    %2625 = vmatprep.subr.mxu0 0.0
    %2626 = vmatpush1.xpose.msra.mxu0 0.0
    %2627 = vmatprep.subr.mxu0 0.0
    %2628 = vmatpush1.xpose.msra.mxu0 0.0
    %2629 = vmatprep.subr.mxu0 0.0
    %2630 = vmatpush1.xpose.msra.mxu0 0.0
    %2631 = vmatprep.subr.mxu0 0.0
    %2632 = vmatpush1.xpose.msra.mxu0 0.0
    %2633 = vmatprep.subr.mxu0 0.0
    %2634 = vmatpush1.xpose.msra.mxu0 0.0
    %2635 = vmatprep.subr.mxu0 0.0
    %2636 = vmatpush1.xpose.msra.mxu0 0.0
    %2637 = vmatprep.subr.mxu0 0.0
    %2638 = vmatpush1.xpose.msra.mxu0 0.0
    %2639 = vmatprep.subr.mxu0 0.0
    %2640 = vmatpush1.xpose.msra.mxu0 0.0
    %2641 = vmatprep.subr.mxu0 0.0
    %2642 = vmatpush1.xpose.msra.mxu0 0.0
    %2643 = vmatprep.subr.mxu0 0.0
    %2644 = vmatpush1.xpose.msra.mxu0 0.0
    %2645 = vmatprep.subr.mxu0 0.0
    %2646 = vmatpush1.xpose.msra.mxu0 0.0
    %2647 = vmatprep.subr.mxu0 0.0
    %2648 = vmatpush1.xpose.msra.mxu0 0.0
    %2649 = vmatprep.subr.mxu0 0.0
    %2650 = vmatpush1.xpose.msra.mxu0 0.0
    %2651 = vmatprep.subr.mxu0 0.0
    %2652 = vmatpush1.xpose.msra.mxu0 0.0
    %2653 = vmatprep.subr.mxu0 0.0
    %2654 = vmatpush1.xpose.msra.mxu0 %v2621
    %2655 = vmatprep.subr.mxu0 0.0
    %2656 = vmatpush2.xpose.msra.mxu0 0.0
    %2657 = vmatprep.subr.mxu0 0.0
    %2658 = vmatpush2.xpose.msra.mxu0 0.0
    %2659 = vmatprep.subr.mxu0 0.0
    %2660 = vmatpush2.xpose.msra.mxu0 0.0
    %2661 = vmatprep.subr.mxu0 0.0
    %2662 = vmatpush2.xpose.msra.mxu0 0.0
    %2663 = vmatprep.subr.mxu0 0.0
    %2664 = vmatpush2.xpose.msra.mxu0 0.0
    %2665 = vmatprep.subr.mxu0 0.0
    %2666 = vmatpush2.xpose.msra.mxu0 0.0
    %2667 = vmatprep.subr.mxu0 0.0
    %2668 = vmatpush2.xpose.msra.mxu0 0.0
    %2669 = vmatprep.subr.mxu0 0.0
    %2670 = vmatpush2.xpose.msra.mxu0 0.0
    %2671 = vmatprep.subr.mxu0 0.0
    %2672 = vmatpush2.xpose.msra.mxu0 0.0
    %2673 = vmatprep.subr.mxu0 0.0
    %2674 = vmatpush2.xpose.msra.mxu0 0.0
    %2675 = vmatprep.subr.mxu0 0.0
    %2676 = vmatpush2.xpose.msra.mxu0 0.0
    %2677 = vmatprep.subr.mxu0 0.0
    %2678 = vmatpush2.xpose.msra.mxu0 0.0
    %2679 = vmatprep.subr.mxu0 0.0
    %2680 = vmatpush2.xpose.msra.mxu0 0.0
    %2681 = vmatprep.subr.mxu0 0.0
    %2682 = vmatpush2.xpose.msra.mxu0 0.0
    %2683 = vmatprep.subr.mxu0 0.0
    %2684 = vmatpush2.xpose.msra.mxu0 0.0
    %2685 = vmatprep.subr.mxu0 0.0
    %2686 = vmatpush2.xpose.msra.mxu0 0.0
    %2687 = vmatprep.mubr.f32.mxu0 0.0
    %2688 = vmatmul.mubr.f32.gmra.mxu0 %v2619
    %v2689 = vpop.f32.mrf.mxu0
    %v2690 = vadd.f32 0.0, %v2689
    %v2691 = vpop.f32.mrf.mxu0
    %2692 = vdwg.mxu0
    %2693 = vrot.lane.b32.xlu0 %v2132, 120
    %v2694 = vpop.permute.xlu0 %2693
    %2695 = vrot.lane.b32.xlu0 %v2210, 120
    %v2696 = vpop.permute.xlu0 %2695
    %v2697 = vsel %vm315, %v2694, 0
    %v2699 = vsel %vm315, %v2696, 0
    %2701 = vmatprep.subr.mxu0 0.0
    %2702 = vmatpush1.xpose.msra.mxu0 0.0
    %2703 = vmatprep.subr.mxu0 0.0
    %2704 = vmatpush1.xpose.msra.mxu0 0.0
    %2705 = vmatprep.subr.mxu0 0.0
    %2706 = vmatpush1.xpose.msra.mxu0 0.0
    %2707 = vmatprep.subr.mxu0 0.0
    %2708 = vmatpush1.xpose.msra.mxu0 0.0
    %2709 = vmatprep.subr.mxu0 0.0
    %2710 = vmatpush1.xpose.msra.mxu0 0.0
    %2711 = vmatprep.subr.mxu0 0.0
    %2712 = vmatpush1.xpose.msra.mxu0 0.0
    %2713 = vmatprep.subr.mxu0 0.0
    %2714 = vmatpush1.xpose.msra.mxu0 0.0
    %2715 = vmatprep.subr.mxu0 0.0
    %2716 = vmatpush1.xpose.msra.mxu0 0.0
    %2717 = vmatprep.subr.mxu0 0.0
    %2718 = vmatpush1.xpose.msra.mxu0 0.0
    %2719 = vmatprep.subr.mxu0 0.0
    %2720 = vmatpush1.xpose.msra.mxu0 0.0
    %2721 = vmatprep.subr.mxu0 0.0
    %2722 = vmatpush1.xpose.msra.mxu0 0.0
    %2723 = vmatprep.subr.mxu0 0.0
    %2724 = vmatpush1.xpose.msra.mxu0 0.0
    %2725 = vmatprep.subr.mxu0 0.0
    %2726 = vmatpush1.xpose.msra.mxu0 0.0
    %2727 = vmatprep.subr.mxu0 0.0
    %2728 = vmatpush1.xpose.msra.mxu0 0.0
    %2729 = vmatprep.subr.mxu0 0.0
    %2730 = vmatpush1.xpose.msra.mxu0 0.0
    %2731 = vmatprep.subr.mxu0 0.0
    %2732 = vmatpush1.xpose.msra.mxu0 %v2699
    %2733 = vmatprep.subr.mxu0 0.0
    %2734 = vmatpush2.xpose.msra.mxu0 0.0
    %2735 = vmatprep.subr.mxu0 0.0
    %2736 = vmatpush2.xpose.msra.mxu0 0.0
    %2737 = vmatprep.subr.mxu0 0.0
    %2738 = vmatpush2.xpose.msra.mxu0 0.0
    %2739 = vmatprep.subr.mxu0 0.0
    %2740 = vmatpush2.xpose.msra.mxu0 0.0
    %2741 = vmatprep.subr.mxu0 0.0
    %2742 = vmatpush2.xpose.msra.mxu0 0.0
    %2743 = vmatprep.subr.mxu0 0.0
    %2744 = vmatpush2.xpose.msra.mxu0 0.0
    %2745 = vmatprep.subr.mxu0 0.0
    %2746 = vmatpush2.xpose.msra.mxu0 0.0
    %2747 = vmatprep.subr.mxu0 0.0
    %2748 = vmatpush2.xpose.msra.mxu0 0.0
    %2749 = vmatprep.subr.mxu0 0.0
    %2750 = vmatpush2.xpose.msra.mxu0 0.0
    %2751 = vmatprep.subr.mxu0 0.0
    %2752 = vmatpush2.xpose.msra.mxu0 0.0
    %2753 = vmatprep.subr.mxu0 0.0
    %2754 = vmatpush2.xpose.msra.mxu0 0.0
    %2755 = vmatprep.subr.mxu0 0.0
    %2756 = vmatpush2.xpose.msra.mxu0 0.0
    %2757 = vmatprep.subr.mxu0 0.0
    %2758 = vmatpush2.xpose.msra.mxu0 0.0
    %2759 = vmatprep.subr.mxu0 0.0
    %2760 = vmatpush2.xpose.msra.mxu0 0.0
    %2761 = vmatprep.subr.mxu0 0.0
    %2762 = vmatpush2.xpose.msra.mxu0 0.0
    %2763 = vmatprep.subr.mxu0 0.0
    %2764 = vmatpush2.xpose.msra.mxu0 0.0
    %2765 = vmatprep.mubr.f32.mxu0 0.0
    %2766 = vmatmul.mubr.f32.gmra.mxu0 %v2697
    %v2767 = vpop.f32.mrf.mxu0
    %v2768 = vadd.f32 0.0, %v2767
    %v2769 = vpop.f32.mrf.mxu0
    %2770 = vdwg.mxu0
    %v2771 = vsel %vm67, -1e+20, %v2690
    %v2772 = vsel %vm68, -1e+20, %v2768
    %v2773 = vsel %vm315, %v2771, -inf
    %2774 = vmax.xlane.f32.xlu0 %v2773
    %v2775 = vpop.xlane.xlu0 %2774
    %v2776 = vsel %vm315, %v2772, -inf
    %2777 = vmax.xlane.f32.xlu0 %v2776
    %v2778 = vpop.xlane.xlu0 %2777
    %v2779 = vsub.f32 %v2771, %v2775
    %v2780 = vsub.f32 %v2772, %v2778
    %v2781 = vmul.f32 %v2779, 1.442695
    %v2782 = vpow.pop %v2781
    %v2783 = vmul.f32 %v2780, 1.442695
    %v2784 = vpow.pop %v2783
    %v2785 = vsel %vm315, %v2782, 0.0
    %2786 = vadd.xlane.f32.xlu0 %v2785
    %v2787 = vpop.xlane.xlu0 %2786
    %v2788 = vsel %vm315, %v2784, 0.0
    %2789 = vadd.xlane.f32.xlu0 %v2788
    %v2790 = vpop.xlane.xlu0 %2789
    %v2791 = vrcp.pop %v2787
    %v2792 = vrcp.pop %v2790
    %v2793 = vmul.f32 %v2782, %v2791
    %v2794 = vmul.f32 %v2784, %v2792
    %2796 = vrot.lane.b32.xlu0 %v2285, 120
    %v2797 = vpop.permute.xlu0 %2796
    %v2800 = vsel %vm315, %v2793, 0
    %2802 = vmatprep.subr.mxu0 0.0
    %2803 = vmatpush1.msra.mxu0 0.0
    %2804 = vmatprep.subr.mxu0 0.0
    %2805 = vmatpush1.msra.mxu0 0.0
    %2806 = vmatprep.subr.mxu0 0.0
    %2807 = vmatpush1.msra.mxu0 0.0
    %2808 = vmatprep.subr.mxu0 0.0
    %2809 = vmatpush1.msra.mxu0 0.0
    %2810 = vmatprep.subr.mxu0 0.0
    %2811 = vmatpush1.msra.mxu0 0.0
    %2812 = vmatprep.subr.mxu0 0.0
    %2813 = vmatpush1.msra.mxu0 0.0
    %2814 = vmatprep.subr.mxu0 0.0
    %2815 = vmatpush1.msra.mxu0 0.0
    %2816 = vmatprep.subr.mxu0 0.0
    %2817 = vmatpush1.msra.mxu0 0.0
    %2818 = vmatprep.subr.mxu0 0.0
    %2819 = vmatpush1.msra.mxu0 0.0
    %2820 = vmatprep.subr.mxu0 0.0
    %2821 = vmatpush1.msra.mxu0 0.0
    %2822 = vmatprep.subr.mxu0 0.0
    %2823 = vmatpush1.msra.mxu0 0.0
    %2824 = vmatprep.subr.mxu0 0.0
    %2825 = vmatpush1.msra.mxu0 0.0
    %2826 = vmatprep.subr.mxu0 0.0
    %2827 = vmatpush1.msra.mxu0 0.0
    %2828 = vmatprep.subr.mxu0 0.0
    %2829 = vmatpush1.msra.mxu0 0.0
    %2830 = vmatprep.subr.mxu0 0.0
    %2831 = vmatpush1.msra.mxu0 0.0
    %2832 = vmatprep.subr.mxu0 0.0
    %2833 = vmatpush1.msra.mxu0 %v2797
    %2834 = vmatprep.subr.mxu0 0.0
    %2835 = vmatpush2.msra.mxu0 0.0
    %2836 = vmatprep.subr.mxu0 0.0
    %2837 = vmatpush2.msra.mxu0 0.0
    %2838 = vmatprep.subr.mxu0 0.0
    %2839 = vmatpush2.msra.mxu0 0.0
    %2840 = vmatprep.subr.mxu0 0.0
    %2841 = vmatpush2.msra.mxu0 0.0
    %2842 = vmatprep.subr.mxu0 0.0
    %2843 = vmatpush2.msra.mxu0 0.0
    %2844 = vmatprep.subr.mxu0 0.0
    %2845 = vmatpush2.msra.mxu0 0.0
    %2846 = vmatprep.subr.mxu0 0.0
    %2847 = vmatpush2.msra.mxu0 0.0
    %2848 = vmatprep.subr.mxu0 0.0
    %2849 = vmatpush2.msra.mxu0 0.0
    %2850 = vmatprep.subr.mxu0 0.0
    %2851 = vmatpush2.msra.mxu0 0.0
    %2852 = vmatprep.subr.mxu0 0.0
    %2853 = vmatpush2.msra.mxu0 0.0
    %2854 = vmatprep.subr.mxu0 0.0
    %2855 = vmatpush2.msra.mxu0 0.0
    %2856 = vmatprep.subr.mxu0 0.0
    %2857 = vmatpush2.msra.mxu0 0.0
    %2858 = vmatprep.subr.mxu0 0.0
    %2859 = vmatpush2.msra.mxu0 0.0
    %2860 = vmatprep.subr.mxu0 0.0
    %2861 = vmatpush2.msra.mxu0 0.0
    %2862 = vmatprep.subr.mxu0 0.0
    %2863 = vmatpush2.msra.mxu0 0.0
    %2864 = vmatprep.subr.mxu0 0.0
    %2865 = vmatpush2.msra.mxu0 0.0
    %2866 = vmatprep.mubr.f32.mxu0 0.0
    %2867 = vmatmul.mubr.f32.gmra.mxu0 %v2800
    %v2868 = vpop.f32.mrf.mxu0
    %v2869 = vadd.f32 0.0, %v2868
    %v2870 = vpop.f32.mrf.mxu0
    %2871 = vdwg.mxu0
    %2873 = vrot.lane.b32.xlu0 %v2290, 120
    %v2874 = vpop.permute.xlu0 %2873
    %v2877 = vsel %vm315, %v2794, 0
    %2879 = vmatprep.subr.mxu0 0.0
    %2880 = vmatpush1.msra.mxu0 0.0
    %2881 = vmatprep.subr.mxu0 0.0
    %2882 = vmatpush1.msra.mxu0 0.0
    %2883 = vmatprep.subr.mxu0 0.0
    %2884 = vmatpush1.msra.mxu0 0.0
    %2885 = vmatprep.subr.mxu0 0.0
    %2886 = vmatpush1.msra.mxu0 0.0
    %2887 = vmatprep.subr.mxu0 0.0
    %2888 = vmatpush1.msra.mxu0 0.0
    %2889 = vmatprep.subr.mxu0 0.0
    %2890 = vmatpush1.msra.mxu0 0.0
    %2891 = vmatprep.subr.mxu0 0.0
    %2892 = vmatpush1.msra.mxu0 0.0
    %2893 = vmatprep.subr.mxu0 0.0
    %2894 = vmatpush1.msra.mxu0 0.0
    %2895 = vmatprep.subr.mxu0 0.0
    %2896 = vmatpush1.msra.mxu0 0.0
    %2897 = vmatprep.subr.mxu0 0.0
    %2898 = vmatpush1.msra.mxu0 0.0
    %2899 = vmatprep.subr.mxu0 0.0
    %2900 = vmatpush1.msra.mxu0 0.0
    %2901 = vmatprep.subr.mxu0 0.0
    %2902 = vmatpush1.msra.mxu0 0.0
    %2903 = vmatprep.subr.mxu0 0.0
    %2904 = vmatpush1.msra.mxu0 0.0
    %2905 = vmatprep.subr.mxu0 0.0
    %2906 = vmatpush1.msra.mxu0 0.0
    %2907 = vmatprep.subr.mxu0 0.0
    %2908 = vmatpush1.msra.mxu0 0.0
    %2909 = vmatprep.subr.mxu0 0.0
    %2910 = vmatpush1.msra.mxu0 %v2874
    %2911 = vmatprep.subr.mxu0 0.0
    %2912 = vmatpush2.msra.mxu0 0.0
    %2913 = vmatprep.subr.mxu0 0.0
    %2914 = vmatpush2.msra.mxu0 0.0
    %2915 = vmatprep.subr.mxu0 0.0
    %2916 = vmatpush2.msra.mxu0 0.0
    %2917 = vmatprep.subr.mxu0 0.0
    %2918 = vmatpush2.msra.mxu0 0.0
    %2919 = vmatprep.subr.mxu0 0.0
    %2920 = vmatpush2.msra.mxu0 0.0
    %2921 = vmatprep.subr.mxu0 0.0
    %2922 = vmatpush2.msra.mxu0 0.0
    %2923 = vmatprep.subr.mxu0 0.0
    %2924 = vmatpush2.msra.mxu0 0.0
    %2925 = vmatprep.subr.mxu0 0.0
    %2926 = vmatpush2.msra.mxu0 0.0
    %2927 = vmatprep.subr.mxu0 0.0
    %2928 = vmatpush2.msra.mxu0 0.0
    %2929 = vmatprep.subr.mxu0 0.0
    %2930 = vmatpush2.msra.mxu0 0.0
    %2931 = vmatprep.subr.mxu0 0.0
    %2932 = vmatpush2.msra.mxu0 0.0
    %2933 = vmatprep.subr.mxu0 0.0
    %2934 = vmatpush2.msra.mxu0 0.0
    %2935 = vmatprep.subr.mxu0 0.0
    %2936 = vmatpush2.msra.mxu0 0.0
    %2937 = vmatprep.subr.mxu0 0.0
    %2938 = vmatpush2.msra.mxu0 0.0
    %2939 = vmatprep.subr.mxu0 0.0
    %2940 = vmatpush2.msra.mxu0 0.0
    %2941 = vmatprep.subr.mxu0 0.0
    %2942 = vmatpush2.msra.mxu0 0.0
    %2943 = vmatprep.mubr.f32.mxu0 0.0
    %2944 = vmatmul.mubr.f32.gmra.mxu0 %v2877
    %v2945 = vpop.f32.mrf.mxu0
    %v2946 = vadd.f32 0.0, %v2945
    %v2947 = vpop.f32.mrf.mxu0
    %2948 = vdwg.mxu0
    %2949 = vrot.lane.b32.xlu0 %v2131, 112
    %v2950 = vpop.permute.xlu0 %2949
    %2951 = vrot.lane.b32.xlu0 %v2205, 112
    %v2952 = vpop.permute.xlu0 %2951
    %v2953 = vsel %vm315, %v2950, 0
    %v2955 = vsel %vm315, %v2952, 0
    %2957 = vmatprep.subr.mxu0 0.0
    %2958 = vmatpush1.xpose.msra.mxu0 0.0
    %2959 = vmatprep.subr.mxu0 0.0
    %2960 = vmatpush1.xpose.msra.mxu0 0.0
    %2961 = vmatprep.subr.mxu0 0.0
    %2962 = vmatpush1.xpose.msra.mxu0 0.0
    %2963 = vmatprep.subr.mxu0 0.0
    %2964 = vmatpush1.xpose.msra.mxu0 0.0
    %2965 = vmatprep.subr.mxu0 0.0
    %2966 = vmatpush1.xpose.msra.mxu0 0.0
    %2967 = vmatprep.subr.mxu0 0.0
    %2968 = vmatpush1.xpose.msra.mxu0 0.0
    %2969 = vmatprep.subr.mxu0 0.0
    %2970 = vmatpush1.xpose.msra.mxu0 0.0
    %2971 = vmatprep.subr.mxu0 0.0
    %2972 = vmatpush1.xpose.msra.mxu0 0.0
    %2973 = vmatprep.subr.mxu0 0.0
    %2974 = vmatpush1.xpose.msra.mxu0 0.0
    %2975 = vmatprep.subr.mxu0 0.0
    %2976 = vmatpush1.xpose.msra.mxu0 0.0
    %2977 = vmatprep.subr.mxu0 0.0
    %2978 = vmatpush1.xpose.msra.mxu0 0.0
    %2979 = vmatprep.subr.mxu0 0.0
    %2980 = vmatpush1.xpose.msra.mxu0 0.0
    %2981 = vmatprep.subr.mxu0 0.0
    %2982 = vmatpush1.xpose.msra.mxu0 0.0
    %2983 = vmatprep.subr.mxu0 0.0
    %2984 = vmatpush1.xpose.msra.mxu0 0.0
    %2985 = vmatprep.subr.mxu0 0.0
    %2986 = vmatpush1.xpose.msra.mxu0 0.0
    %2987 = vmatprep.subr.mxu0 0.0
    %2988 = vmatpush1.xpose.msra.mxu0 %v2955
    %2989 = vmatprep.subr.mxu0 0.0
    %2990 = vmatpush2.xpose.msra.mxu0 0.0
    %2991 = vmatprep.subr.mxu0 0.0
    %2992 = vmatpush2.xpose.msra.mxu0 0.0
    %2993 = vmatprep.subr.mxu0 0.0
    %2994 = vmatpush2.xpose.msra.mxu0 0.0
    %2995 = vmatprep.subr.mxu0 0.0
    %2996 = vmatpush2.xpose.msra.mxu0 0.0
    %2997 = vmatprep.subr.mxu0 0.0
    %2998 = vmatpush2.xpose.msra.mxu0 0.0
    %2999 = vmatprep.subr.mxu0 0.0
    %3000 = vmatpush2.xpose.msra.mxu0 0.0
    %3001 = vmatprep.subr.mxu0 0.0
    %3002 = vmatpush2.xpose.msra.mxu0 0.0
    %3003 = vmatprep.subr.mxu0 0.0
    %3004 = vmatpush2.xpose.msra.mxu0 0.0
    %3005 = vmatprep.subr.mxu0 0.0
    %3006 = vmatpush2.xpose.msra.mxu0 0.0
    %3007 = vmatprep.subr.mxu0 0.0
    %3008 = vmatpush2.xpose.msra.mxu0 0.0
    %3009 = vmatprep.subr.mxu0 0.0
    %3010 = vmatpush2.xpose.msra.mxu0 0.0
    %3011 = vmatprep.subr.mxu0 0.0
    %3012 = vmatpush2.xpose.msra.mxu0 0.0
    %3013 = vmatprep.subr.mxu0 0.0
    %3014 = vmatpush2.xpose.msra.mxu0 0.0
    %3015 = vmatprep.subr.mxu0 0.0
    %3016 = vmatpush2.xpose.msra.mxu0 0.0
    %3017 = vmatprep.subr.mxu0 0.0
    %3018 = vmatpush2.xpose.msra.mxu0 0.0
    %3019 = vmatprep.subr.mxu0 0.0
    %3020 = vmatpush2.xpose.msra.mxu0 0.0
    %3021 = vmatprep.mubr.f32.mxu0 0.0
    %3022 = vmatmul.mubr.f32.gmra.mxu0 %v2953
    %v3023 = vpop.f32.mrf.mxu0
    %v3024 = vadd.f32 0.0, %v3023
    %v3025 = vpop.f32.mrf.mxu0
    %3026 = vdwg.mxu0
    %3027 = vrot.lane.b32.xlu0 %v2132, 112
    %v3028 = vpop.permute.xlu0 %3027
    %3029 = vrot.lane.b32.xlu0 %v2210, 112
    %v3030 = vpop.permute.xlu0 %3029
    %v3031 = vsel %vm315, %v3028, 0
    %v3033 = vsel %vm315, %v3030, 0
    %3035 = vmatprep.subr.mxu0 0.0
    %3036 = vmatpush1.xpose.msra.mxu0 0.0
    %3037 = vmatprep.subr.mxu0 0.0
    %3038 = vmatpush1.xpose.msra.mxu0 0.0
    %3039 = vmatprep.subr.mxu0 0.0
    %3040 = vmatpush1.xpose.msra.mxu0 0.0
    %3041 = vmatprep.subr.mxu0 0.0
    %3042 = vmatpush1.xpose.msra.mxu0 0.0
    %3043 = vmatprep.subr.mxu0 0.0
    %3044 = vmatpush1.xpose.msra.mxu0 0.0
    %3045 = vmatprep.subr.mxu0 0.0
    %3046 = vmatpush1.xpose.msra.mxu0 0.0
    %3047 = vmatprep.subr.mxu0 0.0
    %3048 = vmatpush1.xpose.msra.mxu0 0.0
    %3049 = vmatprep.subr.mxu0 0.0
    %3050 = vmatpush1.xpose.msra.mxu0 0.0
    %3051 = vmatprep.subr.mxu0 0.0
    %3052 = vmatpush1.xpose.msra.mxu0 0.0
    %3053 = vmatprep.subr.mxu0 0.0
    %3054 = vmatpush1.xpose.msra.mxu0 0.0
    %3055 = vmatprep.subr.mxu0 0.0
    %3056 = vmatpush1.xpose.msra.mxu0 0.0
    %3057 = vmatprep.subr.mxu0 0.0
    %3058 = vmatpush1.xpose.msra.mxu0 0.0
    %3059 = vmatprep.subr.mxu0 0.0
    %3060 = vmatpush1.xpose.msra.mxu0 0.0
    %3061 = vmatprep.subr.mxu0 0.0
    %3062 = vmatpush1.xpose.msra.mxu0 0.0
    %3063 = vmatprep.subr.mxu0 0.0
    %3064 = vmatpush1.xpose.msra.mxu0 0.0
    %3065 = vmatprep.subr.mxu0 0.0
    %3066 = vmatpush1.xpose.msra.mxu0 %v3033
    %3067 = vmatprep.subr.mxu0 0.0
    %3068 = vmatpush2.xpose.msra.mxu0 0.0
    %3069 = vmatprep.subr.mxu0 0.0
    %3070 = vmatpush2.xpose.msra.mxu0 0.0
    %3071 = vmatprep.subr.mxu0 0.0
    %3072 = vmatpush2.xpose.msra.mxu0 0.0
    %3073 = vmatprep.subr.mxu0 0.0
    %3074 = vmatpush2.xpose.msra.mxu0 0.0
    %3075 = vmatprep.subr.mxu0 0.0
    %3076 = vmatpush2.xpose.msra.mxu0 0.0
    %3077 = vmatprep.subr.mxu0 0.0
    %3078 = vmatpush2.xpose.msra.mxu0 0.0
    %3079 = vmatprep.subr.mxu0 0.0
    %3080 = vmatpush2.xpose.msra.mxu0 0.0
    %3081 = vmatprep.subr.mxu0 0.0
    %3082 = vmatpush2.xpose.msra.mxu0 0.0
    %3083 = vmatprep.subr.mxu0 0.0
    %3084 = vmatpush2.xpose.msra.mxu0 0.0
    %3085 = vmatprep.subr.mxu0 0.0
    %3086 = vmatpush2.xpose.msra.mxu0 0.0
    %3087 = vmatprep.subr.mxu0 0.0
    %3088 = vmatpush2.xpose.msra.mxu0 0.0
    %3089 = vmatprep.subr.mxu0 0.0
    %3090 = vmatpush2.xpose.msra.mxu0 0.0
    %3091 = vmatprep.subr.mxu0 0.0
    %3092 = vmatpush2.xpose.msra.mxu0 0.0
    %3093 = vmatprep.subr.mxu0 0.0
    %3094 = vmatpush2.xpose.msra.mxu0 0.0
    %3095 = vmatprep.subr.mxu0 0.0
    %3096 = vmatpush2.xpose.msra.mxu0 0.0
    %3097 = vmatprep.subr.mxu0 0.0
    %3098 = vmatpush2.xpose.msra.mxu0 0.0
    %3099 = vmatprep.mubr.f32.mxu0 0.0
    %3100 = vmatmul.mubr.f32.gmra.mxu0 %v3031
    %v3101 = vpop.f32.mrf.mxu0
    %v3102 = vadd.f32 0.0, %v3101
    %v3103 = vpop.f32.mrf.mxu0
    %3104 = vdwg.mxu0
    %v3105 = vsel %vm67, -1e+20, %v3024
    %v3106 = vsel %vm68, -1e+20, %v3102
    %v3107 = vsel %vm315, %v3105, -inf
    %3108 = vmax.xlane.f32.xlu0 %v3107
    %v3109 = vpop.xlane.xlu0 %3108
    %v3110 = vsel %vm315, %v3106, -inf
    %3111 = vmax.xlane.f32.xlu0 %v3110
    %v3112 = vpop.xlane.xlu0 %3111
    %v3113 = vsub.f32 %v3105, %v3109
    %v3114 = vsub.f32 %v3106, %v3112
    %v3115 = vmul.f32 %v3113, 1.442695
    %v3116 = vpow.pop %v3115
    %v3117 = vmul.f32 %v3114, 1.442695
    %v3118 = vpow.pop %v3117
    %v3119 = vsel %vm315, %v3116, 0.0
    %3120 = vadd.xlane.f32.xlu0 %v3119
    %v3121 = vpop.xlane.xlu0 %3120
    %v3122 = vsel %vm315, %v3118, 0.0
    %3123 = vadd.xlane.f32.xlu0 %v3122
    %v3124 = vpop.xlane.xlu0 %3123
    %v3125 = vrcp.pop %v3121
    %v3126 = vrcp.pop %v3124
    %v3127 = vmul.f32 %v3116, %v3125
    %v3128 = vmul.f32 %v3118, %v3126
    %3129 = vrot.lane.b32.xlu0 %v2285, 112
    %v3130 = vpop.permute.xlu0 %3129
    %v3133 = vsel %vm315, %v3127, 0
    %3135 = vmatprep.subr.mxu0 0.0
    %3136 = vmatpush1.msra.mxu0 0.0
    %3137 = vmatprep.subr.mxu0 0.0
    %3138 = vmatpush1.msra.mxu0 0.0
    %3139 = vmatprep.subr.mxu0 0.0
    %3140 = vmatpush1.msra.mxu0 0.0
    %3141 = vmatprep.subr.mxu0 0.0
    %3142 = vmatpush1.msra.mxu0 0.0
    %3143 = vmatprep.subr.mxu0 0.0
    %3144 = vmatpush1.msra.mxu0 0.0
    %3145 = vmatprep.subr.mxu0 0.0
    %3146 = vmatpush1.msra.mxu0 0.0
    %3147 = vmatprep.subr.mxu0 0.0
    %3148 = vmatpush1.msra.mxu0 0.0
    %3149 = vmatprep.subr.mxu0 0.0
    %3150 = vmatpush1.msra.mxu0 0.0
    %3151 = vmatprep.subr.mxu0 0.0
    %3152 = vmatpush1.msra.mxu0 0.0
    %3153 = vmatprep.subr.mxu0 0.0
    %3154 = vmatpush1.msra.mxu0 0.0
    %3155 = vmatprep.subr.mxu0 0.0
    %3156 = vmatpush1.msra.mxu0 0.0
    %3157 = vmatprep.subr.mxu0 0.0
    %3158 = vmatpush1.msra.mxu0 0.0
    %3159 = vmatprep.subr.mxu0 0.0
    %3160 = vmatpush1.msra.mxu0 0.0
    %3161 = vmatprep.subr.mxu0 0.0
    %3162 = vmatpush1.msra.mxu0 0.0
    %3163 = vmatprep.subr.mxu0 0.0
    %3164 = vmatpush1.msra.mxu0 0.0
    %3165 = vmatprep.subr.mxu0 0.0
    %3166 = vmatpush1.msra.mxu0 %v3130
    %3167 = vmatprep.subr.mxu0 0.0
    %3168 = vmatpush2.msra.mxu0 0.0
    %3169 = vmatprep.subr.mxu0 0.0
    %3170 = vmatpush2.msra.mxu0 0.0
    %3171 = vmatprep.subr.mxu0 0.0
    %3172 = vmatpush2.msra.mxu0 0.0
    %3173 = vmatprep.subr.mxu0 0.0
    %3174 = vmatpush2.msra.mxu0 0.0
    %3175 = vmatprep.subr.mxu0 0.0
    %3176 = vmatpush2.msra.mxu0 0.0
    %3177 = vmatprep.subr.mxu0 0.0
    %3178 = vmatpush2.msra.mxu0 0.0
    %3179 = vmatprep.subr.mxu0 0.0
    %3180 = vmatpush2.msra.mxu0 0.0
    %3181 = vmatprep.subr.mxu0 0.0
    %3182 = vmatpush2.msra.mxu0 0.0
    %3183 = vmatprep.subr.mxu0 0.0
    %3184 = vmatpush2.msra.mxu0 0.0
    %3185 = vmatprep.subr.mxu0 0.0
    %3186 = vmatpush2.msra.mxu0 0.0
    %3187 = vmatprep.subr.mxu0 0.0
    %3188 = vmatpush2.msra.mxu0 0.0
    %3189 = vmatprep.subr.mxu0 0.0
    %3190 = vmatpush2.msra.mxu0 0.0
    %3191 = vmatprep.subr.mxu0 0.0
    %3192 = vmatpush2.msra.mxu0 0.0
    %3193 = vmatprep.subr.mxu0 0.0
    %3194 = vmatpush2.msra.mxu0 0.0
    %3195 = vmatprep.subr.mxu0 0.0
    %3196 = vmatpush2.msra.mxu0 0.0
    %3197 = vmatprep.subr.mxu0 0.0
    %3198 = vmatpush2.msra.mxu0 0.0
    %3199 = vmatprep.mubr.f32.mxu0 0.0
    %3200 = vmatmul.mubr.f32.gmra.mxu0 %v3133
    %v3201 = vpop.f32.mrf.mxu0
    %v3202 = vadd.f32 0.0, %v3201
    %v3203 = vpop.f32.mrf.mxu0
    %3204 = vdwg.mxu0
    %3205 = vrot.lane.b32.xlu0 %v2290, 112
    %v3206 = vpop.permute.xlu0 %3205
    %v3209 = vsel %vm315, %v3128, 0
    %3211 = vmatprep.subr.mxu0 0.0
    %3212 = vmatpush1.msra.mxu0 0.0
    %3213 = vmatprep.subr.mxu0 0.0
    %3214 = vmatpush1.msra.mxu0 0.0
    %3215 = vmatprep.subr.mxu0 0.0
    %3216 = vmatpush1.msra.mxu0 0.0
    %3217 = vmatprep.subr.mxu0 0.0
    %3218 = vmatpush1.msra.mxu0 0.0
    %3219 = vmatprep.subr.mxu0 0.0
    %3220 = vmatpush1.msra.mxu0 0.0
    %3221 = vmatprep.subr.mxu0 0.0
    %3222 = vmatpush1.msra.mxu0 0.0
    %3223 = vmatprep.subr.mxu0 0.0
    %3224 = vmatpush1.msra.mxu0 0.0
    %3225 = vmatprep.subr.mxu0 0.0
    %3226 = vmatpush1.msra.mxu0 0.0
    %3227 = vmatprep.subr.mxu0 0.0
    %3228 = vmatpush1.msra.mxu0 0.0
    %3229 = vmatprep.subr.mxu0 0.0
    %3230 = vmatpush1.msra.mxu0 0.0
    %3231 = vmatprep.subr.mxu0 0.0
    %3232 = vmatpush1.msra.mxu0 0.0
    %3233 = vmatprep.subr.mxu0 0.0
    %3234 = vmatpush1.msra.mxu0 0.0
    %3235 = vmatprep.subr.mxu0 0.0
    %3236 = vmatpush1.msra.mxu0 0.0
    %3237 = vmatprep.subr.mxu0 0.0
    %3238 = vmatpush1.msra.mxu0 0.0
    %3239 = vmatprep.subr.mxu0 0.0
    %3240 = vmatpush1.msra.mxu0 0.0
    %3241 = vmatprep.subr.mxu0 0.0
    %3242 = vmatpush1.msra.mxu0 %v3206
    %3243 = vmatprep.subr.mxu0 0.0
    %3244 = vmatpush2.msra.mxu0 0.0
    %3245 = vmatprep.subr.mxu0 0.0
    %3246 = vmatpush2.msra.mxu0 0.0
    %3247 = vmatprep.subr.mxu0 0.0
    %3248 = vmatpush2.msra.mxu0 0.0
    %3249 = vmatprep.subr.mxu0 0.0
    %3250 = vmatpush2.msra.mxu0 0.0
    %3251 = vmatprep.subr.mxu0 0.0
    %3252 = vmatpush2.msra.mxu0 0.0
    %3253 = vmatprep.subr.mxu0 0.0
    %3254 = vmatpush2.msra.mxu0 0.0
    %3255 = vmatprep.subr.mxu0 0.0
    %3256 = vmatpush2.msra.mxu0 0.0
    %3257 = vmatprep.subr.mxu0 0.0
    %3258 = vmatpush2.msra.mxu0 0.0
    %3259 = vmatprep.subr.mxu0 0.0
    %3260 = vmatpush2.msra.mxu0 0.0
    %3261 = vmatprep.subr.mxu0 0.0
    %3262 = vmatpush2.msra.mxu0 0.0
    %3263 = vmatprep.subr.mxu0 0.0
    %3264 = vmatpush2.msra.mxu0 0.0
    %3265 = vmatprep.subr.mxu0 0.0
    %3266 = vmatpush2.msra.mxu0 0.0
    %3267 = vmatprep.subr.mxu0 0.0
    %3268 = vmatpush2.msra.mxu0 0.0
    %3269 = vmatprep.subr.mxu0 0.0
    %3270 = vmatpush2.msra.mxu0 0.0
    %3271 = vmatprep.subr.mxu0 0.0
    %3272 = vmatpush2.msra.mxu0 0.0
    %3273 = vmatprep.subr.mxu0 0.0
    %3274 = vmatpush2.msra.mxu0 0.0
    %3275 = vmatprep.mubr.f32.mxu0 0.0
    %3276 = vmatmul.mubr.f32.gmra.mxu0 %v3209
    %v3277 = vpop.f32.mrf.mxu0
    %v3278 = vadd.f32 0.0, %v3277
    %v3279 = vpop.f32.mrf.mxu0
    %3280 = vdwg.mxu0
    %3281 = vrot.lane.b32.xlu0 %v2131, 104
    %v3282 = vpop.permute.xlu0 %3281
    %3283 = vrot.lane.b32.xlu0 %v2205, 104
    %v3284 = vpop.permute.xlu0 %3283
    %v3285 = vsel %vm315, %v3282, 0
    %v3287 = vsel %vm315, %v3284, 0
    %3289 = vmatprep.subr.mxu0 0.0
    %3290 = vmatpush1.xpose.msra.mxu0 0.0
    %3291 = vmatprep.subr.mxu0 0.0
    %3292 = vmatpush1.xpose.msra.mxu0 0.0
    %3293 = vmatprep.subr.mxu0 0.0
    %3294 = vmatpush1.xpose.msra.mxu0 0.0
    %3295 = vmatprep.subr.mxu0 0.0
    %3296 = vmatpush1.xpose.msra.mxu0 0.0
    %3297 = vmatprep.subr.mxu0 0.0
    %3298 = vmatpush1.xpose.msra.mxu0 0.0
    %3299 = vmatprep.subr.mxu0 0.0
    %3300 = vmatpush1.xpose.msra.mxu0 0.0
    %3301 = vmatprep.subr.mxu0 0.0
    %3302 = vmatpush1.xpose.msra.mxu0 0.0
    %3303 = vmatprep.subr.mxu0 0.0
    %3304 = vmatpush1.xpose.msra.mxu0 0.0
    %3305 = vmatprep.subr.mxu0 0.0
    %3306 = vmatpush1.xpose.msra.mxu0 0.0
    %3307 = vmatprep.subr.mxu0 0.0
    %3308 = vmatpush1.xpose.msra.mxu0 0.0
    %3309 = vmatprep.subr.mxu0 0.0
    %3310 = vmatpush1.xpose.msra.mxu0 0.0
    %3311 = vmatprep.subr.mxu0 0.0
    %3312 = vmatpush1.xpose.msra.mxu0 0.0
    %3313 = vmatprep.subr.mxu0 0.0
    %3314 = vmatpush1.xpose.msra.mxu0 0.0
    %3315 = vmatprep.subr.mxu0 0.0
    %3316 = vmatpush1.xpose.msra.mxu0 0.0
    %3317 = vmatprep.subr.mxu0 0.0
    %3318 = vmatpush1.xpose.msra.mxu0 0.0
    %3319 = vmatprep.subr.mxu0 0.0
    %3320 = vmatpush1.xpose.msra.mxu0 %v3287
    %3321 = vmatprep.subr.mxu0 0.0
    %3322 = vmatpush2.xpose.msra.mxu0 0.0
    %3323 = vmatprep.subr.mxu0 0.0
    %3324 = vmatpush2.xpose.msra.mxu0 0.0
    %3325 = vmatprep.subr.mxu0 0.0
    %3326 = vmatpush2.xpose.msra.mxu0 0.0
    %3327 = vmatprep.subr.mxu0 0.0
    %3328 = vmatpush2.xpose.msra.mxu0 0.0
    %3329 = vmatprep.subr.mxu0 0.0
    %3330 = vmatpush2.xpose.msra.mxu0 0.0
    %3331 = vmatprep.subr.mxu0 0.0
    %3332 = vmatpush2.xpose.msra.mxu0 0.0
    %3333 = vmatprep.subr.mxu0 0.0
    %3334 = vmatpush2.xpose.msra.mxu0 0.0
    %3335 = vmatprep.subr.mxu0 0.0
    %3336 = vmatpush2.xpose.msra.mxu0 0.0
    %3337 = vmatprep.subr.mxu0 0.0
    %3338 = vmatpush2.xpose.msra.mxu0 0.0
    %3339 = vmatprep.subr.mxu0 0.0
    %3340 = vmatpush2.xpose.msra.mxu0 0.0
    %3341 = vmatprep.subr.mxu0 0.0
    %3342 = vmatpush2.xpose.msra.mxu0 0.0
    %3343 = vmatprep.subr.mxu0 0.0
    %3344 = vmatpush2.xpose.msra.mxu0 0.0
    %3345 = vmatprep.subr.mxu0 0.0
    %3346 = vmatpush2.xpose.msra.mxu0 0.0
    %3347 = vmatprep.subr.mxu0 0.0
    %3348 = vmatpush2.xpose.msra.mxu0 0.0
    %3349 = vmatprep.subr.mxu0 0.0
    %3350 = vmatpush2.xpose.msra.mxu0 0.0
    %3351 = vmatprep.subr.mxu0 0.0
    %3352 = vmatpush2.xpose.msra.mxu0 0.0
    %3353 = vmatprep.mubr.f32.mxu0 0.0
    %3354 = vmatmul.mubr.f32.gmra.mxu0 %v3285
    %v3355 = vpop.f32.mrf.mxu0
    %v3356 = vadd.f32 0.0, %v3355
    %v3357 = vpop.f32.mrf.mxu0
    %3358 = vdwg.mxu0
    %3359 = vrot.lane.b32.xlu0 %v2132, 104
    %v3360 = vpop.permute.xlu0 %3359
    %3361 = vrot.lane.b32.xlu0 %v2210, 104
    %v3362 = vpop.permute.xlu0 %3361
    %v3363 = vsel %vm315, %v3360, 0
    %v3365 = vsel %vm315, %v3362, 0
    %3367 = vmatprep.subr.mxu0 0.0
    %3368 = vmatpush1.xpose.msra.mxu0 0.0
    %3369 = vmatprep.subr.mxu0 0.0
    %3370 = vmatpush1.xpose.msra.mxu0 0.0
    %3371 = vmatprep.subr.mxu0 0.0
    %3372 = vmatpush1.xpose.msra.mxu0 0.0
    %3373 = vmatprep.subr.mxu0 0.0
    %3374 = vmatpush1.xpose.msra.mxu0 0.0
    %3375 = vmatprep.subr.mxu0 0.0
    %3376 = vmatpush1.xpose.msra.mxu0 0.0
    %3377 = vmatprep.subr.mxu0 0.0
    %3378 = vmatpush1.xpose.msra.mxu0 0.0
    %3379 = vmatprep.subr.mxu0 0.0
    %3380 = vmatpush1.xpose.msra.mxu0 0.0
    %3381 = vmatprep.subr.mxu0 0.0
    %3382 = vmatpush1.xpose.msra.mxu0 0.0
    %3383 = vmatprep.subr.mxu0 0.0
    %3384 = vmatpush1.xpose.msra.mxu0 0.0
    %3385 = vmatprep.subr.mxu0 0.0
    %3386 = vmatpush1.xpose.msra.mxu0 0.0
    %3387 = vmatprep.subr.mxu0 0.0
    %3388 = vmatpush1.xpose.msra.mxu0 0.0
    %3389 = vmatprep.subr.mxu0 0.0
    %3390 = vmatpush1.xpose.msra.mxu0 0.0
    %3391 = vmatprep.subr.mxu0 0.0
    %3392 = vmatpush1.xpose.msra.mxu0 0.0
    %3393 = vmatprep.subr.mxu0 0.0
    %3394 = vmatpush1.xpose.msra.mxu0 0.0
    %3395 = vmatprep.subr.mxu0 0.0
    %3396 = vmatpush1.xpose.msra.mxu0 0.0
    %3397 = vmatprep.subr.mxu0 0.0
    %3398 = vmatpush1.xpose.msra.mxu0 %v3365
    %3399 = vmatprep.subr.mxu0 0.0
    %3400 = vmatpush2.xpose.msra.mxu0 0.0
    %3401 = vmatprep.subr.mxu0 0.0
    %3402 = vmatpush2.xpose.msra.mxu0 0.0
    %3403 = vmatprep.subr.mxu0 0.0
    %3404 = vmatpush2.xpose.msra.mxu0 0.0
    %3405 = vmatprep.subr.mxu0 0.0
    %3406 = vmatpush2.xpose.msra.mxu0 0.0
    %3407 = vmatprep.subr.mxu0 0.0
    %3408 = vmatpush2.xpose.msra.mxu0 0.0
    %3409 = vmatprep.subr.mxu0 0.0
    %3410 = vmatpush2.xpose.msra.mxu0 0.0
    %3411 = vmatprep.subr.mxu0 0.0
    %3412 = vmatpush2.xpose.msra.mxu0 0.0
    %3413 = vmatprep.subr.mxu0 0.0
    %3414 = vmatpush2.xpose.msra.mxu0 0.0
    %3415 = vmatprep.subr.mxu0 0.0
    %3416 = vmatpush2.xpose.msra.mxu0 0.0
    %3417 = vmatprep.subr.mxu0 0.0
    %3418 = vmatpush2.xpose.msra.mxu0 0.0
    %3419 = vmatprep.subr.mxu0 0.0
    %3420 = vmatpush2.xpose.msra.mxu0 0.0
    %3421 = vmatprep.subr.mxu0 0.0
    %3422 = vmatpush2.xpose.msra.mxu0 0.0
    %3423 = vmatprep.subr.mxu0 0.0
    %3424 = vmatpush2.xpose.msra.mxu0 0.0
    %3425 = vmatprep.subr.mxu0 0.0
    %3426 = vmatpush2.xpose.msra.mxu0 0.0
    %3427 = vmatprep.subr.mxu0 0.0
    %3428 = vmatpush2.xpose.msra.mxu0 0.0
    %3429 = vmatprep.subr.mxu0 0.0
    %3430 = vmatpush2.xpose.msra.mxu0 0.0
    %3431 = vmatprep.mubr.f32.mxu0 0.0
    %3432 = vmatmul.mubr.f32.gmra.mxu0 %v3363
    %v3433 = vpop.f32.mrf.mxu0
    %v3434 = vadd.f32 0.0, %v3433
    %v3435 = vpop.f32.mrf.mxu0
    %3436 = vdwg.mxu0
    %v3437 = vsel %vm67, -1e+20, %v3356
    %v3438 = vsel %vm68, -1e+20, %v3434
    %v3439 = vsel %vm315, %v3437, -inf
    %3440 = vmax.xlane.f32.xlu0 %v3439
    %v3441 = vpop.xlane.xlu0 %3440
    %v3442 = vsel %vm315, %v3438, -inf
    %3443 = vmax.xlane.f32.xlu0 %v3442
    %v3444 = vpop.xlane.xlu0 %3443
    %v3445 = vsub.f32 %v3437, %v3441
    %v3446 = vsub.f32 %v3438, %v3444
    %v3447 = vmul.f32 %v3445, 1.442695
    %v3448 = vpow.pop %v3447
    %v3449 = vmul.f32 %v3446, 1.442695
    %v3450 = vpow.pop %v3449
    %v3451 = vsel %vm315, %v3448, 0.0
    %3452 = vadd.xlane.f32.xlu0 %v3451
    %v3453 = vpop.xlane.xlu0 %3452
    %v3454 = vsel %vm315, %v3450, 0.0
    %3455 = vadd.xlane.f32.xlu0 %v3454
    %v3456 = vpop.xlane.xlu0 %3455
    %v3457 = vrcp.pop %v3453
    %v3458 = vrcp.pop %v3456
    %v3459 = vmul.f32 %v3448, %v3457
    %v3460 = vmul.f32 %v3450, %v3458
    %3461 = vrot.lane.b32.xlu0 %v2285, 104
    %v3462 = vpop.permute.xlu0 %3461
    %v3465 = vsel %vm315, %v3459, 0
    %3467 = vmatprep.subr.mxu0 0.0
    %3468 = vmatpush1.msra.mxu0 0.0
    %3469 = vmatprep.subr.mxu0 0.0
    %3470 = vmatpush1.msra.mxu0 0.0
    %3471 = vmatprep.subr.mxu0 0.0
    %3472 = vmatpush1.msra.mxu0 0.0
    %3473 = vmatprep.subr.mxu0 0.0
    %3474 = vmatpush1.msra.mxu0 0.0
    %3475 = vmatprep.subr.mxu0 0.0
    %3476 = vmatpush1.msra.mxu0 0.0
    %3477 = vmatprep.subr.mxu0 0.0
    %3478 = vmatpush1.msra.mxu0 0.0
    %3479 = vmatprep.subr.mxu0 0.0
    %3480 = vmatpush1.msra.mxu0 0.0
    %3481 = vmatprep.subr.mxu0 0.0
    %3482 = vmatpush1.msra.mxu0 0.0
    %3483 = vmatprep.subr.mxu0 0.0
    %3484 = vmatpush1.msra.mxu0 0.0
    %3485 = vmatprep.subr.mxu0 0.0
    %3486 = vmatpush1.msra.mxu0 0.0
    %3487 = vmatprep.subr.mxu0 0.0
    %3488 = vmatpush1.msra.mxu0 0.0
    %3489 = vmatprep.subr.mxu0 0.0
    %3490 = vmatpush1.msra.mxu0 0.0
    %3491 = vmatprep.subr.mxu0 0.0
    %3492 = vmatpush1.msra.mxu0 0.0
    %3493 = vmatprep.subr.mxu0 0.0
    %3494 = vmatpush1.msra.mxu0 0.0
    %3495 = vmatprep.subr.mxu0 0.0
    %3496 = vmatpush1.msra.mxu0 0.0
    %3497 = vmatprep.subr.mxu0 0.0
    %3498 = vmatpush1.msra.mxu0 %v3462
    %3499 = vmatprep.subr.mxu0 0.0
    %3500 = vmatpush2.msra.mxu0 0.0
    %3501 = vmatprep.subr.mxu0 0.0
    %3502 = vmatpush2.msra.mxu0 0.0
    %3503 = vmatprep.subr.mxu0 0.0
    %3504 = vmatpush2.msra.mxu0 0.0
    %3505 = vmatprep.subr.mxu0 0.0
    %3506 = vmatpush2.msra.mxu0 0.0
    %3507 = vmatprep.subr.mxu0 0.0
    %3508 = vmatpush2.msra.mxu0 0.0
    %3509 = vmatprep.subr.mxu0 0.0
    %3510 = vmatpush2.msra.mxu0 0.0
    %3511 = vmatprep.subr.mxu0 0.0
    %3512 = vmatpush2.msra.mxu0 0.0
    %3513 = vmatprep.subr.mxu0 0.0
    %3514 = vmatpush2.msra.mxu0 0.0
    %3515 = vmatprep.subr.mxu0 0.0
    %3516 = vmatpush2.msra.mxu0 0.0
    %3517 = vmatprep.subr.mxu0 0.0
    %3518 = vmatpush2.msra.mxu0 0.0
    %3519 = vmatprep.subr.mxu0 0.0
    %3520 = vmatpush2.msra.mxu0 0.0
    %3521 = vmatprep.subr.mxu0 0.0
    %3522 = vmatpush2.msra.mxu0 0.0
    %3523 = vmatprep.subr.mxu0 0.0
    %3524 = vmatpush2.msra.mxu0 0.0
    %3525 = vmatprep.subr.mxu0 0.0
    %3526 = vmatpush2.msra.mxu0 0.0
    %3527 = vmatprep.subr.mxu0 0.0
    %3528 = vmatpush2.msra.mxu0 0.0
    %3529 = vmatprep.subr.mxu0 0.0
    %3530 = vmatpush2.msra.mxu0 0.0
    %3531 = vmatprep.mubr.f32.mxu0 0.0
    %3532 = vmatmul.mubr.f32.gmra.mxu0 %v3465
    %v3533 = vpop.f32.mrf.mxu0
    %v3534 = vadd.f32 0.0, %v3533
    %v3535 = vpop.f32.mrf.mxu0
    %3536 = vdwg.mxu0
    %3537 = vrot.lane.b32.xlu0 %v2290, 104
    %v3538 = vpop.permute.xlu0 %3537
    %v3541 = vsel %vm315, %v3460, 0
    %3543 = vmatprep.subr.mxu0 0.0
    %3544 = vmatpush1.msra.mxu0 0.0
    %3545 = vmatprep.subr.mxu0 0.0
    %3546 = vmatpush1.msra.mxu0 0.0
    %3547 = vmatprep.subr.mxu0 0.0
    %3548 = vmatpush1.msra.mxu0 0.0
    %3549 = vmatprep.subr.mxu0 0.0
    %3550 = vmatpush1.msra.mxu0 0.0
    %3551 = vmatprep.subr.mxu0 0.0
    %3552 = vmatpush1.msra.mxu0 0.0
    %3553 = vmatprep.subr.mxu0 0.0
    %3554 = vmatpush1.msra.mxu0 0.0
    %3555 = vmatprep.subr.mxu0 0.0
    %3556 = vmatpush1.msra.mxu0 0.0
    %3557 = vmatprep.subr.mxu0 0.0
    %3558 = vmatpush1.msra.mxu0 0.0
    %3559 = vmatprep.subr.mxu0 0.0
    %3560 = vmatpush1.msra.mxu0 0.0
    %3561 = vmatprep.subr.mxu0 0.0
    %3562 = vmatpush1.msra.mxu0 0.0
    %3563 = vmatprep.subr.mxu0 0.0
    %3564 = vmatpush1.msra.mxu0 0.0
    %3565 = vmatprep.subr.mxu0 0.0
    %3566 = vmatpush1.msra.mxu0 0.0
    %3567 = vmatprep.subr.mxu0 0.0
    %3568 = vmatpush1.msra.mxu0 0.0
    %3569 = vmatprep.subr.mxu0 0.0
    %3570 = vmatpush1.msra.mxu0 0.0
    %3571 = vmatprep.subr.mxu0 0.0
    %3572 = vmatpush1.msra.mxu0 0.0
    %3573 = vmatprep.subr.mxu0 0.0
    %3574 = vmatpush1.msra.mxu0 %v3538
    %3575 = vmatprep.subr.mxu0 0.0
    %3576 = vmatpush2.msra.mxu0 0.0
    %3577 = vmatprep.subr.mxu0 0.0
    %3578 = vmatpush2.msra.mxu0 0.0
    %3579 = vmatprep.subr.mxu0 0.0
    %3580 = vmatpush2.msra.mxu0 0.0
    %3581 = vmatprep.subr.mxu0 0.0
    %3582 = vmatpush2.msra.mxu0 0.0
    %3583 = vmatprep.subr.mxu0 0.0
    %3584 = vmatpush2.msra.mxu0 0.0
    %3585 = vmatprep.subr.mxu0 0.0
    %3586 = vmatpush2.msra.mxu0 0.0
    %3587 = vmatprep.subr.mxu0 0.0
    %3588 = vmatpush2.msra.mxu0 0.0
    %3589 = vmatprep.subr.mxu0 0.0
    %3590 = vmatpush2.msra.mxu0 0.0
    %3591 = vmatprep.subr.mxu0 0.0
    %3592 = vmatpush2.msra.mxu0 0.0
    %3593 = vmatprep.subr.mxu0 0.0
    %3594 = vmatpush2.msra.mxu0 0.0
    %3595 = vmatprep.subr.mxu0 0.0
    %3596 = vmatpush2.msra.mxu0 0.0
    %3597 = vmatprep.subr.mxu0 0.0
    %3598 = vmatpush2.msra.mxu0 0.0
    %3599 = vmatprep.subr.mxu0 0.0
    %3600 = vmatpush2.msra.mxu0 0.0
    %3601 = vmatprep.subr.mxu0 0.0
    %3602 = vmatpush2.msra.mxu0 0.0
    %3603 = vmatprep.subr.mxu0 0.0
    %3604 = vmatpush2.msra.mxu0 0.0
    %3605 = vmatprep.subr.mxu0 0.0
    %3606 = vmatpush2.msra.mxu0 0.0
    %3607 = vmatprep.mubr.f32.mxu0 0.0
    %3608 = vmatmul.mubr.f32.gmra.mxu0 %v3541
    %v3609 = vpop.f32.mrf.mxu0
    %v3610 = vadd.f32 0.0, %v3609
    %v3611 = vpop.f32.mrf.mxu0
    %3612 = vdwg.mxu0
    %3615 = vrot.lane.b32.xlu0 %v2869, 8
    %v3616 = vpop.permute.xlu0 %3615
    %3617 = vrot.lane.b32.xlu0 %v2946, 8
    %v3618 = vpop.permute.xlu0 %3617
    %3623 = vrot.lane.b32.xlu0 %v3202, 16
    %v3624 = vpop.permute.xlu0 %3623
    %3625 = vrot.lane.b32.xlu0 %v3278, 16
    %v3626 = vpop.permute.xlu0 %3625
    %3631 = vrot.lane.b32.xlu0 %v3534, 24
    %v3632 = vpop.permute.xlu0 %3631
    %3633 = vrot.lane.b32.xlu0 %v3610, 24
    %v3634 = vpop.permute.xlu0 %3633
    %v3637 = vsel %vm315, %v2539, %v3616
    %v3638 = vsel %vm315, %v2612, %v3618
    %v3639 = vsel %vm1662, %v3637, %v3624
    %v3640 = vsel %vm1662, %v3638, %v3626
    %v3641 = vsel %vm1665, %v3639, %v3632
    %v3642 = vsel %vm1665, %v3640, %v3634
    %s3643 = scalar_lea.vmem %s5, 32
    %v3644 = vld [vmem:[%s3643] sm:$0xff]
    %v3645 = vld [vmem:[%s3643 + $0x8] sm:$0xff]
    %v3646 = vld [vmem:[%s3643 + $0x10] sm:$0xff]
    %v3647 = vld [vmem:[%s3643 + $0x18] sm:$0xff]
    %s3648 = scalar_lea.vmem %s6, 1
    %v3649 = vld [vmem:[%s3648] sm:$0x1]
    %v3651 = vlaneseq
    %v3652 = vshrl.u32 %v3651, 7
    %v3653 = vsub.s32 0, %v3652
    %v3654 = vrot.slane %v3649, %v3653
    %v3657 = vsel %vm73, %v3641, 0
    %v3660 = vsel %vm73, %v3642, 0
    %3662 = vmatprep.subr.mxu0 0.0
    %3663 = vmatpush1.msra.mxu0 0.0
    %3664 = vmatprep.subr.mxu0 0.0
    %3665 = vmatpush1.msra.mxu0 0.0
    %3666 = vmatprep.subr.mxu0 0.0
    %3667 = vmatpush1.msra.mxu0 0.0
    %3668 = vmatprep.subr.mxu0 0.0
    %3669 = vmatpush1.msra.mxu0 0.0
    %3670 = vmatprep.subr.mxu0 0.0
    %3671 = vmatpush1.msra.mxu0 0.0
    %3672 = vmatprep.subr.mxu0 0.0
    %3673 = vmatpush1.msra.mxu0 0.0
    %3674 = vmatprep.subr.mxu0 0.0
    %3675 = vmatpush1.msra.mxu0 0.0
    %3676 = vmatprep.subr.mxu0 0.0
    %3677 = vmatpush1.msra.mxu0 0.0
    %3678 = vmatprep.subr.mxu0 0.0
    %3679 = vmatpush1.msra.mxu0 0.0
    %3680 = vmatprep.subr.mxu0 0.0
    %3681 = vmatpush1.msra.mxu0 0.0
    %3682 = vmatprep.subr.mxu0 0.0
    %3683 = vmatpush1.msra.mxu0 0.0
    %3684 = vmatprep.subr.mxu0 0.0
    %3685 = vmatpush1.msra.mxu0 0.0
    %3686 = vmatprep.subr.mxu0 0.0
    %3687 = vmatpush1.msra.mxu0 %v3647
    %3688 = vmatprep.subr.mxu0 0.0
    %3689 = vmatpush1.msra.mxu0 %v3646
    %3690 = vmatprep.subr.mxu0 0.0
    %3691 = vmatpush1.msra.mxu0 %v3645
    %3692 = vmatprep.subr.mxu0 0.0
    %3693 = vmatpush1.msra.mxu0 %v3644
    %3694 = vmatprep.subr.mxu0 0.0
    %3695 = vmatpush2.msra.mxu0 0.0
    %3696 = vmatprep.subr.mxu0 0.0
    %3697 = vmatpush2.msra.mxu0 0.0
    %3698 = vmatprep.subr.mxu0 0.0
    %3699 = vmatpush2.msra.mxu0 0.0
    %3700 = vmatprep.subr.mxu0 0.0
    %3701 = vmatpush2.msra.mxu0 0.0
    %3702 = vmatprep.subr.mxu0 0.0
    %3703 = vmatpush2.msra.mxu0 0.0
    %3704 = vmatprep.subr.mxu0 0.0
    %3705 = vmatpush2.msra.mxu0 0.0
    %3706 = vmatprep.subr.mxu0 0.0
    %3707 = vmatpush2.msra.mxu0 0.0
    %3708 = vmatprep.subr.mxu0 0.0
    %3709 = vmatpush2.msra.mxu0 0.0
    %3710 = vmatprep.subr.mxu0 0.0
    %3711 = vmatpush2.msra.mxu0 0.0
    %3712 = vmatprep.subr.mxu0 0.0
    %3713 = vmatpush2.msra.mxu0 0.0
    %3714 = vmatprep.subr.mxu0 0.0
    %3715 = vmatpush2.msra.mxu0 0.0
    %3716 = vmatprep.subr.mxu0 0.0
    %3717 = vmatpush2.msra.mxu0 0.0
    %3718 = vmatprep.subr.mxu0 0.0
    %3719 = vmatpush2.msra.mxu0 0.0
    %3720 = vmatprep.subr.mxu0 0.0
    %3721 = vmatpush2.msra.mxu0 0.0
    %3722 = vmatprep.subr.mxu0 0.0
    %3723 = vmatpush2.msra.mxu0 0.0
    %3724 = vmatprep.subr.mxu0 0.0
    %3725 = vmatpush2.msra.mxu0 0.0
    %3726 = vmatprep.mubr.f32.mxu0 0.0
    %3727 = vmatmul.mubr.f32.gmra.mxu0 %v3657
    %v3728 = vpop.f32.mrf.mxu0
    %v3729 = vadd.f32 %v3654, %v3728
    %v3730 = vpop.f32.mrf.mxu0
    %3731 = vmatprep.mubr.f32.mxu0 0.0
    %3732 = vmatmul.mubr.f32.gmra.mxu0 %v3660
    %v3733 = vpop.f32.mrf.mxu0
    %v3734 = vadd.f32 %v3654, %v3733
    %v3735 = vpop.f32.mrf.mxu0
    %3736 = vdwg.mxu0
    %v3737 = vadd.f32 %v3729, %v2043
    %v3738 = vadd.f32 %v3734, %v2044
    %s3739 = scalar_lea.vmem %s7, 1
    %v3740 = vld [vmem:[%s3739] sm:$0x1]
    %s3741 = scalar_lea.vmem %s8, 1
    %v3742 = vld [vmem:[%s3741] sm:$0x1]
    %v3743 = vsel %vm73, %v3737, 0.0
    %3744 = vadd.xlane.f32.xlu0 %v3743
    %v3745 = vpop.xlane.xlu0 %3744
    %v3746 = vsel %vm73, %v3738, 0.0
    %3747 = vadd.xlane.f32.xlu0 %v3746
    %v3748 = vpop.xlane.xlu0 %3747
    %v3749 = vmul.f32 %v3745, %v1770
    %v3750 = vmul.f32 %v3748, %v1770
    %v3751 = vsub.f32 %v3737, %v3749
    %v3752 = vsub.f32 %v3738, %v3750
    %v3753 = vmul.f32 %v3751, %v3751
    %v3754 = vmul.f32 %v3752, %v3752
    %v3755 = vsel %vm73, %v3753, 0.0
    %3756 = vadd.xlane.f32.xlu0 %v3755
    %v3757 = vpop.xlane.xlu0 %3756
    %v3758 = vsel %vm73, %v3754, 0.0
    %3759 = vadd.xlane.f32.xlu0 %v3758
    %v3760 = vpop.xlane.xlu0 %3759
    %v3761 = vmul.f32 %v3757, %v1770
    %v3762 = vmul.f32 %v3760, %v1770
    %v3763 = vadd.f32 %v3761, 1e-05
    %v3764 = vadd.f32 %v3762, 1e-05
    %v3765 = vrsqrt.pop %v3763
    %v3766 = vrsqrt.pop %v3764
    %v3767 = vmul.f32 %v3751, %v3765
    %v3768 = vmul.f32 %v3752, %v3766
    %v3770 = vlaneseq
    %v3771 = vshrl.u32 %v3770, 7
    %v3772 = vsub.s32 0, %v3771
    %v3773 = vrot.slane %v3740, %v3772
    %v3775 = vmul.f32 %v3767, %v3773
    %v3776 = vmul.f32 %v3768, %v3773
    %v3778 = vlaneseq
    %v3779 = vshrl.u32 %v3778, 7
    %v3780 = vsub.s32 0, %v3779
    %v3781 = vrot.slane %v3742, %v3780
    %v3783 = vadd.f32 %v3775, %v3781
    %v3784 = vadd.f32 %v3776, %v3781
    %s3785 = scalar_lea.vmem %s9, 32
    %v3786 = vld [vmem:[%s3785] sm:$0xff]
    %v3787 = vld [vmem:[%s3785 + $0x8] sm:$0xff]
    %v3788 = vld [vmem:[%s3785 + $0x10] sm:$0xff]
    %v3789 = vld [vmem:[%s3785 + $0x18] sm:$0xff]
    %s3790 = scalar_lea.vmem %s10, 1
    %v3791 = vld [vmem:[%s3790] sm:$0x1]
    %v3793 = vlaneseq
    %v3794 = vshrl.u32 %v3793, 7
    %v3795 = vsub.s32 0, %v3794
    %v3796 = vrot.slane %v3791, %v3795
    %v3799 = vsel %vm73, %v3783, 0
    %v3802 = vsel %vm73, %v3784, 0
    %3804 = vmatprep.subr.mxu0 0.0
    %3805 = vmatpush1.msra.mxu0 0.0
    %3806 = vmatprep.subr.mxu0 0.0
    %3807 = vmatpush1.msra.mxu0 0.0
    %3808 = vmatprep.subr.mxu0 0.0
    %3809 = vmatpush1.msra.mxu0 0.0
    %3810 = vmatprep.subr.mxu0 0.0
    %3811 = vmatpush1.msra.mxu0 0.0
    %3812 = vmatprep.subr.mxu0 0.0
    %3813 = vmatpush1.msra.mxu0 0.0
    %3814 = vmatprep.subr.mxu0 0.0
    %3815 = vmatpush1.msra.mxu0 0.0
    %3816 = vmatprep.subr.mxu0 0.0
    %3817 = vmatpush1.msra.mxu0 0.0
    %3818 = vmatprep.subr.mxu0 0.0
    %3819 = vmatpush1.msra.mxu0 0.0
    %3820 = vmatprep.subr.mxu0 0.0
    %3821 = vmatpush1.msra.mxu0 0.0
    %3822 = vmatprep.subr.mxu0 0.0
    %3823 = vmatpush1.msra.mxu0 0.0
    %3824 = vmatprep.subr.mxu0 0.0
    %3825 = vmatpush1.msra.mxu0 0.0
    %3826 = vmatprep.subr.mxu0 0.0
    %3827 = vmatpush1.msra.mxu0 0.0
    %3828 = vmatprep.subr.mxu0 0.0
    %3829 = vmatpush1.msra.mxu0 %v3789
    %3830 = vmatprep.subr.mxu0 0.0
    %3831 = vmatpush1.msra.mxu0 %v3788
    %3832 = vmatprep.subr.mxu0 0.0
    %3833 = vmatpush1.msra.mxu0 %v3787
    %3834 = vmatprep.subr.mxu0 0.0
    %3835 = vmatpush1.msra.mxu0 %v3786
    %3836 = vmatprep.subr.mxu0 0.0
    %3837 = vmatpush2.msra.mxu0 0.0
    %3838 = vmatprep.subr.mxu0 0.0
    %3839 = vmatpush2.msra.mxu0 0.0
    %3840 = vmatprep.subr.mxu0 0.0
    %3841 = vmatpush2.msra.mxu0 0.0
    %3842 = vmatprep.subr.mxu0 0.0
    %3843 = vmatpush2.msra.mxu0 0.0
    %3844 = vmatprep.subr.mxu0 0.0
    %3845 = vmatpush2.msra.mxu0 0.0
    %3846 = vmatprep.subr.mxu0 0.0
    %3847 = vmatpush2.msra.mxu0 0.0
    %3848 = vmatprep.subr.mxu0 0.0
    %3849 = vmatpush2.msra.mxu0 0.0
    %3850 = vmatprep.subr.mxu0 0.0
    %3851 = vmatpush2.msra.mxu0 0.0
    %3852 = vmatprep.subr.mxu0 0.0
    %3853 = vmatpush2.msra.mxu0 0.0
    %3854 = vmatprep.subr.mxu0 0.0
    %3855 = vmatpush2.msra.mxu0 0.0
    %3856 = vmatprep.subr.mxu0 0.0
    %3857 = vmatpush2.msra.mxu0 0.0
    %3858 = vmatprep.subr.mxu0 0.0
    %3859 = vmatpush2.msra.mxu0 0.0
    %3860 = vmatprep.subr.mxu0 0.0
    %3861 = vmatpush2.msra.mxu0 0.0
    %3862 = vmatprep.subr.mxu0 0.0
    %3863 = vmatpush2.msra.mxu0 0.0
    %3864 = vmatprep.subr.mxu0 0.0
    %3865 = vmatpush2.msra.mxu0 0.0
    %3866 = vmatprep.subr.mxu0 0.0
    %3867 = vmatpush2.msra.mxu0 0.0
    %3868 = vmatprep.mubr.f32.mxu0 0.0
    %3869 = vmatmul.mubr.f32.gmra.mxu0 %v3799
    %v3870 = vpop.f32.mrf.mxu0
    %v3871 = vadd.f32 %v3796, %v3870
    %v3872 = vpop.f32.mrf.mxu0
    %3873 = vmatprep.mubr.f32.mxu0 0.0
    %3874 = vmatmul.mubr.f32.gmra.mxu0 %v3802
    %v3875 = vpop.f32.mrf.mxu0
    %v3876 = vadd.f32 %v3796, %v3875
    %v3877 = vpop.f32.mrf.mxu0
    %3878 = vdwg.mxu0
    %v3879 = vmax.f32 %v3871, 0.0
    %v3880 = vmax.f32 %v3876, 0.0
    %s3881 = scalar_lea.vmem %s11, 128
    %v3882 = vld [vmem:[%s3881] sm:$0xff]
    %v3883 = vld [vmem:[%s3881 + $0x8] sm:$0xff]
    %v3884 = vld [vmem:[%s3881 + $0x10] sm:$0xff]
    %v3885 = vld [vmem:[%s3881 + $0x18] sm:$0xff]
    %v3886 = vld [vmem:[%s3881 + $0x20] sm:$0xff]
    %v3887 = vld [vmem:[%s3881 + $0x28] sm:$0xff]
    %v3888 = vld [vmem:[%s3881 + $0x30] sm:$0xff]
    %v3889 = vld [vmem:[%s3881 + $0x38] sm:$0xff]
    %v3890 = vld [vmem:[%s3881 + $0x40] sm:$0xff]
    %v3891 = vld [vmem:[%s3881 + $0x48] sm:$0xff]
    %v3892 = vld [vmem:[%s3881 + $0x50] sm:$0xff]
    %v3893 = vld [vmem:[%s3881 + $0x58] sm:$0xff]
    %v3894 = vld [vmem:[%s3881 + $0x60] sm:$0xff]
    %v3895 = vld [vmem:[%s3881 + $0x68] sm:$0xff]
    %v3896 = vld [vmem:[%s3881 + $0x70] sm:$0xff]
    %v3897 = vld [vmem:[%s3881 + $0x78] sm:$0xff]
    %s3898 = scalar_lea.vmem %s12, 1
    %v3899 = vld [vmem:[%s3898] sm:$0x1]
    %v3901 = vlaneseq
    %v3902 = vshrl.u32 %v3901, 7
    %v3903 = vsub.s32 0, %v3902
    %v3904 = vrot.slane %v3899, %v3903
    %3906 = vmatprep.subr.mxu0 0.0
    %3907 = vmatpush1.msra.mxu0 %v3897
    %3908 = vmatprep.subr.mxu0 0.0
    %3909 = vmatpush1.msra.mxu0 %v3896
    %3910 = vmatprep.subr.mxu0 0.0
    %3911 = vmatpush1.msra.mxu0 %v3895
    %3912 = vmatprep.subr.mxu0 0.0
    %3913 = vmatpush1.msra.mxu0 %v3894
    %3914 = vmatprep.subr.mxu0 0.0
    %3915 = vmatpush1.msra.mxu0 %v3893
    %3916 = vmatprep.subr.mxu0 0.0
    %3917 = vmatpush1.msra.mxu0 %v3892
    %3918 = vmatprep.subr.mxu0 0.0
    %3919 = vmatpush1.msra.mxu0 %v3891
    %3920 = vmatprep.subr.mxu0 0.0
    %3921 = vmatpush1.msra.mxu0 %v3890
    %3922 = vmatprep.subr.mxu0 0.0
    %3923 = vmatpush1.msra.mxu0 %v3889
    %3924 = vmatprep.subr.mxu0 0.0
    %3925 = vmatpush1.msra.mxu0 %v3888
    %3926 = vmatprep.subr.mxu0 0.0
    %3927 = vmatpush1.msra.mxu0 %v3887
    %3928 = vmatprep.subr.mxu0 0.0
    %3929 = vmatpush1.msra.mxu0 %v3886
    %3930 = vmatprep.subr.mxu0 0.0
    %3931 = vmatpush1.msra.mxu0 %v3885
    %3932 = vmatprep.subr.mxu0 0.0
    %3933 = vmatpush1.msra.mxu0 %v3884
    %3934 = vmatprep.subr.mxu0 0.0
    %3935 = vmatpush1.msra.mxu0 %v3883
    %3936 = vmatprep.subr.mxu0 0.0
    %3937 = vmatpush1.msra.mxu0 %v3882
    %3938 = vmatprep.subr.mxu0 0.0
    %3939 = vmatpush2.msra.mxu0 0.0
    %3940 = vmatprep.subr.mxu0 0.0
    %3941 = vmatpush2.msra.mxu0 0.0
    %3942 = vmatprep.subr.mxu0 0.0
    %3943 = vmatpush2.msra.mxu0 0.0
    %3944 = vmatprep.subr.mxu0 0.0
    %3945 = vmatpush2.msra.mxu0 0.0
    %3946 = vmatprep.subr.mxu0 0.0
    %3947 = vmatpush2.msra.mxu0 0.0
    %3948 = vmatprep.subr.mxu0 0.0
    %3949 = vmatpush2.msra.mxu0 0.0
    %3950 = vmatprep.subr.mxu0 0.0
    %3951 = vmatpush2.msra.mxu0 0.0
    %3952 = vmatprep.subr.mxu0 0.0
    %3953 = vmatpush2.msra.mxu0 0.0
    %3954 = vmatprep.subr.mxu0 0.0
    %3955 = vmatpush2.msra.mxu0 0.0
    %3956 = vmatprep.subr.mxu0 0.0
    %3957 = vmatpush2.msra.mxu0 0.0
    %3958 = vmatprep.subr.mxu0 0.0
    %3959 = vmatpush2.msra.mxu0 0.0
    %3960 = vmatprep.subr.mxu0 0.0
    %3961 = vmatpush2.msra.mxu0 0.0
    %3962 = vmatprep.subr.mxu0 0.0
    %3963 = vmatpush2.msra.mxu0 0.0
    %3964 = vmatprep.subr.mxu0 0.0
    %3965 = vmatpush2.msra.mxu0 0.0
    %3966 = vmatprep.subr.mxu0 0.0
    %3967 = vmatpush2.msra.mxu0 0.0
    %3968 = vmatprep.subr.mxu0 0.0
    %3969 = vmatpush2.msra.mxu0 0.0
    %3970 = vmatprep.mubr.f32.mxu0 0.0
    %3971 = vmatmul.mubr.f32.gmra.mxu0 %v3879
    %v3972 = vpop.f32.mrf.mxu0
    %v3973 = vadd.f32 %v3904, %v3972
    %v3974 = vpop.f32.mrf.mxu0
    %3975 = vmatprep.mubr.f32.mxu0 0.0
    %3976 = vmatmul.mubr.f32.gmra.mxu0 %v3880
    %v3977 = vpop.f32.mrf.mxu0
    %v3978 = vadd.f32 %v3904, %v3977
    %v3979 = vpop.f32.mrf.mxu0
    %3980 = vdwg.mxu0
    %v3981 = vadd.f32 %v3973, %v3783
    %v3982 = vadd.f32 %v3978, %v3784
    %s3983 = scalar_lea.vmem %s13, 1
    %v3984 = vld [vmem:[%s3983] sm:$0x1]
    %s3985 = scalar_lea.vmem %s14, 1
    %v3986 = vld [vmem:[%s3985] sm:$0x1]
    %v3987 = vsel %vm73, %v3981, 0.0
    %3988 = vadd.xlane.f32.xlu0 %v3987
    %v3989 = vpop.xlane.xlu0 %3988
    %v3990 = vsel %vm73, %v3982, 0.0
    %3991 = vadd.xlane.f32.xlu0 %v3990
    %v3992 = vpop.xlane.xlu0 %3991
    %v3993 = vmul.f32 %v3989, %v1770
    %v3994 = vmul.f32 %v3992, %v1770
    %v3995 = vsub.f32 %v3981, %v3993
    %v3996 = vsub.f32 %v3982, %v3994
    %v3997 = vmul.f32 %v3995, %v3995
    %v3998 = vmul.f32 %v3996, %v3996
    %v3999 = vsel %vm73, %v3997, 0.0
    %4000 = vadd.xlane.f32.xlu0 %v3999
    %v4001 = vpop.xlane.xlu0 %4000
    %v4002 = vsel %vm73, %v3998, 0.0
    %4003 = vadd.xlane.f32.xlu0 %v4002
    %v4004 = vpop.xlane.xlu0 %4003
    %v4005 = vmul.f32 %v4001, %v1770
    %v4006 = vmul.f32 %v4004, %v1770
    %v4007 = vadd.f32 %v4005, 1e-05
    %v4008 = vadd.f32 %v4006, 1e-05
    %v4009 = vrsqrt.pop %v4007
    %v4010 = vrsqrt.pop %v4008
    %v4011 = vmul.f32 %v3995, %v4009
    %v4012 = vmul.f32 %v3996, %v4010
    %v4014 = vlaneseq
    %v4015 = vshrl.u32 %v4014, 7
    %v4016 = vsub.s32 0, %v4015
    %v4017 = vrot.slane %v3984, %v4016
    %v4019 = vmul.f32 %v4011, %v4017
    %v4020 = vmul.f32 %v4012, %v4017
    %v4022 = vlaneseq
    %v4023 = vshrl.u32 %v4022, 7
    %v4024 = vsub.s32 0, %v4023
    %v4025 = vrot.slane %v3986, %v4024
    %v4027 = vadd.f32 %v4019, %v4025
    %v4028 = vadd.f32 %v4020, %v4025
    %4029 = vst.msk [vmem:[#allocation2] sm:$0xff] %vm73, %v4027
    %4030 = vst.msk [vmem:[#allocation2 + $0x8] sm:$0xff] %vm73, %v4028
    // Predicated region
    $region62: #{encoder_forward.1} parent=1 // pred_check
      _
    $region63: #{encoder_forward.1} parent=1 // pred_check_branch
      %4032 = sbr.rel (0) target = $region65
    $region64: #{encoder_forward.1} parent=1 // pred_region
      %s4034 = ssub.s32 256, 256
      %4035 = vsyncadd [#allocation3], %s4034
      %s4036 = sshll.u32 [#allocation2], 4
      %s4037 = int_to_ptr.vmem [resolvable:$true] %s4036
      %4042 = dma.vmem_to_hbm [thread:$0]  %s4037, 256, %s15, [#allocation3], 128, 128, 8
    $region65: #{encoder_forward.1} parent=1 // pred_fallthru
      _
    // Predicated region
    $region66: #{encoder_forward.1} parent=1 // pred_check
      _
    $region67: #{encoder_forward.1} parent=1 // pred_check_branch
      %4044 = sbr.rel (0) target = $region69
    $region68: #{encoder_forward.1} parent=1 // pred_region
      %4045 = dma.done [#allocation3], 256
    $region69: #{encoder_forward.1} parent=1 // pred_fallthru
      _
    %4046 = vsyncpa [#allocation3], 1

</llo_original>
